<compile_context>
chip_gen: v7x
topology: tpu7x:2x2x1
jax: 0.10.0
libtpu: 0.0.40
codegen_flags: <defaults>
</compile_context>

<pallas_src>
import numpy as np

import jax
import jax.numpy as jnp
from jax.experimental import pallas as pl
from jax.experimental.pallas import tpu as pltpu

_BN_EPS = 1e-5


# ------------------------------ fused Pallas kernel ------------------------------

def _lenet_kernel(xp_ref, t1_ref, b1_ref, t2_ref, b2_ref,
                  wfc1_ref, bfc1_ref, wfc2a_ref, bfc2a_ref,
                  wfc2b_ref, bfc2b_ref, out_ref):
    """Whole LeNet forward for one batch tile; everything stays VMEM-resident."""
    tb = xp_ref.shape[0]

    def bc(w):  # broadcast an unbatched (weight) operand across the batch tile
        return jnp.broadcast_to(w, (tb,) + w.shape)

    def bmm(lhs, rhs):  # (tb,m,k) @ (tb,k,n) -> (tb,m,n), f32 accumulation on MXU
        return jax.lax.dot_general(
            lhs, rhs, (((2,), (1,)), ((0,), (0,))),
            preferred_element_type=jnp.float32)

    def even_rows(n_out, n_in):  # S[p, r] = 1.0 iff r == 2p (pool row subsample)
        p = jax.lax.broadcasted_iota(jnp.int32, (n_out, n_in), 0)
        r = jax.lax.broadcasted_iota(jnp.int32, (n_out, n_in), 1)
        return (r == 2 * p).astype(jnp.float32)

    x = xp_ref[...]                                        # (tb, 32, 32) padded input

    # ---- conv1 (1->6, 3x3) as 3 width-Toeplitz matmuls; lanes = ow*6 + oc ----
    y = bmm(x[:, 0:30, :], bc(t1_ref[0]))
    y = y + bmm(x[:, 1:31, :], bc(t1_ref[1]))
    y = y + bmm(x[:, 2:32, :], bc(t1_ref[2]))
    y = jnp.maximum(y + b1_ref[...], 0.0)                  # (tb, 30, 180), ReLU

    # ---- MaxPool2d(2): pair-max rows, pair-max cols (lane stride 6), even rows ----
    m = jnp.maximum(y[:, 0:29, :], y[:, 1:30, :])          # (tb, 29, 180)
    m = jnp.maximum(m[:, :, 0:174], m[:, :, 6:180])        # (tb, 29, 174)
    yq = bmm(bc(even_rows(15, 29)), m)                     # (tb, 15, 174)
    # (the column subsample is folded into t2: odd-ow lanes carry zero weights)

    # ---- grouped conv2 (6->16, 5x5; torch split/cat pattern baked into t2) ----
    z = bmm(yq[:, 0:11, :], bc(t2_ref[0]))
    for ki in range(1, 5):
        z = z + bmm(yq[:, ki:ki + 11, :], bc(t2_ref[ki]))
    z = jnp.maximum(z + b2_ref[...], 0.0)                  # (tb, 11, 176), lanes = ow2*16+oc
    # single ReLU covers both the per-branch ReLUs and conv3's ReLU (idempotent)

    # ---- conv3 MaxPool2d(2) ----
    m2 = jnp.maximum(z[:, 0:10, :], z[:, 1:11, :])         # (tb, 10, 176)
    m2 = jnp.maximum(m2[:, :, 0:160], m2[:, :, 16:176])    # (tb, 10, 160)
    a = bmm(bc(even_rows(5, 10)), m2)                      # (tb, 5, 160)

    # ---- fc1 (+BN folded; NCHW flatten + pool col-subsample folded into wfc1) ----
    h = bmm(a[:, 0:1, :], bc(wfc1_ref[0]))
    for ph in range(1, 5):
        h = h + bmm(a[:, ph:ph + 1, :], bc(wfc1_ref[ph]))
    h = jnp.maximum(h + bfc1_ref[...], 0.0)                # (tb, 1, 120)

    # ---- fc2: Linear(120,84)+BN+ReLU, then Linear(84,10) padded to 128 lanes ----
    h = jnp.maximum(bmm(h, bc(wfc2a_ref[...])) + bfc2a_ref[...], 0.0)    # (tb,1,84)
    out_ref[...] = bmm(h, bc(wfc2b_ref[...])) + bfc2b_ref[...]           # (tb,1,128)


# --------------------------- host-side (one-time) prep ---------------------------

def init_params(key):
    ks = jax.random.split(key, 16)

    def rnd(k, shape, scale=0.1):
        return scale * jax.random.normal(k, shape, dtype=jnp.float32)

    return {
        "w_conv1": rnd(ks[0], (6, 1, 3, 3)), "b_conv1": rnd(ks[1], (6,)),
        "w2_1": rnd(ks[2], (1, 3, 5, 5)),    "b2_1": rnd(ks[3], (1,)),
        "w2_2": rnd(ks[4], (1, 4, 5, 5)),    "b2_2": rnd(ks[5], (1,)),
        "w2_3": rnd(ks[6], (1, 4, 5, 5)),    "b2_3": rnd(ks[7], (1,)),
        "w2_4": rnd(ks[8], (1, 6, 5, 5)),    "b2_4": rnd(ks[9], (1,)),
        "w_fc1": rnd(ks[10], (120, 400)),    "b_fc1": rnd(ks[11], (120,)),
        "w_fc2a": rnd(ks[12], (84, 120)),    "b_fc2a": rnd(ks[13], (84,)),
        "w_fc2b": rnd(ks[14], (10, 84)),     "b_fc2b": rnd(ks[15], (10,)),
    }


def pack_params(p):
    """One-time host-side weight packing (numpy, outside the per-call forward)."""
    g = lambda a: np.asarray(jax.device_get(a), dtype=np.float32)

    # conv1 Toeplitz: t1[kh, w, ow*6 + oc] = w_conv1[oc, 0, kh, w - ow], 0<=w-ow<=2
    w1, b1 = g(p["w_conv1"]), g(p["b_conv1"])
    t1 = np.zeros((3, 32, 180), np.float32)
    for kh in range(3):
        for ow in range(30):
            for kw in range(3):
                t1[kh, ow + kw, ow * 6:(ow + 1) * 6] = w1[:, 0, kh, kw]
    b1_lane = np.tile(b1, 30).reshape(1, 1, 180)

    # grouped conv2: dense (16, 6, 5, 5) weight reproducing the torch split/cat.
    sel1 = [[(j + k) % 6 for k in range(3)] for j in range(6)]
    sel2 = [[(j + k) % 6 for k in range(4)] for j in range(6)]
    sel3 = [[0, 1, 3, 4], [1, 2, 4, 5], [2, 3, 5, 0]]
    w2_1, w2_2, w2_3, w2_4 = g(p["w2_1"]), g(p["w2_2"]), g(p["w2_3"]), g(p["w2_4"])
    w2 = np.zeros((16, 6, 5, 5), np.float32)
    for j, sel in enumerate(sel1):
        for k, ch in enumerate(sel):
            w2[j, ch] = w2_1[0, k]
    for j, sel in enumerate(sel2):
        for k, ch in enumerate(sel):
            w2[6 + j, ch] = w2_2[0, k]
    for j, sel in enumerate(sel3):
        for k, ch in enumerate(sel):
            w2[12 + j, ch] = w2_3[0, k]
    w2[15] = w2_4[0]
    bias16 = np.concatenate([np.repeat(g(p["b2_1"]), 6),
                             np.repeat(g(p["b2_2"]), 6),
                             np.repeat(g(p["b2_3"]), 3),
                             g(p["b2_4"])]).astype(np.float32)

    # conv2 Toeplitz over the column-unsubsampled pool1 map (lanes = ow*6 + c):
    # t2[ki, ow*6 + c, ow2*16 + oc] = w2[oc, c, ki, kj] with ow = 2*(ow2 + kj).
    t2 = np.zeros((5, 174, 176), np.float32)
    for ki in range(5):
        for ow2 in range(11):
            for kj in range(5):
                ow = 2 * (ow2 + kj)
                for c in range(6):
                    t2[ki, ow * 6 + c, ow2 * 16:(ow2 + 1) * 16] = w2[:, c, ki, kj]
    b2_lane = np.tile(bias16, 11).reshape(1, 1, 176)

    # Eval-mode BatchNorm1d fold (gamma=1, beta=0, mean=0, var=1).
    # TODO(synk): training-mode BatchNorm (per-batch statistics) is not reproduced.
    s = np.float32(1.0 / np.sqrt(1.0 + _BN_EPS))

    # fc1: fold BN + NCHW flatten (idx = oc*25 + ph*5 + pw) + pool2 column
    # subsample into a (5, 160, 120) weight indexed by [ph, ow2*16 + oc, n].
    wfc1 = g(p["w_fc1"]) * s                              # (120, 400)
    wfc1x = np.zeros((5, 160, 120), np.float32)
    for ph in range(5):
        for pw in range(5):
            for oc in range(16):
                wfc1x[ph, 32 * pw + oc, :] = wfc1[:, oc * 25 + ph * 5 + pw]
    bfc1 = (g(p["b_fc1"]) * s).reshape(1, 1, 120)

    wfc2a = np.ascontiguousarray((g(p["w_fc2a"]) * s).T)  # (120, 84), BN folded
    bfc2a = (g(p["b_fc2a"]) * s).reshape(1, 1, 84)

    wfc2b = np.zeros((84, 128), np.float32)               # pad N: 10 -> 128 lanes
    wfc2b[:, :10] = g(p["w_fc2b"]).T
    bfc2b = np.zeros((1, 1, 128), np.float32)
    bfc2b[0, 0, :10] = g(p["b_fc2b"])

    return {k: jnp.asarray(v) for k, v in {
        "t1": t1, "b1": b1_lane, "t2": t2, "b2": b2_lane,
        "wfc1": wfc1x, "bfc1": bfc1, "wfc2a": wfc2a, "bfc2a": bfc2a,
        "wfc2b": wfc2b, "bfc2b": bfc2b}.items()}


# --------------------------------- forward wrapper --------------------------------

def lenet_forward(x, packed, *, batch_tile=8):
    """x: (B, 1, 28, 28) float32 -> logits (B, 10).  One pallas_call total."""
    B = x.shape[0]
    xp = jnp.pad(x[:, 0].astype(jnp.float32), ((0, 0), (2, 2), (2, 2)))  # (B,32,32)
    tb = min(batch_tile, B)                  # batch tile sized for v5e's 16 MiB VMEM
    bp = ((B + tb - 1) // tb) * tb
    if bp != B:
        xp = jnp.pad(xp, ((0, bp - B), (0, 0), (0, 0)))

    def const(shape):  # whole-array block, resident across grid steps
        return pl.BlockSpec(shape, lambda *_: (0,) * len(shape))

    out = pl.pallas_call(
        _lenet_kernel,
        grid=(bp // tb,),
        out_shape=jax.ShapeDtypeStruct((bp, 1, 128), jnp.float32),
        in_specs=[
            pl.BlockSpec((tb, 32, 32), lambda i: (i, 0, 0)),
            const(packed["t1"].shape),
            const(packed["b1"].shape),
            const(packed["t2"].shape),
            const(packed["b2"].shape),
            const(packed["wfc1"].shape),
            const(packed["bfc1"].shape),
            const(packed["wfc2a"].shape),
            const(packed["bfc2a"].shape),
            const(packed["wfc2b"].shape),
            const(packed["bfc2b"].shape),
        ],
        out_specs=pl.BlockSpec((tb, 1, 128), lambda i: (i, 0, 0)),
        compiler_params=pltpu.CompilerParams(
            dimension_semantics=("parallel",)),
    )(xp, packed["t1"], packed["b1"], packed["t2"], packed["b2"],
      packed["wfc1"], packed["bfc1"], packed["wfc2a"], packed["bfc2a"],
      packed["wfc2b"], packed["bfc2b"])
    return out[:B, 0, :10]


if __name__ == "__main__":
    key = jax.random.PRNGKey(0)
    kx, kp = jax.random.split(key)
    # fc1 hard-codes 16*5*5 features, which pins the input to 28x28 (MNIST).
    x = jax.random.normal(kx, (2, 1, 28, 28), dtype=jnp.float32)
    params = init_params(kp)
    packed = pack_params(params)            # one-time host-side weight packing
    fwd = jax.jit(lenet_forward)
    out = jax.block_until_ready(fwd(x, packed))
    assert out.shape == (2, 10) and out.dtype == jnp.float32
    assert bool(jnp.isfinite(out).all())
    print("KERNEL_OK")
</pallas_src>

<mosaic_0001>
module attributes {stable_mosaic.version = 11 : i64} {
  func.func @_lenet_kernel(%arg0: i32, %arg1: memref<2x32x32xf32, #tpu.memory_space<vmem>>, %arg2: memref<3x32x180xf32, #tpu.memory_space<vmem>>, %arg3: memref<1x1x180xf32, #tpu.memory_space<vmem>>, %arg4: memref<5x174x176xf32, #tpu.memory_space<vmem>>, %arg5: memref<1x1x176xf32, #tpu.memory_space<vmem>>, %arg6: memref<5x160x120xf32, #tpu.memory_space<vmem>>, %arg7: memref<1x1x120xf32, #tpu.memory_space<vmem>>, %arg8: memref<120x84xf32, #tpu.memory_space<vmem>>, %arg9: memref<1x1x84xf32, #tpu.memory_space<vmem>>, %arg10: memref<84x128xf32, #tpu.memory_space<vmem>>, %arg11: memref<1x1x128xf32, #tpu.memory_space<vmem>>, %arg12: memref<2x1x128xf32, #tpu.memory_space<vmem>>) attributes {dimension_semantics = [#tpu.dimension_semantics<parallel>], iteration_bounds = array<i64: 1>, scalar_prefetch = 0 : i64, scratch_operands = 0 : i64, tpu.core_type = #tpu.core_type<tc>, window_params = [{transform_indices = @transform_0, window_bounds = array<i64: 2, 32, 32>}, {pipeline_mode = #tpu.pipeline_mode<synchronous>, transform_indices = @transform_1, window_bounds = array<i64: 3, 32, 180>}, {pipeline_mode = #tpu.pipeline_mode<synchronous>, transform_indices = @transform_2, window_bounds = array<i64: 1, 1, 180>}, {pipeline_mode = #tpu.pipeline_mode<synchronous>, transform_indices = @transform_3, window_bounds = array<i64: 5, 174, 176>}, {pipeline_mode = #tpu.pipeline_mode<synchronous>, transform_indices = @transform_4, window_bounds = array<i64: 1, 1, 176>}, {pipeline_mode = #tpu.pipeline_mode<synchronous>, transform_indices = @transform_5, window_bounds = array<i64: 5, 160, 120>}, {pipeline_mode = #tpu.pipeline_mode<synchronous>, transform_indices = @transform_6, window_bounds = array<i64: 1, 1, 120>}, {pipeline_mode = #tpu.pipeline_mode<synchronous>, transform_indices = @transform_7, window_bounds = array<i64: 120, 84>}, {pipeline_mode = #tpu.pipeline_mode<synchronous>, transform_indices = @transform_8, window_bounds = array<i64: 1, 1, 84>}, {pipeline_mode = #tpu.pipeline_mode<synchronous>, transform_indices = @transform_9, window_bounds = array<i64: 84, 128>}, {pipeline_mode = #tpu.pipeline_mode<synchronous>, transform_indices = @transform_10, window_bounds = array<i64: 1, 1, 128>}, {transform_indices = @transform_11, window_bounds = array<i64: 2, 1, 128>}]} {
    %c0 = arith.constant 0 : index
    %c0_0 = arith.constant 0 : index
    %c0_1 = arith.constant 0 : index
    %0 = vector.load %arg1[%c0, %c0_0, %c0_1] : memref<2x32x32xf32, #tpu.memory_space<vmem>>, vector<2x32x32xf32>
    %1 = vector.extract_strided_slice %0 {offsets = [0, 0, 0], sizes = [2, 30, 32], strides = [1, 1, 1]} : vector<2x32x32xf32> to vector<2x30x32xf32>
    %c0_2 = arith.constant 0 : index
    %c0_3 = arith.constant 0 : index
    %c0_4 = arith.constant 0 : index
    %2 = vector.load %arg2[%c0_2, %c0_3, %c0_4] : memref<3x32x180xf32, #tpu.memory_space<vmem>>, vector<1x32x180xf32>
    %3 = vector.shape_cast %2 : vector<1x32x180xf32> to vector<32x180xf32>
    %4 = vector.shape_cast %3 : vector<32x180xf32> to vector<1x32x180xf32>
    %5 = vector.broadcast %4 : vector<1x32x180xf32> to vector<2x32x180xf32>
    %cst = arith.constant dense<0.000000e+00> : vector<2x30x180xf32>
    %6 = tpu.matmul %1, %5, %cst {dimension_numbers = #tpu.dot_dimension_numbers<[2], [1], [1], [2], [0, 0, 0, 1, 1, 2], [0], [0]>} : vector<2x30x32xf32>, vector<2x32x180xf32>, vector<2x30x180xf32> -> vector<2x30x180xf32>
    %7 = vector.extract_strided_slice %0 {offsets = [0, 1, 0], sizes = [2, 30, 32], strides = [1, 1, 1]} : vector<2x32x32xf32> to vector<2x30x32xf32>
    %c1 = arith.constant 1 : index
    %c0_5 = arith.constant 0 : index
    %c0_6 = arith.constant 0 : index
    %8 = vector.load %arg2[%c1, %c0_5, %c0_6] : memref<3x32x180xf32, #tpu.memory_space<vmem>>, vector<1x32x180xf32>
    %9 = vector.shape_cast %8 : vector<1x32x180xf32> to vector<32x180xf32>
    %10 = vector.shape_cast %9 : vector<32x180xf32> to vector<1x32x180xf32>
    %11 = vector.broadcast %10 : vector<1x32x180xf32> to vector<2x32x180xf32>
    %cst_7 = arith.constant dense<0.000000e+00> : vector<2x30x180xf32>
    %12 = tpu.matmul %7, %11, %cst_7 {dimension_numbers = #tpu.dot_dimension_numbers<[2], [1], [1], [2], [0, 0, 0, 1, 1, 2], [0], [0]>} : vector<2x30x32xf32>, vector<2x32x180xf32>, vector<2x30x180xf32> -> vector<2x30x180xf32>
    %13 = arith.addf %6, %12 : vector<2x30x180xf32>
    %14 = vector.extract_strided_slice %0 {offsets = [0, 2, 0], sizes = [2, 30, 32], strides = [1, 1, 1]} : vector<2x32x32xf32> to vector<2x30x32xf32>
    %c2 = arith.constant 2 : index
    %c0_8 = arith.constant 0 : index
    %c0_9 = arith.constant 0 : index
    %15 = vector.load %arg2[%c2, %c0_8, %c0_9] : memref<3x32x180xf32, #tpu.memory_space<vmem>>, vector<1x32x180xf32>
    %16 = vector.shape_cast %15 : vector<1x32x180xf32> to vector<32x180xf32>
    %17 = vector.shape_cast %16 : vector<32x180xf32> to vector<1x32x180xf32>
    %18 = vector.broadcast %17 : vector<1x32x180xf32> to vector<2x32x180xf32>
    %cst_10 = arith.constant dense<0.000000e+00> : vector<2x30x180xf32>
    %19 = tpu.matmul %14, %18, %cst_10 {dimension_numbers = #tpu.dot_dimension_numbers<[2], [1], [1], [2], [0, 0, 0, 1, 1, 2], [0], [0]>} : vector<2x30x32xf32>, vector<2x32x180xf32>, vector<2x30x180xf32> -> vector<2x30x180xf32>
    %20 = arith.addf %13, %19 : vector<2x30x180xf32>
    %c0_11 = arith.constant 0 : index
    %c0_12 = arith.constant 0 : index
    %c0_13 = arith.constant 0 : index
    %21 = vector.load %arg3[%c0_11, %c0_12, %c0_13] : memref<1x1x180xf32, #tpu.memory_space<vmem>>, vector<1x1x180xf32>
    %22 = vector.broadcast %21 : vector<1x1x180xf32> to vector<2x30x180xf32>
    %23 = arith.addf %20, %22 : vector<2x30x180xf32>
    %cst_14 = arith.constant 0.000000e+00 : f32
    %24 = vector.broadcast %cst_14 : f32 to vector<2x30x180xf32>
    %25 = arith.maximumf %23, %24 : vector<2x30x180xf32>
    %26 = vector.extract_strided_slice %25 {offsets = [0, 0, 0], sizes = [2, 29, 180], strides = [1, 1, 1]} : vector<2x30x180xf32> to vector<2x29x180xf32>
    %27 = vector.extract_strided_slice %25 {offsets = [0, 1, 0], sizes = [2, 29, 180], strides = [1, 1, 1]} : vector<2x30x180xf32> to vector<2x29x180xf32>
    %28 = arith.maximumf %26, %27 : vector<2x29x180xf32>
    %29 = vector.extract_strided_slice %28 {offsets = [0, 0, 0], sizes = [2, 29, 174], strides = [1, 1, 1]} : vector<2x29x180xf32> to vector<2x29x174xf32>
    %30 = vector.extract_strided_slice %28 {offsets = [0, 0, 6], sizes = [2, 29, 174], strides = [1, 1, 1]} : vector<2x29x180xf32> to vector<2x29x174xf32>
    %31 = arith.maximumf %29, %30 : vector<2x29x174xf32>
    %32 = tpu.iota {dimensions = array<i32: 0>} : vector<15x29xi32>
    %33 = tpu.iota {dimensions = array<i32: 1>} : vector<15x29xi32>
    %c2_i32 = arith.constant 2 : i32
    %34 = vector.broadcast %c2_i32 : i32 to vector<15x29xi32>
    %35 = arith.muli %34, %32 : vector<15x29xi32>
    %36 = arith.cmpi eq, %33, %35 : vector<15x29xi32>
    %37 = arith.extui %36 : vector<15x29xi1> to vector<15x29xi32>
    %38 = arith.sitofp %37 : vector<15x29xi32> to vector<15x29xf32>
    %39 = vector.shape_cast %38 : vector<15x29xf32> to vector<1x15x29xf32>
    %40 = vector.broadcast %39 : vector<1x15x29xf32> to vector<2x15x29xf32>
    %cst_15 = arith.constant dense<0.000000e+00> : vector<2x15x174xf32>
    %41 = tpu.matmul %40, %31, %cst_15 {dimension_numbers = #tpu.dot_dimension_numbers<[2], [1], [1], [2], [0, 0, 0, 1, 1, 2], [0], [0]>} : vector<2x15x29xf32>, vector<2x29x174xf32>, vector<2x15x174xf32> -> vector<2x15x174xf32>
    %42 = vector.extract_strided_slice %41 {offsets = [0, 0, 0], sizes = [2, 11, 174], strides = [1, 1, 1]} : vector<2x15x174xf32> to vector<2x11x174xf32>
    %c0_16 = arith.constant 0 : index
    %c0_17 = arith.constant 0 : index
    %c0_18 = arith.constant 0 : index
    %43 = vector.load %arg4[%c0_16, %c0_17, %c0_18] : memref<5x174x176xf32, #tpu.memory_space<vmem>>, vector<1x174x176xf32>
    %44 = vector.shape_cast %43 : vector<1x174x176xf32> to vector<174x176xf32>
    %45 = vector.shape_cast %44 : vector<174x176xf32> to vector<1x174x176xf32>
    %46 = vector.broadcast %45 : vector<1x174x176xf32> to vector<2x174x176xf32>
    %cst_19 = arith.constant dense<0.000000e+00> : vector<2x11x176xf32>
    %47 = tpu.matmul %42, %46, %cst_19 {dimension_numbers = #tpu.dot_dimension_numbers<[2], [1], [1], [2], [0, 0, 0, 1, 1, 2], [0], [0]>} : vector<2x11x174xf32>, vector<2x174x176xf32>, vector<2x11x176xf32> -> vector<2x11x176xf32>
    %48 = vector.extract_strided_slice %41 {offsets = [0, 1, 0], sizes = [2, 11, 174], strides = [1, 1, 1]} : vector<2x15x174xf32> to vector<2x11x174xf32>
    %c1_20 = arith.constant 1 : index
    %c0_21 = arith.constant 0 : index
    %c0_22 = arith.constant 0 : index
    %49 = vector.load %arg4[%c1_20, %c0_21, %c0_22] : memref<5x174x176xf32, #tpu.memory_space<vmem>>, vector<1x174x176xf32>
    %50 = vector.shape_cast %49 : vector<1x174x176xf32> to vector<174x176xf32>
    %51 = vector.shape_cast %50 : vector<174x176xf32> to vector<1x174x176xf32>
    %52 = vector.broadcast %51 : vector<1x174x176xf32> to vector<2x174x176xf32>
    %cst_23 = arith.constant dense<0.000000e+00> : vector<2x11x176xf32>
    %53 = tpu.matmul %48, %52, %cst_23 {dimension_numbers = #tpu.dot_dimension_numbers<[2], [1], [1], [2], [0, 0, 0, 1, 1, 2], [0], [0]>} : vector<2x11x174xf32>, vector<2x174x176xf32>, vector<2x11x176xf32> -> vector<2x11x176xf32>
    %54 = arith.addf %47, %53 : vector<2x11x176xf32>
    %55 = vector.extract_strided_slice %41 {offsets = [0, 2, 0], sizes = [2, 11, 174], strides = [1, 1, 1]} : vector<2x15x174xf32> to vector<2x11x174xf32>
    %c2_24 = arith.constant 2 : index
    %c0_25 = arith.constant 0 : index
    %c0_26 = arith.constant 0 : index
    %56 = vector.load %arg4[%c2_24, %c0_25, %c0_26] : memref<5x174x176xf32, #tpu.memory_space<vmem>>, vector<1x174x176xf32>
    %57 = vector.shape_cast %56 : vector<1x174x176xf32> to vector<174x176xf32>
    %58 = vector.shape_cast %57 : vector<174x176xf32> to vector<1x174x176xf32>
    %59 = vector.broadcast %58 : vector<1x174x176xf32> to vector<2x174x176xf32>
    %cst_27 = arith.constant dense<0.000000e+00> : vector<2x11x176xf32>
    %60 = tpu.matmul %55, %59, %cst_27 {dimension_numbers = #tpu.dot_dimension_numbers<[2], [1], [1], [2], [0, 0, 0, 1, 1, 2], [0], [0]>} : vector<2x11x174xf32>, vector<2x174x176xf32>, vector<2x11x176xf32> -> vector<2x11x176xf32>
    %61 = arith.addf %54, %60 : vector<2x11x176xf32>
    %62 = vector.extract_strided_slice %41 {offsets = [0, 3, 0], sizes = [2, 11, 174], strides = [1, 1, 1]} : vector<2x15x174xf32> to vector<2x11x174xf32>
    %c3 = arith.constant 3 : index
    %c0_28 = arith.constant 0 : index
    %c0_29 = arith.constant 0 : index
    %63 = vector.load %arg4[%c3, %c0_28, %c0_29] : memref<5x174x176xf32, #tpu.memory_space<vmem>>, vector<1x174x176xf32>
    %64 = vector.shape_cast %63 : vector<1x174x176xf32> to vector<174x176xf32>
    %65 = vector.shape_cast %64 : vector<174x176xf32> to vector<1x174x176xf32>
    %66 = vector.broadcast %65 : vector<1x174x176xf32> to vector<2x174x176xf32>
    %cst_30 = arith.constant dense<0.000000e+00> : vector<2x11x176xf32>
    %67 = tpu.matmul %62, %66, %cst_30 {dimension_numbers = #tpu.dot_dimension_numbers<[2], [1], [1], [2], [0, 0, 0, 1, 1, 2], [0], [0]>} : vector<2x11x174xf32>, vector<2x174x176xf32>, vector<2x11x176xf32> -> vector<2x11x176xf32>
    %68 = arith.addf %61, %67 : vector<2x11x176xf32>
    %69 = vector.extract_strided_slice %41 {offsets = [0, 4, 0], sizes = [2, 11, 174], strides = [1, 1, 1]} : vector<2x15x174xf32> to vector<2x11x174xf32>
    %c4 = arith.constant 4 : index
    %c0_31 = arith.constant 0 : index
    %c0_32 = arith.constant 0 : index
    %70 = vector.load %arg4[%c4, %c0_31, %c0_32] : memref<5x174x176xf32, #tpu.memory_space<vmem>>, vector<1x174x176xf32>
    %71 = vector.shape_cast %70 : vector<1x174x176xf32> to vector<174x176xf32>
    %72 = vector.shape_cast %71 : vector<174x176xf32> to vector<1x174x176xf32>
    %73 = vector.broadcast %72 : vector<1x174x176xf32> to vector<2x174x176xf32>
    %cst_33 = arith.constant dense<0.000000e+00> : vector<2x11x176xf32>
    %74 = tpu.matmul %69, %73, %cst_33 {dimension_numbers = #tpu.dot_dimension_numbers<[2], [1], [1], [2], [0, 0, 0, 1, 1, 2], [0], [0]>} : vector<2x11x174xf32>, vector<2x174x176xf32>, vector<2x11x176xf32> -> vector<2x11x176xf32>
    %75 = arith.addf %68, %74 : vector<2x11x176xf32>
    %c0_34 = arith.constant 0 : index
    %c0_35 = arith.constant 0 : index
    %c0_36 = arith.constant 0 : index
    %76 = vector.load %arg5[%c0_34, %c0_35, %c0_36] : memref<1x1x176xf32, #tpu.memory_space<vmem>>, vector<1x1x176xf32>
    %77 = vector.broadcast %76 : vector<1x1x176xf32> to vector<2x11x176xf32>
    %78 = arith.addf %75, %77 : vector<2x11x176xf32>
    %cst_37 = arith.constant 0.000000e+00 : f32
    %79 = vector.broadcast %cst_37 : f32 to vector<2x11x176xf32>
    %80 = arith.maximumf %78, %79 : vector<2x11x176xf32>
    %81 = vector.extract_strided_slice %80 {offsets = [0, 0, 0], sizes = [2, 10, 176], strides = [1, 1, 1]} : vector<2x11x176xf32> to vector<2x10x176xf32>
    %82 = vector.extract_strided_slice %80 {offsets = [0, 1, 0], sizes = [2, 10, 176], strides = [1, 1, 1]} : vector<2x11x176xf32> to vector<2x10x176xf32>
    %83 = arith.maximumf %81, %82 : vector<2x10x176xf32>
    %84 = vector.extract_strided_slice %83 {offsets = [0, 0, 0], sizes = [2, 10, 160], strides = [1, 1, 1]} : vector<2x10x176xf32> to vector<2x10x160xf32>
    %85 = vector.extract_strided_slice %83 {offsets = [0, 0, 16], sizes = [2, 10, 160], strides = [1, 1, 1]} : vector<2x10x176xf32> to vector<2x10x160xf32>
    %86 = arith.maximumf %84, %85 : vector<2x10x160xf32>
    %87 = tpu.iota {dimensions = array<i32: 0>} : vector<5x10xi32>
    %88 = tpu.iota {dimensions = array<i32: 1>} : vector<5x10xi32>
    %c2_i32_38 = arith.constant 2 : i32
    %89 = vector.broadcast %c2_i32_38 : i32 to vector<5x10xi32>
    %90 = arith.muli %89, %87 : vector<5x10xi32>
    %91 = arith.cmpi eq, %88, %90 : vector<5x10xi32>
    %92 = arith.extui %91 : vector<5x10xi1> to vector<5x10xi32>
    %93 = arith.sitofp %92 : vector<5x10xi32> to vector<5x10xf32>
    %94 = vector.shape_cast %93 : vector<5x10xf32> to vector<1x5x10xf32>
    %95 = vector.broadcast %94 : vector<1x5x10xf32> to vector<2x5x10xf32>
    %cst_39 = arith.constant dense<0.000000e+00> : vector<2x5x160xf32>
    %96 = tpu.matmul %95, %86, %cst_39 {dimension_numbers = #tpu.dot_dimension_numbers<[2], [1], [1], [2], [0, 0, 0, 1, 1, 2], [0], [0]>} : vector<2x5x10xf32>, vector<2x10x160xf32>, vector<2x5x160xf32> -> vector<2x5x160xf32>
    %97 = vector.extract_strided_slice %96 {offsets = [0, 0, 0], sizes = [2, 1, 160], strides = [1, 1, 1]} : vector<2x5x160xf32> to vector<2x1x160xf32>
    %c0_40 = arith.constant 0 : index
    %c0_41 = arith.constant 0 : index
    %c0_42 = arith.constant 0 : index
    %98 = vector.load %arg6[%c0_40, %c0_41, %c0_42] : memref<5x160x120xf32, #tpu.memory_space<vmem>>, vector<1x160x120xf32>
    %99 = vector.shape_cast %98 : vector<1x160x120xf32> to vector<160x120xf32>
    %100 = vector.shape_cast %99 : vector<160x120xf32> to vector<1x160x120xf32>
    %101 = vector.broadcast %100 : vector<1x160x120xf32> to vector<2x160x120xf32>
    %cst_43 = arith.constant dense<0.000000e+00> : vector<2x1x120xf32>
    %102 = tpu.matmul %97, %101, %cst_43 {dimension_numbers = #tpu.dot_dimension_numbers<[2], [1], [1], [2], [0, 0, 0, 1, 1, 2], [0], [0]>} : vector<2x1x160xf32>, vector<2x160x120xf32>, vector<2x1x120xf32> -> vector<2x1x120xf32>
    %103 = vector.extract_strided_slice %96 {offsets = [0, 1, 0], sizes = [2, 1, 160], strides = [1, 1, 1]} : vector<2x5x160xf32> to vector<2x1x160xf32>
    %c1_44 = arith.constant 1 : index
    %c0_45 = arith.constant 0 : index
    %c0_46 = arith.constant 0 : index
    %104 = vector.load %arg6[%c1_44, %c0_45, %c0_46] : memref<5x160x120xf32, #tpu.memory_space<vmem>>, vector<1x160x120xf32>
    %105 = vector.shape_cast %104 : vector<1x160x120xf32> to vector<160x120xf32>
    %106 = vector.shape_cast %105 : vector<160x120xf32> to vector<1x160x120xf32>
    %107 = vector.broadcast %106 : vector<1x160x120xf32> to vector<2x160x120xf32>
    %cst_47 = arith.constant dense<0.000000e+00> : vector<2x1x120xf32>
    %108 = tpu.matmul %103, %107, %cst_47 {dimension_numbers = #tpu.dot_dimension_numbers<[2], [1], [1], [2], [0, 0, 0, 1, 1, 2], [0], [0]>} : vector<2x1x160xf32>, vector<2x160x120xf32>, vector<2x1x120xf32> -> vector<2x1x120xf32>
    %109 = arith.addf %102, %108 : vector<2x1x120xf32>
    %110 = vector.extract_strided_slice %96 {offsets = [0, 2, 0], sizes = [2, 1, 160], strides = [1, 1, 1]} : vector<2x5x160xf32> to vector<2x1x160xf32>
    %c2_48 = arith.constant 2 : index
    %c0_49 = arith.constant 0 : index
    %c0_50 = arith.constant 0 : index
    %111 = vector.load %arg6[%c2_48, %c0_49, %c0_50] : memref<5x160x120xf32, #tpu.memory_space<vmem>>, vector<1x160x120xf32>
    %112 = vector.shape_cast %111 : vector<1x160x120xf32> to vector<160x120xf32>
    %113 = vector.shape_cast %112 : vector<160x120xf32> to vector<1x160x120xf32>
    %114 = vector.broadcast %113 : vector<1x160x120xf32> to vector<2x160x120xf32>
    %cst_51 = arith.constant dense<0.000000e+00> : vector<2x1x120xf32>
    %115 = tpu.matmul %110, %114, %cst_51 {dimension_numbers = #tpu.dot_dimension_numbers<[2], [1], [1], [2], [0, 0, 0, 1, 1, 2], [0], [0]>} : vector<2x1x160xf32>, vector<2x160x120xf32>, vector<2x1x120xf32> -> vector<2x1x120xf32>
    %116 = arith.addf %109, %115 : vector<2x1x120xf32>
    %117 = vector.extract_strided_slice %96 {offsets = [0, 3, 0], sizes = [2, 1, 160], strides = [1, 1, 1]} : vector<2x5x160xf32> to vector<2x1x160xf32>
    %c3_52 = arith.constant 3 : index
    %c0_53 = arith.constant 0 : index
    %c0_54 = arith.constant 0 : index
    %118 = vector.load %arg6[%c3_52, %c0_53, %c0_54] : memref<5x160x120xf32, #tpu.memory_space<vmem>>, vector<1x160x120xf32>
    %119 = vector.shape_cast %118 : vector<1x160x120xf32> to vector<160x120xf32>
    %120 = vector.shape_cast %119 : vector<160x120xf32> to vector<1x160x120xf32>
    %121 = vector.broadcast %120 : vector<1x160x120xf32> to vector<2x160x120xf32>
    %cst_55 = arith.constant dense<0.000000e+00> : vector<2x1x120xf32>
    %122 = tpu.matmul %117, %121, %cst_55 {dimension_numbers = #tpu.dot_dimension_numbers<[2], [1], [1], [2], [0, 0, 0, 1, 1, 2], [0], [0]>} : vector<2x1x160xf32>, vector<2x160x120xf32>, vector<2x1x120xf32> -> vector<2x1x120xf32>
    %123 = arith.addf %116, %122 : vector<2x1x120xf32>
    %124 = vector.extract_strided_slice %96 {offsets = [0, 4, 0], sizes = [2, 1, 160], strides = [1, 1, 1]} : vector<2x5x160xf32> to vector<2x1x160xf32>
    %c4_56 = arith.constant 4 : index
    %c0_57 = arith.constant 0 : index
    %c0_58 = arith.constant 0 : index
    %125 = vector.load %arg6[%c4_56, %c0_57, %c0_58] : memref<5x160x120xf32, #tpu.memory_space<vmem>>, vector<1x160x120xf32>
    %126 = vector.shape_cast %125 : vector<1x160x120xf32> to vector<160x120xf32>
    %127 = vector.shape_cast %126 : vector<160x120xf32> to vector<1x160x120xf32>
    %128 = vector.broadcast %127 : vector<1x160x120xf32> to vector<2x160x120xf32>
    %cst_59 = arith.constant dense<0.000000e+00> : vector<2x1x120xf32>
    %129 = tpu.matmul %124, %128, %cst_59 {dimension_numbers = #tpu.dot_dimension_numbers<[2], [1], [1], [2], [0, 0, 0, 1, 1, 2], [0], [0]>} : vector<2x1x160xf32>, vector<2x160x120xf32>, vector<2x1x120xf32> -> vector<2x1x120xf32>
    %130 = arith.addf %123, %129 : vector<2x1x120xf32>
    %c0_60 = arith.constant 0 : index
    %c0_61 = arith.constant 0 : index
    %c0_62 = arith.constant 0 : index
    %131 = vector.load %arg7[%c0_60, %c0_61, %c0_62] : memref<1x1x120xf32, #tpu.memory_space<vmem>>, vector<1x1x120xf32>
    %132 = vector.broadcast %131 : vector<1x1x120xf32> to vector<2x1x120xf32>
    %133 = arith.addf %130, %132 : vector<2x1x120xf32>
    %cst_63 = arith.constant 0.000000e+00 : f32
    %134 = vector.broadcast %cst_63 : f32 to vector<2x1x120xf32>
    %135 = arith.maximumf %133, %134 : vector<2x1x120xf32>
    %c0_64 = arith.constant 0 : index
    %c0_65 = arith.constant 0 : index
    %136 = vector.load %arg8[%c0_64, %c0_65] : memref<120x84xf32, #tpu.memory_space<vmem>>, vector<120x84xf32>
    %137 = vector.shape_cast %136 : vector<120x84xf32> to vector<1x120x84xf32>
    %138 = vector.broadcast %137 : vector<1x120x84xf32> to vector<2x120x84xf32>
    %cst_66 = arith.constant dense<0.000000e+00> : vector<2x1x84xf32>
    %139 = tpu.matmul %135, %138, %cst_66 {dimension_numbers = #tpu.dot_dimension_numbers<[2], [1], [1], [2], [0, 0, 0, 1, 1, 2], [0], [0]>} : vector<2x1x120xf32>, vector<2x120x84xf32>, vector<2x1x84xf32> -> vector<2x1x84xf32>
    %c0_67 = arith.constant 0 : index
    %c0_68 = arith.constant 0 : index
    %c0_69 = arith.constant 0 : index
    %140 = vector.load %arg9[%c0_67, %c0_68, %c0_69] : memref<1x1x84xf32, #tpu.memory_space<vmem>>, vector<1x1x84xf32>
    %141 = vector.broadcast %140 : vector<1x1x84xf32> to vector<2x1x84xf32>
    %142 = arith.addf %139, %141 : vector<2x1x84xf32>
    %cst_70 = arith.constant 0.000000e+00 : f32
    %143 = vector.broadcast %cst_70 : f32 to vector<2x1x84xf32>
    %144 = arith.maximumf %142, %143 : vector<2x1x84xf32>
    %c0_71 = arith.constant 0 : index
    %c0_72 = arith.constant 0 : index
    %145 = vector.load %arg10[%c0_71, %c0_72] : memref<84x128xf32, #tpu.memory_space<vmem>>, vector<84x128xf32>
    %146 = vector.shape_cast %145 : vector<84x128xf32> to vector<1x84x128xf32>
    %147 = vector.broadcast %146 : vector<1x84x128xf32> to vector<2x84x128xf32>
    %cst_73 = arith.constant dense<0.000000e+00> : vector<2x1x128xf32>
    %148 = tpu.matmul %144, %147, %cst_73 {dimension_numbers = #tpu.dot_dimension_numbers<[2], [1], [1], [2], [0, 0, 0, 1, 1, 2], [0], [0]>} : vector<2x1x84xf32>, vector<2x84x128xf32>, vector<2x1x128xf32> -> vector<2x1x128xf32>
    %c0_74 = arith.constant 0 : index
    %c0_75 = arith.constant 0 : index
    %c0_76 = arith.constant 0 : index
    %149 = vector.load %arg11[%c0_74, %c0_75, %c0_76] : memref<1x1x128xf32, #tpu.memory_space<vmem>>, vector<1x1x128xf32>
    %150 = vector.broadcast %149 : vector<1x1x128xf32> to vector<2x1x128xf32>
    %151 = arith.addf %148, %150 : vector<2x1x128xf32>
    %c0_77 = arith.constant 0 : index
    %c0_78 = arith.constant 0 : index
    %c0_79 = arith.constant 0 : index
    %152 = vector.load %arg12[%c0_77, %c0_78, %c0_79] : memref<2x1x128xf32, #tpu.memory_space<vmem>>, vector<2x1x128xf32>
    tpu.vector_store %arg12[%c0_77, %c0_78, %c0_79], %151 {strides = array<i32>} : memref<2x1x128xf32, #tpu.memory_space<vmem>>, vector<2x1x128xf32>,
    return
  }
  func.func @transform_0(%arg0: i32) -> (i32, i32, i32) {
    %c0_i32 = arith.constant 0 : i32
    %c0_i32_0 = arith.constant 0 : i32
    %c0_i32_1 = arith.constant 0 : i32
    return %arg0, %c0_i32, %c0_i32_0 : i32, i32, i32
  }
  func.func @transform_1(%arg0: i32) -> (i32, i32, i32) {
    %c0_i32 = arith.constant 0 : i32
    %c0_i32_0 = arith.constant 0 : i32
    %c0_i32_1 = arith.constant 0 : i32
    %c0_i32_2 = arith.constant 0 : i32
    return %c0_i32, %c0_i32_0, %c0_i32_1 : i32, i32, i32
  }
  func.func @transform_2(%arg0: i32) -> (i32, i32, i32) {
    %c0_i32 = arith.constant 0 : i32
    %c0_i32_0 = arith.constant 0 : i32
    %c0_i32_1 = arith.constant 0 : i32
    %c0_i32_2 = arith.constant 0 : i32
    return %c0_i32, %c0_i32_0, %c0_i32_1 : i32, i32, i32
  }
  func.func @transform_3(%arg0: i32) -> (i32, i32, i32) {
    %c0_i32 = arith.constant 0 : i32
    %c0_i32_0 = arith.constant 0 : i32
    %c0_i32_1 = arith.constant 0 : i32
    %c0_i32_2 = arith.constant 0 : i32
    return %c0_i32, %c0_i32_0, %c0_i32_1 : i32, i32, i32
  }
  func.func @transform_4(%arg0: i32) -> (i32, i32, i32) {
    %c0_i32 = arith.constant 0 : i32
    %c0_i32_0 = arith.constant 0 : i32
    %c0_i32_1 = arith.constant 0 : i32
    %c0_i32_2 = arith.constant 0 : i32
    return %c0_i32, %c0_i32_0, %c0_i32_1 : i32, i32, i32
  }
  func.func @transform_5(%arg0: i32) -> (i32, i32, i32) {
    %c0_i32 = arith.constant 0 : i32
    %c0_i32_0 = arith.constant 0 : i32
    %c0_i32_1 = arith.constant 0 : i32
    %c0_i32_2 = arith.constant 0 : i32
    return %c0_i32, %c0_i32_0, %c0_i32_1 : i32, i32, i32
  }
  func.func @transform_6(%arg0: i32) -> (i32, i32, i32) {
    %c0_i32 = arith.constant 0 : i32
    %c0_i32_0 = arith.constant 0 : i32
    %c0_i32_1 = arith.constant 0 : i32
    %c0_i32_2 = arith.constant 0 : i32
    return %c0_i32, %c0_i32_0, %c0_i32_1 : i32, i32, i32
  }
  func.func @transform_7(%arg0: i32) -> (i32, i32) {
    %c0_i32 = arith.constant 0 : i32
    %c0_i32_0 = arith.constant 0 : i32
    %c0_i32_1 = arith.constant 0 : i32
    return %c0_i32, %c0_i32_0 : i32, i32
  }
  func.func @transform_8(%arg0: i32) -> (i32, i32, i32) {
    %c0_i32 = arith.constant 0 : i32
    %c0_i32_0 = arith.constant 0 : i32
    %c0_i32_1 = arith.constant 0 : i32
    %c0_i32_2 = arith.constant 0 : i32
    return %c0_i32, %c0_i32_0, %c0_i32_1 : i32, i32, i32
  }
  func.func @transform_9(%arg0: i32) -> (i32, i32) {
    %c0_i32 = arith.constant 0 : i32
    %c0_i32_0 = arith.constant 0 : i32
    %c0_i32_1 = arith.constant 0 : i32
    return %c0_i32, %c0_i32_0 : i32, i32
  }
  func.func @transform_10(%arg0: i32) -> (i32, i32, i32) {
    %c0_i32 = arith.constant 0 : i32
    %c0_i32_0 = arith.constant 0 : i32
    %c0_i32_1 = arith.constant 0 : i32
    %c0_i32_2 = arith.constant 0 : i32
    return %c0_i32, %c0_i32_0, %c0_i32_1 : i32, i32, i32
  }
  func.func @transform_11(%arg0: i32) -> (i32, i32, i32) {
    %c0_i32 = arith.constant 0 : i32
    %c0_i32_0 = arith.constant 0 : i32
    %c0_i32_1 = arith.constant 0 : i32
    return %arg0, %c0_i32, %c0_i32_0 : i32, i32, i32
  }
}

</mosaic_0001>

<llo_original>
// kernel: lenet_forward.1
$region0: #{lenet_forward.1}
  #allocation0 [shape = 'u32[]', space=smem, size = 0x4, offset = 0x4, fixed_abs, tag = 'smem constant byte address 0x4 - core index']
  #allocation1 [shape = 'u32[144,128]{1,0:T(1,128)}', space=vmem, size = 0x12000, scoped, tag = 'internal scratch']
  %s0 = inlined_call_operand.vmem [shape: f32[2,32,32], index: 0, kind: input, shape index: {}]
  %s1 = inlined_call_operand.vmem [shape: f32[3,32,180], index: 1, kind: input, shape index: {}]
  %s2 = inlined_call_operand.vmem [shape: f32[1,1,180], index: 2, kind: input, shape index: {}]
  %s3 = inlined_call_operand.hbm [shape: f32[5,174,176], index: 3, kind: input, shape index: {}]
  %s4 = inlined_call_operand.vmem [shape: f32[1,1,176], index: 4, kind: input, shape index: {}]
  %s5 = inlined_call_operand.hbm [shape: f32[5,160,120], index: 5, kind: input, shape index: {}]
  %s6 = inlined_call_operand.vmem [shape: f32[1,1,120], index: 6, kind: input, shape index: {}]
  %s7 = inlined_call_operand.vmem [shape: f32[120,84], index: 7, kind: input, shape index: {}]
  %s8 = inlined_call_operand.vmem [shape: f32[1,1,84], index: 8, kind: input, shape index: {}]
  %s9 = inlined_call_operand.vmem [shape: f32[84,128], index: 9, kind: input, shape index: {}]
  %s10 = inlined_call_operand.vmem [shape: f32[1,1,128], index: 10, kind: input, shape index: {}]
  %s11 = inlined_call_operand.hbm [shape: f32[2,1,128], index: 11, kind: output, shape index: {}]
  %s12 = sld [smem:[#allocation0]]
  $region62: #{lenet_forward.1} parent=0
    _
  %s14 = ssub.s32 1, %s12
  %s15 = scalar_select 0, %s14, %s12
  $region1: #{lenet_forward.1} parent=0
    #allocation2 [shape = 'u8[901120]{0}', space=vmem, size = 0xdc000, scoped, tag = 'input window, operand 3, single buffered']
    #allocation3 [shape = 's32[1]{0}', space=sflag, size = 0x4, scoped, tag = 'scoped memory for lenet_forward.1']
    #allocation4 [shape = 's32[1]{0}', space=sflag, size = 0x4, scoped, tag = 'scoped memory for lenet_forward.1']
    #allocation5 [shape = 'u8[409600]{0}', space=vmem, size = 0x64000, scoped, tag = 'input window, operand 5, single buffered']
    #allocation6 [shape = 's32[1]{0}', space=sflag, size = 0x4, scoped, tag = 'scoped memory for lenet_forward.1']
    #allocation7 [shape = 'u8[1024]{0}', space=vmem, size = 0x400, scoped, tag = 'output window, operand 0, single buffered']
    %16 = vsyncpa [#allocation3], 0
    %17 = vsyncpa [#allocation6], 0
    %18 = vsyncpa [#allocation4], 0
    // Predicated region
    $region2: #{lenet_forward.1} parent=1 // pred_check
      _
    $region3: #{lenet_forward.1} parent=1 // pred_check_branch
      %20 = sbr.rel (0) target = $region5
    $region4: #{lenet_forward.1} parent=1 // pred_region
      _
    $region5: #{lenet_forward.1} parent=1 // pred_fallthru
      _
    // Predicated region
    $region6: #{lenet_forward.1} parent=1 // pred_check
      _
    $region7: #{lenet_forward.1} parent=1 // pred_check_branch
      %22 = sbr.rel (0) target = $region9
    $region8: #{lenet_forward.1} parent=1 // pred_region
      _
    $region9: #{lenet_forward.1} parent=1 // pred_fallthru
      _
    // Predicated region
    $region10: #{lenet_forward.1} parent=1 // pred_check
      _
    $region11: #{lenet_forward.1} parent=1 // pred_check_branch
      %24 = sbr.rel (0) target = $region13
    $region12: #{lenet_forward.1} parent=1 // pred_region
      _
    $region13: #{lenet_forward.1} parent=1 // pred_fallthru
      _
    // Predicated region
    $region14: #{lenet_forward.1} parent=1 // pred_check
      _
    $region15: #{lenet_forward.1} parent=1 // pred_check_branch
      %26 = sbr.rel (0) target = $region17
    $region16: #{lenet_forward.1} parent=1 // pred_region
      %s28 = ssub.s32 28160, 28160
      %29 = vsyncadd [#allocation3], %s28
      %s30 = sshll.u32 [#allocation2], 4
      %s31 = int_to_ptr.vmem [resolvable:$true] %s30
      %36 = dma.hbm_to_vmem [thread:$0]  %s3, 28160, %s31, [#allocation3], 256, 256, 16
    $region17: #{lenet_forward.1} parent=1 // pred_fallthru
      _
    // Predicated region
    $region18: #{lenet_forward.1} parent=1 // pred_check
      _
    $region19: #{lenet_forward.1} parent=1 // pred_check_branch
      %38 = sbr.rel (0) target = $region21
    $region20: #{lenet_forward.1} parent=1 // pred_region
      _
    $region21: #{lenet_forward.1} parent=1 // pred_fallthru
      _
    // Predicated region
    $region22: #{lenet_forward.1} parent=1 // pred_check
      _
    $region23: #{lenet_forward.1} parent=1 // pred_check_branch
      %40 = sbr.rel (0) target = $region25
    $region24: #{lenet_forward.1} parent=1 // pred_region
      %s42 = ssub.s32 12800, 12800
      %43 = vsyncadd [#allocation6], %s42
      %s44 = sshll.u32 [#allocation5], 4
      %s45 = int_to_ptr.vmem [resolvable:$true] %s44
      %50 = dma.hbm_to_vmem [thread:$0]  %s5, 12800, %s45, [#allocation6], 128, 128, 8
    $region25: #{lenet_forward.1} parent=1 // pred_fallthru
      _
    // Predicated region
    $region26: #{lenet_forward.1} parent=1 // pred_check
      _
    $region27: #{lenet_forward.1} parent=1 // pred_check_branch
      %52 = sbr.rel (0) target = $region29
    $region28: #{lenet_forward.1} parent=1 // pred_region
      _
    $region29: #{lenet_forward.1} parent=1 // pred_fallthru
      _
    // Predicated region
    $region30: #{lenet_forward.1} parent=1 // pred_check
      _
    $region31: #{lenet_forward.1} parent=1 // pred_check_branch
      %54 = sbr.rel (0) target = $region33
    $region32: #{lenet_forward.1} parent=1 // pred_region
      _
    $region33: #{lenet_forward.1} parent=1 // pred_fallthru
      _
    // Predicated region
    $region34: #{lenet_forward.1} parent=1 // pred_check
      _
    $region35: #{lenet_forward.1} parent=1 // pred_check_branch
      %56 = sbr.rel (0) target = $region37
    $region36: #{lenet_forward.1} parent=1 // pred_region
      _
    $region37: #{lenet_forward.1} parent=1 // pred_fallthru
      _
    // Predicated region
    $region38: #{lenet_forward.1} parent=1 // pred_check
      _
    $region39: #{lenet_forward.1} parent=1 // pred_check_branch
      %58 = sbr.rel (0) target = $region41
    $region40: #{lenet_forward.1} parent=1 // pred_region
      _
    $region41: #{lenet_forward.1} parent=1 // pred_fallthru
      _
    // Predicated region
    $region42: #{lenet_forward.1} parent=1 // pred_check
      _
    $region43: #{lenet_forward.1} parent=1 // pred_check_branch
      %60 = sbr.rel (0) target = $region45
    $region44: #{lenet_forward.1} parent=1 // pred_region
      _
    $region45: #{lenet_forward.1} parent=1 // pred_fallthru
      _
    // Predicated region
    $region46: #{lenet_forward.1} parent=1 // pred_check
      _
    $region47: #{lenet_forward.1} parent=1 // pred_check_branch
      %62 = sbr.rel (0) target = $region49
    $region48: #{lenet_forward.1} parent=1 // pred_region
      %63 = dma.done [#allocation3], 28160
    $region49: #{lenet_forward.1} parent=1 // pred_fallthru
      _
    // Predicated region
    $region50: #{lenet_forward.1} parent=1 // pred_check
      _
    $region51: #{lenet_forward.1} parent=1 // pred_check_branch
      %65 = sbr.rel (0) target = $region53
    $region52: #{lenet_forward.1} parent=1 // pred_region
      %66 = dma.done [#allocation6], 12800
    $region53: #{lenet_forward.1} parent=1 // pred_fallthru
      _
    %v67 = vld [vmem:[%s0] sm:$0xff]
    %v68 = vld [vmem:[%s0 + $0x8] sm:$0xff]
    %v69 = vld [vmem:[%s0 + $0x10] sm:$0xff]
    %v70 = vld [vmem:[%s0 + $0x18] sm:$0xff]
    %v71 = vld [vmem:[%s0 + $0x20] sm:$0xff]
    %v72 = vld [vmem:[%s0 + $0x28] sm:$0xff]
    %v73 = vld [vmem:[%s0 + $0x30] sm:$0xff]
    %v74 = vld [vmem:[%s0 + $0x38] sm:$0xff]
    %v75 = vld [vmem:[%s1] sm:$0xff]
    %v76 = vld [vmem:[%s1 + $0x8] sm:$0xff]
    %v77 = vld [vmem:[%s1 + $0x10] sm:$0xff]
    %v78 = vld [vmem:[%s1 + $0x18] sm:$0xff]
    %v79 = vld [vmem:[%s1 + $0x20] sm:$0xff]
    %v80 = vld [vmem:[%s1 + $0x28] sm:$0xff]
    %v81 = vld [vmem:[%s1 + $0x30] sm:$0xff]
    %v82 = vld [vmem:[%s1 + $0x38] sm:$0xff]
    %s83 = scalar_lea.vmem %s1, 64
    %v84 = vld [vmem:[%s83] sm:$0xff]
    %v85 = vld [vmem:[%s83 + $0x8] sm:$0xff]
    %v86 = vld [vmem:[%s83 + $0x10] sm:$0xff]
    %v87 = vld [vmem:[%s83 + $0x18] sm:$0xff]
    %v88 = vld [vmem:[%s83 + $0x20] sm:$0xff]
    %v89 = vld [vmem:[%s83 + $0x28] sm:$0xff]
    %v90 = vld [vmem:[%s83 + $0x30] sm:$0xff]
    %v91 = vld [vmem:[%s83 + $0x38] sm:$0xff]
    %vm96 = vcmask 1046528
    %v97 = vrot.slane %v67, 1
    %v98 = vrot.slane %v68, 1
    %v99 = vsel %vm96, %v97, %v98
    %v100 = vrot.slane %v69, 1
    %v101 = vsel %vm96, %v98, %v100
    %v102 = vrot.slane %v70, 1
    %v103 = vsel %vm96, %v100, %v102
    %vm104 = vcmask 261120
    %v105 = vsel %vm104, %v99, 0
    %v107 = vsel %vm104, %v101, 0
    %v109 = vsel %vm104, %v103, 0
    %v111 = vsel %vm104, %v102, 0
    %113 = vmatprep.subr.mxu0 %v85
    %114 = vmatpush1.msra.mxu0 %v84
    %115 = vmatprep.subr.mxu0 %v87
    %116 = vmatpush1.msra.mxu0 %v86
    %117 = vmatprep.subr.mxu0 %v89
    %118 = vmatpush1.msra.mxu0 %v88
    %119 = vmatprep.subr.mxu0 %v91
    %120 = vmatpush1.msra.mxu0 %v90
    %121 = vmatprep.subr.mxu0 0.0
    %122 = vmatpush1.msra.mxu0 0.0
    %123 = vmatprep.subr.mxu0 0.0
    %124 = vmatpush1.msra.mxu0 0.0
    %125 = vmatprep.subr.mxu0 0.0
    %126 = vmatpush1.msra.mxu0 0.0
    %127 = vmatprep.subr.mxu0 0.0
    %128 = vmatpush1.msra.mxu0 0.0
    %129 = vmatprep.subr.mxu0 0.0
    %130 = vmatpush1.msra.mxu0 0.0
    %131 = vmatprep.subr.mxu0 0.0
    %132 = vmatpush1.msra.mxu0 0.0
    %133 = vmatprep.subr.mxu0 0.0
    %134 = vmatpush1.msra.mxu0 0.0
    %135 = vmatprep.subr.mxu0 0.0
    %136 = vmatpush1.msra.mxu0 0.0
    %137 = vmatprep.subr.mxu0 0.0
    %138 = vmatpush1.msra.mxu0 0.0
    %139 = vmatprep.subr.mxu0 0.0
    %140 = vmatpush1.msra.mxu0 0.0
    %141 = vmatprep.subr.mxu0 0.0
    %142 = vmatpush1.msra.mxu0 0.0
    %143 = vmatprep.subr.mxu0 0.0
    %144 = vmatpush1.msra.mxu0 0.0
    %145 = vmatprep.subr.mxu0 0.0
    %146 = vmatpush1.msra.mxu0 0.0
    %147 = vmatprep.subr.mxu0 0.0
    %148 = vmatpush1.msra.mxu0 0.0
    %149 = vmatprep.subr.mxu0 0.0
    %150 = vmatpush1.msra.mxu0 0.0
    %151 = vmatprep.subr.mxu0 0.0
    %152 = vmatpush1.msra.mxu0 0.0
    %153 = vmatprep.subr.mxu0 0.0
    %154 = vmatpush1.msra.mxu0 0.0
    %155 = vmatprep.subr.mxu0 0.0
    %156 = vmatpush1.msra.mxu0 0.0
    %157 = vmatprep.subr.mxu0 0.0
    %158 = vmatpush1.msra.mxu0 0.0
    %159 = vmatprep.subr.mxu0 0.0
    %160 = vmatpush1.msra.mxu0 0.0
    %161 = vmatprep.subr.mxu0 0.0
    %162 = vmatpush1.msra.mxu0 0.0
    %163 = vmatprep.subr.mxu0 0.0
    %164 = vmatpush1.msra.mxu0 0.0
    %165 = vmatprep.subr.mxu0 0.0
    %166 = vmatpush1.msra.mxu0 0.0
    %167 = vmatprep.subr.mxu0 0.0
    %168 = vmatpush1.msra.mxu0 0.0
    %169 = vmatprep.subr.mxu0 0.0
    %170 = vmatpush1.msra.mxu0 0.0
    %171 = vmatprep.subr.mxu0 0.0
    %172 = vmatpush1.msra.mxu0 0.0
    %173 = vmatprep.subr.mxu0 0.0
    %174 = vmatpush1.msra.mxu0 0.0
    %175 = vmatprep.subr.mxu0 0.0
    %176 = vmatpush1.msra.mxu0 0.0
    %177 = vmatprep.mubr.f32.mxu0 0.0
    %178 = vmatmul.mubr.f32.gmra.mrb[0].mxu0 %v105
    %v179 = vpop.f32.mrb[0].mxu0
    %v180 = vadd.f32 0.0, %v179
    %v181 = vpop.f32.mrb[0].mxu0
    %v182 = vadd.f32 0.0, %v181
    %183 = vmatprep.mubr.f32.mxu0 0.0
    %184 = vmatmul.mubr.f32.gmra.mrb[0].mxu0 %v107
    %v185 = vpop.f32.mrb[0].mxu0
    %v186 = vadd.f32 0.0, %v185
    %v187 = vpop.f32.mrb[0].mxu0
    %v188 = vadd.f32 0.0, %v187
    %189 = vmatprep.mubr.f32.mxu0 0.0
    %190 = vmatmul.mubr.f32.gmra.mrb[0].mxu0 %v109
    %v191 = vpop.f32.mrb[0].mxu0
    %v192 = vadd.f32 0.0, %v191
    %v193 = vpop.f32.mrb[0].mxu0
    %v194 = vadd.f32 0.0, %v193
    %195 = vmatprep.mubr.f32.mxu0 0.0
    %196 = vmatmul.mubr.f32.gmra.mrb[0].mxu0 %v111
    %v197 = vpop.f32.mrb[0].mxu0
    %v198 = vadd.f32 0.0, %v197
    %v199 = vpop.f32.mrb[0].mxu0
    %v200 = vadd.f32 0.0, %v199
    %201 = vdwg.mxu0
    %v206 = vrot.slane %v71, 1
    %v207 = vrot.slane %v72, 1
    %v208 = vsel %vm96, %v206, %v207
    %v209 = vrot.slane %v73, 1
    %v210 = vsel %vm96, %v207, %v209
    %v211 = vrot.slane %v74, 1
    %v212 = vsel %vm96, %v209, %v211
    %v213 = vsel %vm104, %v208, 0
    %v215 = vsel %vm104, %v210, 0
    %v217 = vsel %vm104, %v212, 0
    %v219 = vsel %vm104, %v211, 0
    %221 = vmatprep.subr.mxu0 %v85
    %222 = vmatpush1.msra.mxu0 %v84
    %223 = vmatprep.subr.mxu0 %v87
    %224 = vmatpush1.msra.mxu0 %v86
    %225 = vmatprep.subr.mxu0 %v89
    %226 = vmatpush1.msra.mxu0 %v88
    %227 = vmatprep.subr.mxu0 %v91
    %228 = vmatpush1.msra.mxu0 %v90
    %229 = vmatprep.subr.mxu0 0.0
    %230 = vmatpush1.msra.mxu0 0.0
    %231 = vmatprep.subr.mxu0 0.0
    %232 = vmatpush1.msra.mxu0 0.0
    %233 = vmatprep.subr.mxu0 0.0
    %234 = vmatpush1.msra.mxu0 0.0
    %235 = vmatprep.subr.mxu0 0.0
    %236 = vmatpush1.msra.mxu0 0.0
    %237 = vmatprep.subr.mxu0 0.0
    %238 = vmatpush1.msra.mxu0 0.0
    %239 = vmatprep.subr.mxu0 0.0
    %240 = vmatpush1.msra.mxu0 0.0
    %241 = vmatprep.subr.mxu0 0.0
    %242 = vmatpush1.msra.mxu0 0.0
    %243 = vmatprep.subr.mxu0 0.0
    %244 = vmatpush1.msra.mxu0 0.0
    %245 = vmatprep.subr.mxu0 0.0
    %246 = vmatpush1.msra.mxu0 0.0
    %247 = vmatprep.subr.mxu0 0.0
    %248 = vmatpush1.msra.mxu0 0.0
    %249 = vmatprep.subr.mxu0 0.0
    %250 = vmatpush1.msra.mxu0 0.0
    %251 = vmatprep.subr.mxu0 0.0
    %252 = vmatpush1.msra.mxu0 0.0
    %253 = vmatprep.subr.mxu0 0.0
    %254 = vmatpush1.msra.mxu0 0.0
    %255 = vmatprep.subr.mxu0 0.0
    %256 = vmatpush1.msra.mxu0 0.0
    %257 = vmatprep.subr.mxu0 0.0
    %258 = vmatpush1.msra.mxu0 0.0
    %259 = vmatprep.subr.mxu0 0.0
    %260 = vmatpush1.msra.mxu0 0.0
    %261 = vmatprep.subr.mxu0 0.0
    %262 = vmatpush1.msra.mxu0 0.0
    %263 = vmatprep.subr.mxu0 0.0
    %264 = vmatpush1.msra.mxu0 0.0
    %265 = vmatprep.subr.mxu0 0.0
    %266 = vmatpush1.msra.mxu0 0.0
    %267 = vmatprep.subr.mxu0 0.0
    %268 = vmatpush1.msra.mxu0 0.0
    %269 = vmatprep.subr.mxu0 0.0
    %270 = vmatpush1.msra.mxu0 0.0
    %271 = vmatprep.subr.mxu0 0.0
    %272 = vmatpush1.msra.mxu0 0.0
    %273 = vmatprep.subr.mxu0 0.0
    %274 = vmatpush1.msra.mxu0 0.0
    %275 = vmatprep.subr.mxu0 0.0
    %276 = vmatpush1.msra.mxu0 0.0
    %277 = vmatprep.subr.mxu0 0.0
    %278 = vmatpush1.msra.mxu0 0.0
    %279 = vmatprep.subr.mxu0 0.0
    %280 = vmatpush1.msra.mxu0 0.0
    %281 = vmatprep.subr.mxu0 0.0
    %282 = vmatpush1.msra.mxu0 0.0
    %283 = vmatprep.subr.mxu0 0.0
    %284 = vmatpush1.msra.mxu0 0.0
    %285 = vmatprep.mubr.f32.mxu0 0.0
    %286 = vmatmul.mubr.f32.gmra.mrb[0].mxu0 %v213
    %v287 = vpop.f32.mrb[0].mxu0
    %v288 = vadd.f32 0.0, %v287
    %v289 = vpop.f32.mrb[0].mxu0
    %v290 = vadd.f32 0.0, %v289
    %291 = vmatprep.mubr.f32.mxu0 0.0
    %292 = vmatmul.mubr.f32.gmra.mrb[0].mxu0 %v215
    %v293 = vpop.f32.mrb[0].mxu0
    %v294 = vadd.f32 0.0, %v293
    %v295 = vpop.f32.mrb[0].mxu0
    %v296 = vadd.f32 0.0, %v295
    %297 = vmatprep.mubr.f32.mxu0 0.0
    %298 = vmatmul.mubr.f32.gmra.mrb[0].mxu0 %v217
    %v299 = vpop.f32.mrb[0].mxu0
    %v300 = vadd.f32 0.0, %v299
    %v301 = vpop.f32.mrb[0].mxu0
    %v302 = vadd.f32 0.0, %v301
    %303 = vmatprep.mubr.f32.mxu0 0.0
    %304 = vmatmul.mubr.f32.gmra.mrb[0].mxu0 %v219
    %v305 = vpop.f32.mrb[0].mxu0
    %v306 = vadd.f32 0.0, %v305
    %v307 = vpop.f32.mrb[0].mxu0
    %v308 = vadd.f32 0.0, %v307
    %309 = vdwg.mxu0
    %v310 = vsel %vm104, %v67, 0
    %v312 = vsel %vm104, %v68, 0
    %v314 = vsel %vm104, %v69, 0
    %v316 = vsel %vm104, %v70, 0
    %318 = vmatprep.subr.mxu0 %v76
    %319 = vmatpush1.msra.mxu0 %v75
    %320 = vmatprep.subr.mxu0 %v78
    %321 = vmatpush1.msra.mxu0 %v77
    %322 = vmatprep.subr.mxu0 %v80
    %323 = vmatpush1.msra.mxu0 %v79
    %324 = vmatprep.subr.mxu0 %v82
    %325 = vmatpush1.msra.mxu0 %v81
    %326 = vmatprep.subr.mxu0 0.0
    %327 = vmatpush1.msra.mxu0 0.0
    %328 = vmatprep.subr.mxu0 0.0
    %329 = vmatpush1.msra.mxu0 0.0
    %330 = vmatprep.subr.mxu0 0.0
    %331 = vmatpush1.msra.mxu0 0.0
    %332 = vmatprep.subr.mxu0 0.0
    %333 = vmatpush1.msra.mxu0 0.0
    %334 = vmatprep.subr.mxu0 0.0
    %335 = vmatpush1.msra.mxu0 0.0
    %336 = vmatprep.subr.mxu0 0.0
    %337 = vmatpush1.msra.mxu0 0.0
    %338 = vmatprep.subr.mxu0 0.0
    %339 = vmatpush1.msra.mxu0 0.0
    %340 = vmatprep.subr.mxu0 0.0
    %341 = vmatpush1.msra.mxu0 0.0
    %342 = vmatprep.subr.mxu0 0.0
    %343 = vmatpush1.msra.mxu0 0.0
    %344 = vmatprep.subr.mxu0 0.0
    %345 = vmatpush1.msra.mxu0 0.0
    %346 = vmatprep.subr.mxu0 0.0
    %347 = vmatpush1.msra.mxu0 0.0
    %348 = vmatprep.subr.mxu0 0.0
    %349 = vmatpush1.msra.mxu0 0.0
    %350 = vmatprep.subr.mxu0 0.0
    %351 = vmatpush1.msra.mxu0 0.0
    %352 = vmatprep.subr.mxu0 0.0
    %353 = vmatpush1.msra.mxu0 0.0
    %354 = vmatprep.subr.mxu0 0.0
    %355 = vmatpush1.msra.mxu0 0.0
    %356 = vmatprep.subr.mxu0 0.0
    %357 = vmatpush1.msra.mxu0 0.0
    %358 = vmatprep.subr.mxu0 0.0
    %359 = vmatpush1.msra.mxu0 0.0
    %360 = vmatprep.subr.mxu0 0.0
    %361 = vmatpush1.msra.mxu0 0.0
    %362 = vmatprep.subr.mxu0 0.0
    %363 = vmatpush1.msra.mxu0 0.0
    %364 = vmatprep.subr.mxu0 0.0
    %365 = vmatpush1.msra.mxu0 0.0
    %366 = vmatprep.subr.mxu0 0.0
    %367 = vmatpush1.msra.mxu0 0.0
    %368 = vmatprep.subr.mxu0 0.0
    %369 = vmatpush1.msra.mxu0 0.0
    %370 = vmatprep.subr.mxu0 0.0
    %371 = vmatpush1.msra.mxu0 0.0
    %372 = vmatprep.subr.mxu0 0.0
    %373 = vmatpush1.msra.mxu0 0.0
    %374 = vmatprep.subr.mxu0 0.0
    %375 = vmatpush1.msra.mxu0 0.0
    %376 = vmatprep.subr.mxu0 0.0
    %377 = vmatpush1.msra.mxu0 0.0
    %378 = vmatprep.subr.mxu0 0.0
    %379 = vmatpush1.msra.mxu0 0.0
    %380 = vmatprep.subr.mxu0 0.0
    %381 = vmatpush1.msra.mxu0 0.0
    %382 = vmatprep.mubr.f32.mxu0 0.0
    %383 = vmatmul.mubr.f32.gmra.mrb[0].mxu0 %v310
    %v384 = vpop.f32.mrb[0].mxu0
    %v385 = vadd.f32 %v180, %v384
    %v386 = vpop.f32.mrb[0].mxu0
    %v387 = vadd.f32 %v182, %v386
    %388 = vmatprep.mubr.f32.mxu0 0.0
    %389 = vmatmul.mubr.f32.gmra.mrb[0].mxu0 %v312
    %v390 = vpop.f32.mrb[0].mxu0
    %v391 = vadd.f32 %v186, %v390
    %v392 = vpop.f32.mrb[0].mxu0
    %v393 = vadd.f32 %v188, %v392
    %394 = vmatprep.mubr.f32.mxu0 0.0
    %395 = vmatmul.mubr.f32.gmra.mrb[0].mxu0 %v314
    %v396 = vpop.f32.mrb[0].mxu0
    %v397 = vadd.f32 %v192, %v396
    %v398 = vpop.f32.mrb[0].mxu0
    %v399 = vadd.f32 %v194, %v398
    %400 = vmatprep.mubr.f32.mxu0 0.0
    %401 = vmatmul.mubr.f32.gmra.mrb[0].mxu0 %v316
    %v402 = vpop.f32.mrb[0].mxu0
    %v403 = vadd.f32 %v198, %v402
    %v404 = vpop.f32.mrb[0].mxu0
    %v405 = vadd.f32 %v200, %v404
    %406 = vdwg.mxu0
    %v407 = vsel %vm104, %v71, 0
    %v409 = vsel %vm104, %v72, 0
    %v411 = vsel %vm104, %v73, 0
    %v413 = vsel %vm104, %v74, 0
    %415 = vmatprep.subr.mxu0 %v76
    %416 = vmatpush1.msra.mxu0 %v75
    %417 = vmatprep.subr.mxu0 %v78
    %418 = vmatpush1.msra.mxu0 %v77
    %419 = vmatprep.subr.mxu0 %v80
    %420 = vmatpush1.msra.mxu0 %v79
    %421 = vmatprep.subr.mxu0 %v82
    %422 = vmatpush1.msra.mxu0 %v81
    %423 = vmatprep.subr.mxu0 0.0
    %424 = vmatpush1.msra.mxu0 0.0
    %425 = vmatprep.subr.mxu0 0.0
    %426 = vmatpush1.msra.mxu0 0.0
    %427 = vmatprep.subr.mxu0 0.0
    %428 = vmatpush1.msra.mxu0 0.0
    %429 = vmatprep.subr.mxu0 0.0
    %430 = vmatpush1.msra.mxu0 0.0
    %431 = vmatprep.subr.mxu0 0.0
    %432 = vmatpush1.msra.mxu0 0.0
    %433 = vmatprep.subr.mxu0 0.0
    %434 = vmatpush1.msra.mxu0 0.0
    %435 = vmatprep.subr.mxu0 0.0
    %436 = vmatpush1.msra.mxu0 0.0
    %437 = vmatprep.subr.mxu0 0.0
    %438 = vmatpush1.msra.mxu0 0.0
    %439 = vmatprep.subr.mxu0 0.0
    %440 = vmatpush1.msra.mxu0 0.0
    %441 = vmatprep.subr.mxu0 0.0
    %442 = vmatpush1.msra.mxu0 0.0
    %443 = vmatprep.subr.mxu0 0.0
    %444 = vmatpush1.msra.mxu0 0.0
    %445 = vmatprep.subr.mxu0 0.0
    %446 = vmatpush1.msra.mxu0 0.0
    %447 = vmatprep.subr.mxu0 0.0
    %448 = vmatpush1.msra.mxu0 0.0
    %449 = vmatprep.subr.mxu0 0.0
    %450 = vmatpush1.msra.mxu0 0.0
    %451 = vmatprep.subr.mxu0 0.0
    %452 = vmatpush1.msra.mxu0 0.0
    %453 = vmatprep.subr.mxu0 0.0
    %454 = vmatpush1.msra.mxu0 0.0
    %455 = vmatprep.subr.mxu0 0.0
    %456 = vmatpush1.msra.mxu0 0.0
    %457 = vmatprep.subr.mxu0 0.0
    %458 = vmatpush1.msra.mxu0 0.0
    %459 = vmatprep.subr.mxu0 0.0
    %460 = vmatpush1.msra.mxu0 0.0
    %461 = vmatprep.subr.mxu0 0.0
    %462 = vmatpush1.msra.mxu0 0.0
    %463 = vmatprep.subr.mxu0 0.0
    %464 = vmatpush1.msra.mxu0 0.0
    %465 = vmatprep.subr.mxu0 0.0
    %466 = vmatpush1.msra.mxu0 0.0
    %467 = vmatprep.subr.mxu0 0.0
    %468 = vmatpush1.msra.mxu0 0.0
    %469 = vmatprep.subr.mxu0 0.0
    %470 = vmatpush1.msra.mxu0 0.0
    %471 = vmatprep.subr.mxu0 0.0
    %472 = vmatpush1.msra.mxu0 0.0
    %473 = vmatprep.subr.mxu0 0.0
    %474 = vmatpush1.msra.mxu0 0.0
    %475 = vmatprep.subr.mxu0 0.0
    %476 = vmatpush1.msra.mxu0 0.0
    %477 = vmatprep.subr.mxu0 0.0
    %478 = vmatpush1.msra.mxu0 0.0
    %479 = vmatprep.mubr.f32.mxu0 0.0
    %480 = vmatmul.mubr.f32.gmra.mrb[0].mxu0 %v407
    %v481 = vpop.f32.mrb[0].mxu0
    %v482 = vadd.f32 %v288, %v481
    %v483 = vpop.f32.mrb[0].mxu0
    %v484 = vadd.f32 %v290, %v483
    %485 = vmatprep.mubr.f32.mxu0 0.0
    %486 = vmatmul.mubr.f32.gmra.mrb[0].mxu0 %v409
    %v487 = vpop.f32.mrb[0].mxu0
    %v488 = vadd.f32 %v294, %v487
    %v489 = vpop.f32.mrb[0].mxu0
    %v490 = vadd.f32 %v296, %v489
    %491 = vmatprep.mubr.f32.mxu0 0.0
    %492 = vmatmul.mubr.f32.gmra.mrb[0].mxu0 %v411
    %v493 = vpop.f32.mrb[0].mxu0
    %v494 = vadd.f32 %v300, %v493
    %v495 = vpop.f32.mrb[0].mxu0
    %v496 = vadd.f32 %v302, %v495
    %497 = vmatprep.mubr.f32.mxu0 0.0
    %498 = vmatmul.mubr.f32.gmra.mrb[0].mxu0 %v413
    %v499 = vpop.f32.mrb[0].mxu0
    %v500 = vadd.f32 %v306, %v499
    %v501 = vpop.f32.mrb[0].mxu0
    %v502 = vadd.f32 %v308, %v501
    %503 = vdwg.mxu0
    %s504 = scalar_lea.vmem %s1, 128
    %v505 = vld [vmem:[%s504] sm:$0xff]
    %v506 = vld [vmem:[%s504 + $0x8] sm:$0xff]
    %v507 = vld [vmem:[%s504 + $0x10] sm:$0xff]
    %v508 = vld [vmem:[%s504 + $0x18] sm:$0xff]
    %v509 = vld [vmem:[%s504 + $0x20] sm:$0xff]
    %v510 = vld [vmem:[%s504 + $0x28] sm:$0xff]
    %v511 = vld [vmem:[%s504 + $0x30] sm:$0xff]
    %v512 = vld [vmem:[%s504 + $0x38] sm:$0xff]
    %vm513 = vcmask 1045504
    %v514 = vrot.slane %v67, 2
    %v515 = vrot.slane %v68, 2
    %v516 = vsel %vm513, %v514, %v515
    %v517 = vrot.slane %v69, 2
    %v518 = vsel %vm513, %v515, %v517
    %v519 = vrot.slane %v70, 2
    %v520 = vsel %vm513, %v517, %v519
    %v521 = vsel %vm104, %v516, 0
    %v523 = vsel %vm104, %v518, 0
    %v525 = vsel %vm104, %v520, 0
    %v527 = vsel %vm104, %v519, 0
    %529 = vmatprep.subr.mxu0 %v506
    %530 = vmatpush1.msra.mxu0 %v505
    %531 = vmatprep.subr.mxu0 %v508
    %532 = vmatpush1.msra.mxu0 %v507
    %533 = vmatprep.subr.mxu0 %v510
    %534 = vmatpush1.msra.mxu0 %v509
    %535 = vmatprep.subr.mxu0 %v512
    %536 = vmatpush1.msra.mxu0 %v511
    %537 = vmatprep.subr.mxu0 0.0
    %538 = vmatpush1.msra.mxu0 0.0
    %539 = vmatprep.subr.mxu0 0.0
    %540 = vmatpush1.msra.mxu0 0.0
    %541 = vmatprep.subr.mxu0 0.0
    %542 = vmatpush1.msra.mxu0 0.0
    %543 = vmatprep.subr.mxu0 0.0
    %544 = vmatpush1.msra.mxu0 0.0
    %545 = vmatprep.subr.mxu0 0.0
    %546 = vmatpush1.msra.mxu0 0.0
    %547 = vmatprep.subr.mxu0 0.0
    %548 = vmatpush1.msra.mxu0 0.0
    %549 = vmatprep.subr.mxu0 0.0
    %550 = vmatpush1.msra.mxu0 0.0
    %551 = vmatprep.subr.mxu0 0.0
    %552 = vmatpush1.msra.mxu0 0.0
    %553 = vmatprep.subr.mxu0 0.0
    %554 = vmatpush1.msra.mxu0 0.0
    %555 = vmatprep.subr.mxu0 0.0
    %556 = vmatpush1.msra.mxu0 0.0
    %557 = vmatprep.subr.mxu0 0.0
    %558 = vmatpush1.msra.mxu0 0.0
    %559 = vmatprep.subr.mxu0 0.0
    %560 = vmatpush1.msra.mxu0 0.0
    %561 = vmatprep.subr.mxu0 0.0
    %562 = vmatpush1.msra.mxu0 0.0
    %563 = vmatprep.subr.mxu0 0.0
    %564 = vmatpush1.msra.mxu0 0.0
    %565 = vmatprep.subr.mxu0 0.0
    %566 = vmatpush1.msra.mxu0 0.0
    %567 = vmatprep.subr.mxu0 0.0
    %568 = vmatpush1.msra.mxu0 0.0
    %569 = vmatprep.subr.mxu0 0.0
    %570 = vmatpush1.msra.mxu0 0.0
    %571 = vmatprep.subr.mxu0 0.0
    %572 = vmatpush1.msra.mxu0 0.0
    %573 = vmatprep.subr.mxu0 0.0
    %574 = vmatpush1.msra.mxu0 0.0
    %575 = vmatprep.subr.mxu0 0.0
    %576 = vmatpush1.msra.mxu0 0.0
    %577 = vmatprep.subr.mxu0 0.0
    %578 = vmatpush1.msra.mxu0 0.0
    %579 = vmatprep.subr.mxu0 0.0
    %580 = vmatpush1.msra.mxu0 0.0
    %581 = vmatprep.subr.mxu0 0.0
    %582 = vmatpush1.msra.mxu0 0.0
    %583 = vmatprep.subr.mxu0 0.0
    %584 = vmatpush1.msra.mxu0 0.0
    %585 = vmatprep.subr.mxu0 0.0
    %586 = vmatpush1.msra.mxu0 0.0
    %587 = vmatprep.subr.mxu0 0.0
    %588 = vmatpush1.msra.mxu0 0.0
    %589 = vmatprep.subr.mxu0 0.0
    %590 = vmatpush1.msra.mxu0 0.0
    %591 = vmatprep.subr.mxu0 0.0
    %592 = vmatpush1.msra.mxu0 0.0
    %593 = vmatprep.mubr.f32.mxu0 0.0
    %594 = vmatmul.mubr.f32.gmra.mrb[0].mxu0 %v521
    %v595 = vpop.f32.mrb[0].mxu0
    %v596 = vadd.f32 0.0, %v595
    %v597 = vpop.f32.mrb[0].mxu0
    %v598 = vadd.f32 0.0, %v597
    %599 = vmatprep.mubr.f32.mxu0 0.0
    %600 = vmatmul.mubr.f32.gmra.mrb[0].mxu0 %v523
    %v601 = vpop.f32.mrb[0].mxu0
    %v602 = vadd.f32 0.0, %v601
    %v603 = vpop.f32.mrb[0].mxu0
    %v604 = vadd.f32 0.0, %v603
    %605 = vmatprep.mubr.f32.mxu0 0.0
    %606 = vmatmul.mubr.f32.gmra.mrb[0].mxu0 %v525
    %v607 = vpop.f32.mrb[0].mxu0
    %v608 = vadd.f32 0.0, %v607
    %v609 = vpop.f32.mrb[0].mxu0
    %v610 = vadd.f32 0.0, %v609
    %611 = vmatprep.mubr.f32.mxu0 0.0
    %612 = vmatmul.mubr.f32.gmra.mrb[0].mxu0 %v527
    %v613 = vpop.f32.mrb[0].mxu0
    %v614 = vadd.f32 0.0, %v613
    %v615 = vpop.f32.mrb[0].mxu0
    %v616 = vadd.f32 0.0, %v615
    %617 = vdwg.mxu0
    %v618 = vrot.slane %v71, 2
    %v619 = vrot.slane %v72, 2
    %v620 = vsel %vm513, %v618, %v619
    %v621 = vrot.slane %v73, 2
    %v622 = vsel %vm513, %v619, %v621
    %v623 = vrot.slane %v74, 2
    %v624 = vsel %vm513, %v621, %v623
    %v625 = vsel %vm104, %v620, 0
    %v627 = vsel %vm104, %v622, 0
    %v629 = vsel %vm104, %v624, 0
    %v631 = vsel %vm104, %v623, 0
    %633 = vmatprep.subr.mxu0 %v506
    %634 = vmatpush1.msra.mxu0 %v505
    %635 = vmatprep.subr.mxu0 %v508
    %636 = vmatpush1.msra.mxu0 %v507
    %637 = vmatprep.subr.mxu0 %v510
    %638 = vmatpush1.msra.mxu0 %v509
    %639 = vmatprep.subr.mxu0 %v512
    %640 = vmatpush1.msra.mxu0 %v511
    %641 = vmatprep.subr.mxu0 0.0
    %642 = vmatpush1.msra.mxu0 0.0
    %643 = vmatprep.subr.mxu0 0.0
    %644 = vmatpush1.msra.mxu0 0.0
    %645 = vmatprep.subr.mxu0 0.0
    %646 = vmatpush1.msra.mxu0 0.0
    %647 = vmatprep.subr.mxu0 0.0
    %648 = vmatpush1.msra.mxu0 0.0
    %649 = vmatprep.subr.mxu0 0.0
    %650 = vmatpush1.msra.mxu0 0.0
    %651 = vmatprep.subr.mxu0 0.0
    %652 = vmatpush1.msra.mxu0 0.0
    %653 = vmatprep.subr.mxu0 0.0
    %654 = vmatpush1.msra.mxu0 0.0
    %655 = vmatprep.subr.mxu0 0.0
    %656 = vmatpush1.msra.mxu0 0.0
    %657 = vmatprep.subr.mxu0 0.0
    %658 = vmatpush1.msra.mxu0 0.0
    %659 = vmatprep.subr.mxu0 0.0
    %660 = vmatpush1.msra.mxu0 0.0
    %661 = vmatprep.subr.mxu0 0.0
    %662 = vmatpush1.msra.mxu0 0.0
    %663 = vmatprep.subr.mxu0 0.0
    %664 = vmatpush1.msra.mxu0 0.0
    %665 = vmatprep.subr.mxu0 0.0
    %666 = vmatpush1.msra.mxu0 0.0
    %667 = vmatprep.subr.mxu0 0.0
    %668 = vmatpush1.msra.mxu0 0.0
    %669 = vmatprep.subr.mxu0 0.0
    %670 = vmatpush1.msra.mxu0 0.0
    %671 = vmatprep.subr.mxu0 0.0
    %672 = vmatpush1.msra.mxu0 0.0
    %673 = vmatprep.subr.mxu0 0.0
    %674 = vmatpush1.msra.mxu0 0.0
    %675 = vmatprep.subr.mxu0 0.0
    %676 = vmatpush1.msra.mxu0 0.0
    %677 = vmatprep.subr.mxu0 0.0
    %678 = vmatpush1.msra.mxu0 0.0
    %679 = vmatprep.subr.mxu0 0.0
    %680 = vmatpush1.msra.mxu0 0.0
    %681 = vmatprep.subr.mxu0 0.0
    %682 = vmatpush1.msra.mxu0 0.0
    %683 = vmatprep.subr.mxu0 0.0
    %684 = vmatpush1.msra.mxu0 0.0
    %685 = vmatprep.subr.mxu0 0.0
    %686 = vmatpush1.msra.mxu0 0.0
    %687 = vmatprep.subr.mxu0 0.0
    %688 = vmatpush1.msra.mxu0 0.0
    %689 = vmatprep.subr.mxu0 0.0
    %690 = vmatpush1.msra.mxu0 0.0
    %691 = vmatprep.subr.mxu0 0.0
    %692 = vmatpush1.msra.mxu0 0.0
    %693 = vmatprep.subr.mxu0 0.0
    %694 = vmatpush1.msra.mxu0 0.0
    %695 = vmatprep.subr.mxu0 0.0
    %696 = vmatpush1.msra.mxu0 0.0
    %697 = vmatprep.mubr.f32.mxu0 0.0
    %698 = vmatmul.mubr.f32.gmra.mrb[0].mxu0 %v625
    %v699 = vpop.f32.mrb[0].mxu0
    %v700 = vadd.f32 0.0, %v699
    %v701 = vpop.f32.mrb[0].mxu0
    %v702 = vadd.f32 0.0, %v701
    %703 = vmatprep.mubr.f32.mxu0 0.0
    %704 = vmatmul.mubr.f32.gmra.mrb[0].mxu0 %v627
    %v705 = vpop.f32.mrb[0].mxu0
    %v706 = vadd.f32 0.0, %v705
    %v707 = vpop.f32.mrb[0].mxu0
    %v708 = vadd.f32 0.0, %v707
    %709 = vmatprep.mubr.f32.mxu0 0.0
    %710 = vmatmul.mubr.f32.gmra.mrb[0].mxu0 %v629
    %v711 = vpop.f32.mrb[0].mxu0
    %v712 = vadd.f32 0.0, %v711
    %v713 = vpop.f32.mrb[0].mxu0
    %v714 = vadd.f32 0.0, %v713
    %715 = vmatprep.mubr.f32.mxu0 0.0
    %716 = vmatmul.mubr.f32.gmra.mrb[0].mxu0 %v631
    %v717 = vpop.f32.mrb[0].mxu0
    %v718 = vadd.f32 0.0, %v717
    %v719 = vpop.f32.mrb[0].mxu0
    %v720 = vadd.f32 0.0, %v719
    %721 = vdwg.mxu0
    %v722 = vadd.f32 %v385, %v596
    %v723 = vadd.f32 %v387, %v598
    %v724 = vadd.f32 %v391, %v602
    %v725 = vadd.f32 %v393, %v604
    %v726 = vadd.f32 %v397, %v608
    %v727 = vadd.f32 %v399, %v610
    %v728 = vadd.f32 %v403, %v614
    %v729 = vadd.f32 %v405, %v616
    %v730 = vadd.f32 %v482, %v700
    %v731 = vadd.f32 %v484, %v702
    %v732 = vadd.f32 %v488, %v706
    %v733 = vadd.f32 %v490, %v708
    %v734 = vadd.f32 %v494, %v712
    %v735 = vadd.f32 %v496, %v714
    %v736 = vadd.f32 %v500, %v718
    %v737 = vadd.f32 %v502, %v720
    %v738 = vld [vmem:[%s2] sm:$0x3]
    %v740 = vlaneseq
    %v741 = vshrl.u32 %v740, 7
    %v742 = vsub.s32 0, %v741
    %v743 = vrot.slane %v738, %v742
    %v744 = vlaneseq
    %v745 = vshrl.u32 %v744, 7
    %v746 = vsub.s32 1, %v745
    %v747 = vrot.slane %v738, %v746
    %v750 = vadd.f32 %v722, %v743
    %v751 = vadd.f32 %v723, %v747
    %v752 = vadd.f32 %v724, %v743
    %v753 = vadd.f32 %v725, %v747
    %v754 = vadd.f32 %v726, %v743
    %v755 = vadd.f32 %v727, %v747
    %v756 = vadd.f32 %v728, %v743
    %v757 = vadd.f32 %v729, %v747
    %v758 = vadd.f32 %v730, %v743
    %v759 = vadd.f32 %v731, %v747
    %v760 = vadd.f32 %v732, %v743
    %v761 = vadd.f32 %v733, %v747
    %v762 = vadd.f32 %v734, %v743
    %v763 = vadd.f32 %v735, %v747
    %v764 = vadd.f32 %v736, %v743
    %v765 = vadd.f32 %v737, %v747
    %v766 = vmax.f32 %v750, 0.0
    %v767 = vmax.f32 %v751, 0.0
    %v768 = vmax.f32 %v752, 0.0
    %v769 = vmax.f32 %v753, 0.0
    %v770 = vmax.f32 %v754, 0.0
    %v771 = vmax.f32 %v755, 0.0
    %v772 = vmax.f32 %v756, 0.0
    %v773 = vmax.f32 %v757, 0.0
    %v774 = vmax.f32 %v758, 0.0
    %v775 = vmax.f32 %v759, 0.0
    %v776 = vmax.f32 %v760, 0.0
    %v777 = vmax.f32 %v761, 0.0
    %v778 = vmax.f32 %v762, 0.0
    %v779 = vmax.f32 %v763, 0.0
    %v780 = vmax.f32 %v764, 0.0
    %v781 = vmax.f32 %v765, 0.0
    %v798 = vrot.slane %v766, 1
    %v799 = vrot.slane %v768, 1
    %v800 = vsel %vm96, %v798, %v799
    %v801 = vrot.slane %v767, 1
    %v802 = vrot.slane %v769, 1
    %v803 = vsel %vm96, %v801, %v802
    %v804 = vrot.slane %v770, 1
    %v805 = vsel %vm96, %v799, %v804
    %v806 = vrot.slane %v771, 1
    %v807 = vsel %vm96, %v802, %v806
    %v808 = vrot.slane %v772, 1
    %v809 = vsel %vm96, %v804, %v808
    %v810 = vrot.slane %v773, 1
    %v811 = vsel %vm96, %v806, %v810
    %v812 = vrot.slane %v774, 1
    %v813 = vrot.slane %v776, 1
    %v814 = vsel %vm96, %v812, %v813
    %v815 = vrot.slane %v775, 1
    %v816 = vrot.slane %v777, 1
    %v817 = vsel %vm96, %v815, %v816
    %v818 = vrot.slane %v778, 1
    %v819 = vsel %vm96, %v813, %v818
    %v820 = vrot.slane %v779, 1
    %v821 = vsel %vm96, %v816, %v820
    %v822 = vrot.slane %v780, 1
    %v823 = vsel %vm96, %v818, %v822
    %v824 = vrot.slane %v781, 1
    %v825 = vsel %vm96, %v820, %v824
    %v842 = vmax.f32 %v766, %v800
    %v843 = vmax.f32 %v767, %v803
    %v844 = vmax.f32 %v768, %v805
    %v845 = vmax.f32 %v769, %v807
    %v846 = vmax.f32 %v770, %v809
    %v847 = vmax.f32 %v771, %v811
    %v848 = vmax.f32 %v772, %v808
    %v849 = vmax.f32 %v773, %v810
    %v850 = vmax.f32 %v774, %v814
    %v851 = vmax.f32 %v775, %v817
    %v852 = vmax.f32 %v776, %v819
    %v853 = vmax.f32 %v777, %v821
    %v854 = vmax.f32 %v778, %v823
    %v855 = vmax.f32 %v779, %v825
    %v856 = vmax.f32 %v780, %v822
    %v857 = vmax.f32 %v781, %v824
    %874 = vrot.lane.b32.xlu0 %v842, 122
    %v875 = vpop.permute.xlu0 %874
    %876 = vrot.lane.b32.xlu0 %v843, 122
    %v877 = vpop.permute.xlu0 %876
    %878 = vrot.lane.b32.xlu0 %v844, 122
    %v879 = vpop.permute.xlu0 %878
    %880 = vrot.lane.b32.xlu0 %v845, 122
    %v881 = vpop.permute.xlu0 %880
    %882 = vrot.lane.b32.xlu0 %v846, 122
    %v883 = vpop.permute.xlu0 %882
    %884 = vrot.lane.b32.xlu0 %v847, 122
    %v885 = vpop.permute.xlu0 %884
    %886 = vrot.lane.b32.xlu0 %v848, 122
    %v887 = vpop.permute.xlu0 %886
    %888 = vrot.lane.b32.xlu0 %v849, 122
    %v889 = vpop.permute.xlu0 %888
    %890 = vrot.lane.b32.xlu0 %v850, 122
    %v891 = vpop.permute.xlu0 %890
    %892 = vrot.lane.b32.xlu0 %v851, 122
    %v893 = vpop.permute.xlu0 %892
    %894 = vrot.lane.b32.xlu0 %v852, 122
    %v895 = vpop.permute.xlu0 %894
    %896 = vrot.lane.b32.xlu0 %v853, 122
    %v897 = vpop.permute.xlu0 %896
    %898 = vrot.lane.b32.xlu0 %v854, 122
    %v899 = vpop.permute.xlu0 %898
    %900 = vrot.lane.b32.xlu0 %v855, 122
    %v901 = vpop.permute.xlu0 %900
    %902 = vrot.lane.b32.xlu0 %v856, 122
    %v903 = vpop.permute.xlu0 %902
    %904 = vrot.lane.b32.xlu0 %v857, 122
    %v905 = vpop.permute.xlu0 %904
    %vm906 = vcmask 998400
    %v907 = vsel %vm906, %v875, %v877
    %v908 = vsel %vm906, %v879, %v881
    %v909 = vsel %vm906, %v883, %v885
    %v910 = vsel %vm906, %v887, %v889
    %v911 = vsel %vm906, %v891, %v893
    %v912 = vsel %vm906, %v895, %v897
    %v913 = vsel %vm906, %v899, %v901
    %v914 = vsel %vm906, %v903, %v905
    %v931 = vmax.f32 %v842, %v907
    %v932 = vmax.f32 %v843, %v877
    %v933 = vmax.f32 %v844, %v908
    %v934 = vmax.f32 %v845, %v881
    %v935 = vmax.f32 %v846, %v909
    %v936 = vmax.f32 %v847, %v885
    %v937 = vmax.f32 %v848, %v910
    %v938 = vmax.f32 %v849, %v889
    %v939 = vmax.f32 %v850, %v911
    %v940 = vmax.f32 %v851, %v893
    %v941 = vmax.f32 %v852, %v912
    %v942 = vmax.f32 %v853, %v897
    %v943 = vmax.f32 %v854, %v913
    %v944 = vmax.f32 %v855, %v901
    %v945 = vmax.f32 %v856, %v914
    %v946 = vmax.f32 %v857, %v905
    %v947 = vlaneseq
    %v948 = vshrl.u32 %v947, 7
    %v949 = vadd.s32 %v948, 8
    %v950 = vlaneseq
    %v951 = vand.u32 %v950, 127
    %v952 = vmul.u32 %v948, 2
    %v953 = vmul.u32 %v949, 2
    %vm954 = vcmp.eq.s32.totalorder %v951, %v952
    %vm955 = vcmp.eq.s32.totalorder %v951, %v953
    %v956 = vsel %vm954, 1, 0
    %v957 = vsel %vm955, 1, 0
    %v958 = vcvt.s32.f32 %v956
    %v959 = vcvt.s32.f32 %v957
    %vm960 = vcmask 236544
    %v962 = vsel %vm960, %v958, 0
    %v965 = vsel %vm960, %v959, 0
    %vm967 = vcmask 1044480
    %v969 = vsel %vm967, %v937, 0
    %v972 = vsel %vm967, %v938, 0
    %974 = vmatprep.subr.mxu0 %v932
    %975 = vmatpush1.msra.mxu0 %v931
    %976 = vmatprep.subr.mxu0 %v934
    %977 = vmatpush1.msra.mxu0 %v933
    %978 = vmatprep.subr.mxu0 %v936
    %979 = vmatpush1.msra.mxu0 %v935
    %980 = vmatprep.subr.mxu0 %v972
    %981 = vmatpush1.msra.mxu0 %v969
    %982 = vmatprep.subr.mxu0 0.0
    %983 = vmatpush1.msra.mxu0 0.0
    %984 = vmatprep.subr.mxu0 0.0
    %985 = vmatpush1.msra.mxu0 0.0
    %986 = vmatprep.subr.mxu0 0.0
    %987 = vmatpush1.msra.mxu0 0.0
    %988 = vmatprep.subr.mxu0 0.0
    %989 = vmatpush1.msra.mxu0 0.0
    %990 = vmatprep.subr.mxu0 0.0
    %991 = vmatpush1.msra.mxu0 0.0
    %992 = vmatprep.subr.mxu0 0.0
    %993 = vmatpush1.msra.mxu0 0.0
    %994 = vmatprep.subr.mxu0 0.0
    %995 = vmatpush1.msra.mxu0 0.0
    %996 = vmatprep.subr.mxu0 0.0
    %997 = vmatpush1.msra.mxu0 0.0
    %998 = vmatprep.subr.mxu0 0.0
    %999 = vmatpush1.msra.mxu0 0.0
    %1000 = vmatprep.subr.mxu0 0.0
    %1001 = vmatpush1.msra.mxu0 0.0
    %1002 = vmatprep.subr.mxu0 0.0
    %1003 = vmatpush1.msra.mxu0 0.0
    %1004 = vmatprep.subr.mxu0 0.0
    %1005 = vmatpush1.msra.mxu0 0.0
    %1006 = vmatprep.subr.mxu0 0.0
    %1007 = vmatpush1.msra.mxu0 0.0
    %1008 = vmatprep.subr.mxu0 0.0
    %1009 = vmatpush1.msra.mxu0 0.0
    %1010 = vmatprep.subr.mxu0 0.0
    %1011 = vmatpush1.msra.mxu0 0.0
    %1012 = vmatprep.subr.mxu0 0.0
    %1013 = vmatpush1.msra.mxu0 0.0
    %1014 = vmatprep.subr.mxu0 0.0
    %1015 = vmatpush1.msra.mxu0 0.0
    %1016 = vmatprep.subr.mxu0 0.0
    %1017 = vmatpush1.msra.mxu0 0.0
    %1018 = vmatprep.subr.mxu0 0.0
    %1019 = vmatpush1.msra.mxu0 0.0
    %1020 = vmatprep.subr.mxu0 0.0
    %1021 = vmatpush1.msra.mxu0 0.0
    %1022 = vmatprep.subr.mxu0 0.0
    %1023 = vmatpush1.msra.mxu0 0.0
    %1024 = vmatprep.subr.mxu0 0.0
    %1025 = vmatpush1.msra.mxu0 0.0
    %1026 = vmatprep.subr.mxu0 0.0
    %1027 = vmatpush1.msra.mxu0 0.0
    %1028 = vmatprep.subr.mxu0 0.0
    %1029 = vmatpush1.msra.mxu0 0.0
    %1030 = vmatprep.subr.mxu0 0.0
    %1031 = vmatpush1.msra.mxu0 0.0
    %1032 = vmatprep.subr.mxu0 0.0
    %1033 = vmatpush1.msra.mxu0 0.0
    %1034 = vmatprep.subr.mxu0 0.0
    %1035 = vmatpush1.msra.mxu0 0.0
    %1036 = vmatprep.subr.mxu0 0.0
    %1037 = vmatpush1.msra.mxu0 0.0
    %1038 = vmatprep.mubr.f32.mxu0 0.0
    %1039 = vmatmul.mubr.f32.gmra.mrb[0].mxu0 %v962
    %v1040 = vpop.f32.mrb[0].mxu0
    %v1041 = vadd.f32 0.0, %v1040
    %v1042 = vpop.f32.mrb[0].mxu0
    %v1043 = vadd.f32 0.0, %v1042
    %1044 = vmatprep.mubr.f32.mxu0 0.0
    %1045 = vmatmul.mubr.f32.gmra.mrb[0].mxu0 %v965
    %v1046 = vpop.f32.mrb[0].mxu0
    %v1047 = vadd.f32 0.0, %v1046
    %v1048 = vpop.f32.mrb[0].mxu0
    %v1049 = vadd.f32 0.0, %v1048
    %1050 = vdwg.mxu0
    %v1052 = vsel %vm967, %v945, 0
    %v1055 = vsel %vm967, %v946, 0
    %1057 = vmatprep.subr.mxu0 %v940
    %1058 = vmatpush1.msra.mxu0 %v939
    %1059 = vmatprep.subr.mxu0 %v942
    %1060 = vmatpush1.msra.mxu0 %v941
    %1061 = vmatprep.subr.mxu0 %v944
    %1062 = vmatpush1.msra.mxu0 %v943
    %1063 = vmatprep.subr.mxu0 %v1055
    %1064 = vmatpush1.msra.mxu0 %v1052
    %1065 = vmatprep.subr.mxu0 0.0
    %1066 = vmatpush1.msra.mxu0 0.0
    %1067 = vmatprep.subr.mxu0 0.0
    %1068 = vmatpush1.msra.mxu0 0.0
    %1069 = vmatprep.subr.mxu0 0.0
    %1070 = vmatpush1.msra.mxu0 0.0
    %1071 = vmatprep.subr.mxu0 0.0
    %1072 = vmatpush1.msra.mxu0 0.0
    %1073 = vmatprep.subr.mxu0 0.0
    %1074 = vmatpush1.msra.mxu0 0.0
    %1075 = vmatprep.subr.mxu0 0.0
    %1076 = vmatpush1.msra.mxu0 0.0
    %1077 = vmatprep.subr.mxu0 0.0
    %1078 = vmatpush1.msra.mxu0 0.0
    %1079 = vmatprep.subr.mxu0 0.0
    %1080 = vmatpush1.msra.mxu0 0.0
    %1081 = vmatprep.subr.mxu0 0.0
    %1082 = vmatpush1.msra.mxu0 0.0
    %1083 = vmatprep.subr.mxu0 0.0
    %1084 = vmatpush1.msra.mxu0 0.0
    %1085 = vmatprep.subr.mxu0 0.0
    %1086 = vmatpush1.msra.mxu0 0.0
    %1087 = vmatprep.subr.mxu0 0.0
    %1088 = vmatpush1.msra.mxu0 0.0
    %1089 = vmatprep.subr.mxu0 0.0
    %1090 = vmatpush1.msra.mxu0 0.0
    %1091 = vmatprep.subr.mxu0 0.0
    %1092 = vmatpush1.msra.mxu0 0.0
    %1093 = vmatprep.subr.mxu0 0.0
    %1094 = vmatpush1.msra.mxu0 0.0
    %1095 = vmatprep.subr.mxu0 0.0
    %1096 = vmatpush1.msra.mxu0 0.0
    %1097 = vmatprep.subr.mxu0 0.0
    %1098 = vmatpush1.msra.mxu0 0.0
    %1099 = vmatprep.subr.mxu0 0.0
    %1100 = vmatpush1.msra.mxu0 0.0
    %1101 = vmatprep.subr.mxu0 0.0
    %1102 = vmatpush1.msra.mxu0 0.0
    %1103 = vmatprep.subr.mxu0 0.0
    %1104 = vmatpush1.msra.mxu0 0.0
    %1105 = vmatprep.subr.mxu0 0.0
    %1106 = vmatpush1.msra.mxu0 0.0
    %1107 = vmatprep.subr.mxu0 0.0
    %1108 = vmatpush1.msra.mxu0 0.0
    %1109 = vmatprep.subr.mxu0 0.0
    %1110 = vmatpush1.msra.mxu0 0.0
    %1111 = vmatprep.subr.mxu0 0.0
    %1112 = vmatpush1.msra.mxu0 0.0
    %1113 = vmatprep.subr.mxu0 0.0
    %1114 = vmatpush1.msra.mxu0 0.0
    %1115 = vmatprep.subr.mxu0 0.0
    %1116 = vmatpush1.msra.mxu0 0.0
    %1117 = vmatprep.subr.mxu0 0.0
    %1118 = vmatpush1.msra.mxu0 0.0
    %1119 = vmatprep.subr.mxu0 0.0
    %1120 = vmatpush1.msra.mxu0 0.0
    %1121 = vmatprep.mubr.f32.mxu0 0.0
    %1122 = vmatmul.mubr.f32.gmra.mrb[0].mxu0 %v962
    %v1123 = vpop.f32.mrb[0].mxu0
    %v1124 = vadd.f32 0.0, %v1123
    %v1125 = vpop.f32.mrb[0].mxu0
    %v1126 = vadd.f32 0.0, %v1125
    %1127 = vmatprep.mubr.f32.mxu0 0.0
    %1128 = vmatmul.mubr.f32.gmra.mrb[0].mxu0 %v965
    %v1129 = vpop.f32.mrb[0].mxu0
    %v1130 = vadd.f32 0.0, %v1129
    %v1131 = vpop.f32.mrb[0].mxu0
    %v1132 = vadd.f32 0.0, %v1131
    %1133 = vdwg.mxu0
    %v1134 = vld [vmem:[#allocation2] sm:$0xff]
    %v1135 = vld [vmem:[#allocation2 + $0x8] sm:$0xff]
    %v1136 = vld [vmem:[#allocation2 + $0x10] sm:$0xff]
    %v1137 = vld [vmem:[#allocation2 + $0x18] sm:$0xff]
    %v1138 = vld [vmem:[#allocation2 + $0x20] sm:$0xff]
    %v1139 = vld [vmem:[#allocation2 + $0x28] sm:$0xff]
    %v1140 = vld [vmem:[#allocation2 + $0x30] sm:$0xff]
    %v1141 = vld [vmem:[#allocation2 + $0x38] sm:$0xff]
    %v1142 = vld [vmem:[#allocation2 + $0x40] sm:$0xff]
    %v1143 = vld [vmem:[#allocation2 + $0x48] sm:$0xff]
    %v1144 = vld [vmem:[#allocation2 + $0x50] sm:$0xff]
    %v1145 = vld [vmem:[#allocation2 + $0x58] sm:$0xff]
    %v1146 = vld [vmem:[#allocation2 + $0x60] sm:$0xff]
    %v1147 = vld [vmem:[#allocation2 + $0x68] sm:$0xff]
    %v1148 = vld [vmem:[#allocation2 + $0x70] sm:$0xff]
    %v1149 = vld [vmem:[#allocation2 + $0x78] sm:$0xff]
    %v1150 = vld [vmem:[#allocation2 + $0x80] sm:$0xff]
    %v1151 = vld [vmem:[#allocation2 + $0x88] sm:$0xff]
    %v1152 = vld [vmem:[#allocation2 + $0x90] sm:$0xff]
    %v1153 = vld [vmem:[#allocation2 + $0x98] sm:$0xff]
    %v1154 = vld [vmem:[#allocation2 + $0xa0] sm:$0xff]
    %v1155 = vld [vmem:[#allocation2 + $0xa8] sm:$0xff]
    %v1156 = vld [vmem:[#allocation2 + $0xb0] sm:$0xff]
    %v1157 = vld [vmem:[#allocation2 + $0xb8] sm:$0xff]
    %v1158 = vld [vmem:[#allocation2 + $0xc0] sm:$0xff]
    %v1159 = vld [vmem:[#allocation2 + $0xc8] sm:$0xff]
    %v1160 = vld [vmem:[#allocation2 + $0xd0] sm:$0xff]
    %v1161 = vld [vmem:[#allocation2 + $0xd8] sm:$0xff]
    %v1162 = vld [vmem:[#allocation2 + $0xe0] sm:$0xff]
    %v1163 = vld [vmem:[#allocation2 + $0xe8] sm:$0xff]
    %v1164 = vld [vmem:[#allocation2 + $0xf0] sm:$0xff]
    %v1165 = vld [vmem:[#allocation2 + $0xf8] sm:$0xff]
    %v1166 = vld [vmem:[#allocation2 + $0x100] sm:$0xff]
    %v1167 = vld [vmem:[#allocation2 + $0x108] sm:$0xff]
    %v1168 = vld [vmem:[#allocation2 + $0x110] sm:$0xff]
    %v1169 = vld [vmem:[#allocation2 + $0x118] sm:$0xff]
    %v1170 = vld [vmem:[#allocation2 + $0x120] sm:$0xff]
    %v1171 = vld [vmem:[#allocation2 + $0x128] sm:$0xff]
    %v1172 = vld [vmem:[#allocation2 + $0x130] sm:$0xff]
    %v1173 = vld [vmem:[#allocation2 + $0x138] sm:$0xff]
    %v1174 = vld [vmem:[#allocation2 + $0x140] sm:$0xff]
    %v1175 = vld [vmem:[#allocation2 + $0x148] sm:$0xff]
    %v1176 = vld [vmem:[#allocation2 + $0x150] sm:$0x3f]
    %v1177 = vld [vmem:[#allocation2 + $0x158] sm:$0x3f]
    %s1178 = scalar_lea.vmem [#allocation2], 352
    %v1179 = vld [vmem:[%s1178] sm:$0xff]
    %v1180 = vld [vmem:[%s1178 + $0x8] sm:$0xff]
    %v1181 = vld [vmem:[%s1178 + $0x10] sm:$0xff]
    %v1182 = vld [vmem:[%s1178 + $0x18] sm:$0xff]
    %v1183 = vld [vmem:[%s1178 + $0x20] sm:$0xff]
    %v1184 = vld [vmem:[%s1178 + $0x28] sm:$0xff]
    %v1185 = vld [vmem:[%s1178 + $0x30] sm:$0xff]
    %v1186 = vld [vmem:[%s1178 + $0x38] sm:$0xff]
    %v1187 = vld [vmem:[%s1178 + $0x40] sm:$0xff]
    %v1188 = vld [vmem:[%s1178 + $0x48] sm:$0xff]
    %v1189 = vld [vmem:[%s1178 + $0x50] sm:$0xff]
    %v1190 = vld [vmem:[%s1178 + $0x58] sm:$0xff]
    %v1191 = vld [vmem:[%s1178 + $0x60] sm:$0xff]
    %v1192 = vld [vmem:[%s1178 + $0x68] sm:$0xff]
    %v1193 = vld [vmem:[%s1178 + $0x70] sm:$0xff]
    %v1194 = vld [vmem:[%s1178 + $0x78] sm:$0xff]
    %v1195 = vld [vmem:[%s1178 + $0x80] sm:$0xff]
    %v1196 = vld [vmem:[%s1178 + $0x88] sm:$0xff]
    %v1197 = vld [vmem:[%s1178 + $0x90] sm:$0xff]
    %v1198 = vld [vmem:[%s1178 + $0x98] sm:$0xff]
    %v1199 = vld [vmem:[%s1178 + $0xa0] sm:$0xff]
    %v1200 = vld [vmem:[%s1178 + $0xa8] sm:$0xff]
    %v1201 = vld [vmem:[%s1178 + $0xb0] sm:$0xff]
    %v1202 = vld [vmem:[%s1178 + $0xb8] sm:$0xff]
    %v1203 = vld [vmem:[%s1178 + $0xc0] sm:$0xff]
    %v1204 = vld [vmem:[%s1178 + $0xc8] sm:$0xff]
    %v1205 = vld [vmem:[%s1178 + $0xd0] sm:$0xff]
    %v1206 = vld [vmem:[%s1178 + $0xd8] sm:$0xff]
    %v1207 = vld [vmem:[%s1178 + $0xe0] sm:$0xff]
    %v1208 = vld [vmem:[%s1178 + $0xe8] sm:$0xff]
    %v1209 = vld [vmem:[%s1178 + $0xf0] sm:$0xff]
    %v1210 = vld [vmem:[%s1178 + $0xf8] sm:$0xff]
    %v1211 = vld [vmem:[%s1178 + $0x100] sm:$0xff]
    %v1212 = vld [vmem:[%s1178 + $0x108] sm:$0xff]
    %v1213 = vld [vmem:[%s1178 + $0x110] sm:$0xff]
    %v1214 = vld [vmem:[%s1178 + $0x118] sm:$0xff]
    %v1215 = vld [vmem:[%s1178 + $0x120] sm:$0xff]
    %v1216 = vld [vmem:[%s1178 + $0x128] sm:$0xff]
    %v1217 = vld [vmem:[%s1178 + $0x130] sm:$0xff]
    %v1218 = vld [vmem:[%s1178 + $0x138] sm:$0xff]
    %v1219 = vld [vmem:[%s1178 + $0x140] sm:$0xff]
    %v1220 = vld [vmem:[%s1178 + $0x148] sm:$0xff]
    %v1221 = vld [vmem:[%s1178 + $0x150] sm:$0x3f]
    %v1222 = vld [vmem:[%s1178 + $0x158] sm:$0x3f]
    %v1227 = vrot.slane %v1041, 1
    %v1228 = vrot.slane %v1047, 1
    %v1229 = vsel %vm96, %v1227, %v1228
    %v1230 = vrot.slane %v1043, 1
    %v1231 = vrot.slane %v1049, 1
    %v1232 = vsel %vm96, %v1230, %v1231
    %vm1235 = vcmask 375808
    %v1236 = vsel %vm1235, %v1232, 0
    %v1238 = vsel %vm1235, %v1231, 0
    %v1241 = vsel %vm513, %v1221, 0
    %v1244 = vsel %vm513, %v1222, 0
    %1246 = vmatprep.subr.mxu0 %v1180
    %1247 = vmatpush1.msra.mxu0 %v1179
    %1248 = vmatprep.subr.mxu0 %v1182
    %1249 = vmatpush1.msra.mxu0 %v1181
    %1250 = vmatprep.subr.mxu0 %v1184
    %1251 = vmatpush1.msra.mxu0 %v1183
    %1252 = vmatprep.subr.mxu0 %v1186
    %1253 = vmatpush1.msra.mxu0 %v1185
    %1254 = vmatprep.subr.mxu0 %v1188
    %1255 = vmatpush1.msra.mxu0 %v1187
    %1256 = vmatprep.subr.mxu0 %v1190
    %1257 = vmatpush1.msra.mxu0 %v1189
    %1258 = vmatprep.subr.mxu0 %v1192
    %1259 = vmatpush1.msra.mxu0 %v1191
    %1260 = vmatprep.subr.mxu0 %v1194
    %1261 = vmatpush1.msra.mxu0 %v1193
    %1262 = vmatprep.subr.mxu0 %v1196
    %1263 = vmatpush1.msra.mxu0 %v1195
    %1264 = vmatprep.subr.mxu0 %v1198
    %1265 = vmatpush1.msra.mxu0 %v1197
    %1266 = vmatprep.subr.mxu0 %v1200
    %1267 = vmatpush1.msra.mxu0 %v1199
    %1268 = vmatprep.subr.mxu0 %v1202
    %1269 = vmatpush1.msra.mxu0 %v1201
    %1270 = vmatprep.subr.mxu0 %v1204
    %1271 = vmatpush1.msra.mxu0 %v1203
    %1272 = vmatprep.subr.mxu0 %v1206
    %1273 = vmatpush1.msra.mxu0 %v1205
    %1274 = vmatprep.subr.mxu0 %v1208
    %1275 = vmatpush1.msra.mxu0 %v1207
    %1276 = vmatprep.subr.mxu0 %v1210
    %1277 = vmatpush1.msra.mxu0 %v1209
    %1278 = vmatprep.subr.mxu0 %v1212
    %1279 = vmatpush1.msra.mxu0 %v1211
    %1280 = vmatprep.subr.mxu0 %v1214
    %1281 = vmatpush1.msra.mxu0 %v1213
    %1282 = vmatprep.subr.mxu0 %v1216
    %1283 = vmatpush1.msra.mxu0 %v1215
    %1284 = vmatprep.subr.mxu0 %v1218
    %1285 = vmatpush1.msra.mxu0 %v1217
    %1286 = vmatprep.subr.mxu0 %v1220
    %1287 = vmatpush1.msra.mxu0 %v1219
    %1288 = vmatprep.subr.mxu0 %v1244
    %1289 = vmatpush1.msra.mxu0 %v1241
    %1290 = vmatprep.subr.mxu0 0.0
    %1291 = vmatpush1.msra.mxu0 0.0
    %1292 = vmatprep.subr.mxu0 0.0
    %1293 = vmatpush1.msra.mxu0 0.0
    %1294 = vmatprep.subr.mxu0 0.0
    %1295 = vmatpush1.msra.mxu0 0.0
    %1296 = vmatprep.subr.mxu0 0.0
    %1297 = vmatpush1.msra.mxu0 0.0
    %1298 = vmatprep.subr.mxu0 0.0
    %1299 = vmatpush1.msra.mxu0 0.0
    %1300 = vmatprep.subr.mxu0 0.0
    %1301 = vmatpush1.msra.mxu0 0.0
    %1302 = vmatprep.subr.mxu0 0.0
    %1303 = vmatpush1.msra.mxu0 0.0
    %1304 = vmatprep.subr.mxu0 0.0
    %1305 = vmatpush1.msra.mxu0 0.0
    %1306 = vmatprep.subr.mxu0 0.0
    %1307 = vmatpush1.msra.mxu0 0.0
    %1308 = vmatprep.subr.mxu0 0.0
    %1309 = vmatpush1.msra.mxu0 0.0
    %1310 = vmatprep.mubr.f32.mxu0 %v1236
    %1311 = vmatmul.mubr.f32.gmra.mrb[0].mxu0 %v1229
    %v1312 = vpop.f32.mrb[0].mxu0
    %v1313 = vadd.f32 0.0, %v1312
    %v1314 = vpop.f32.mrb[0].mxu0
    %v1315 = vadd.f32 0.0, %v1314
    %1316 = vmatprep.mubr.f32.mxu0 %v1238
    %1317 = vmatmul.mubr.f32.gmra.mrb[0].mxu0 %v1228
    %v1318 = vpop.f32.mrb[0].mxu0
    %v1319 = vadd.f32 0.0, %v1318
    %v1320 = vpop.f32.mrb[0].mxu0
    %v1321 = vadd.f32 0.0, %v1320
    %1322 = vdwg.mxu0
    %v1327 = vrot.slane %v1124, 1
    %v1328 = vrot.slane %v1130, 1
    %v1329 = vsel %vm96, %v1327, %v1328
    %v1330 = vrot.slane %v1126, 1
    %v1331 = vrot.slane %v1132, 1
    %v1332 = vsel %vm96, %v1330, %v1331
    %v1335 = vsel %vm1235, %v1332, 0
    %v1337 = vsel %vm1235, %v1331, 0
    %1339 = vmatprep.subr.mxu0 %v1180
    %1340 = vmatpush1.msra.mxu0 %v1179
    %1341 = vmatprep.subr.mxu0 %v1182
    %1342 = vmatpush1.msra.mxu0 %v1181
    %1343 = vmatprep.subr.mxu0 %v1184
    %1344 = vmatpush1.msra.mxu0 %v1183
    %1345 = vmatprep.subr.mxu0 %v1186
    %1346 = vmatpush1.msra.mxu0 %v1185
    %1347 = vmatprep.subr.mxu0 %v1188
    %1348 = vmatpush1.msra.mxu0 %v1187
    %1349 = vmatprep.subr.mxu0 %v1190
    %1350 = vmatpush1.msra.mxu0 %v1189
    %1351 = vmatprep.subr.mxu0 %v1192
    %1352 = vmatpush1.msra.mxu0 %v1191
    %1353 = vmatprep.subr.mxu0 %v1194
    %1354 = vmatpush1.msra.mxu0 %v1193
    %1355 = vmatprep.subr.mxu0 %v1196
    %1356 = vmatpush1.msra.mxu0 %v1195
    %1357 = vmatprep.subr.mxu0 %v1198
    %1358 = vmatpush1.msra.mxu0 %v1197
    %1359 = vmatprep.subr.mxu0 %v1200
    %1360 = vmatpush1.msra.mxu0 %v1199
    %1361 = vmatprep.subr.mxu0 %v1202
    %1362 = vmatpush1.msra.mxu0 %v1201
    %1363 = vmatprep.subr.mxu0 %v1204
    %1364 = vmatpush1.msra.mxu0 %v1203
    %1365 = vmatprep.subr.mxu0 %v1206
    %1366 = vmatpush1.msra.mxu0 %v1205
    %1367 = vmatprep.subr.mxu0 %v1208
    %1368 = vmatpush1.msra.mxu0 %v1207
    %1369 = vmatprep.subr.mxu0 %v1210
    %1370 = vmatpush1.msra.mxu0 %v1209
    %1371 = vmatprep.subr.mxu0 %v1212
    %1372 = vmatpush1.msra.mxu0 %v1211
    %1373 = vmatprep.subr.mxu0 %v1214
    %1374 = vmatpush1.msra.mxu0 %v1213
    %1375 = vmatprep.subr.mxu0 %v1216
    %1376 = vmatpush1.msra.mxu0 %v1215
    %1377 = vmatprep.subr.mxu0 %v1218
    %1378 = vmatpush1.msra.mxu0 %v1217
    %1379 = vmatprep.subr.mxu0 %v1220
    %1380 = vmatpush1.msra.mxu0 %v1219
    %1381 = vmatprep.subr.mxu0 %v1244
    %1382 = vmatpush1.msra.mxu0 %v1241
    %1383 = vmatprep.subr.mxu0 0.0
    %1384 = vmatpush1.msra.mxu0 0.0
    %1385 = vmatprep.subr.mxu0 0.0
    %1386 = vmatpush1.msra.mxu0 0.0
    %1387 = vmatprep.subr.mxu0 0.0
    %1388 = vmatpush1.msra.mxu0 0.0
    %1389 = vmatprep.subr.mxu0 0.0
    %1390 = vmatpush1.msra.mxu0 0.0
    %1391 = vmatprep.subr.mxu0 0.0
    %1392 = vmatpush1.msra.mxu0 0.0
    %1393 = vmatprep.subr.mxu0 0.0
    %1394 = vmatpush1.msra.mxu0 0.0
    %1395 = vmatprep.subr.mxu0 0.0
    %1396 = vmatpush1.msra.mxu0 0.0
    %1397 = vmatprep.subr.mxu0 0.0
    %1398 = vmatpush1.msra.mxu0 0.0
    %1399 = vmatprep.subr.mxu0 0.0
    %1400 = vmatpush1.msra.mxu0 0.0
    %1401 = vmatprep.subr.mxu0 0.0
    %1402 = vmatpush1.msra.mxu0 0.0
    %1403 = vmatprep.mubr.f32.mxu0 %v1335
    %1404 = vmatmul.mubr.f32.gmra.mrb[0].mxu0 %v1329
    %v1405 = vpop.f32.mrb[0].mxu0
    %v1406 = vadd.f32 0.0, %v1405
    %v1407 = vpop.f32.mrb[0].mxu0
    %v1408 = vadd.f32 0.0, %v1407
    %1409 = vmatprep.mubr.f32.mxu0 %v1337
    %1410 = vmatmul.mubr.f32.gmra.mrb[0].mxu0 %v1328
    %v1411 = vpop.f32.mrb[0].mxu0
    %v1412 = vadd.f32 0.0, %v1411
    %v1413 = vpop.f32.mrb[0].mxu0
    %v1414 = vadd.f32 0.0, %v1413
    %1415 = vdwg.mxu0
    %v1416 = vsel %vm1235, %v1043, 0
    %v1418 = vsel %vm1235, %v1049, 0
    %v1421 = vsel %vm513, %v1176, 0
    %v1424 = vsel %vm513, %v1177, 0
    %1426 = vmatprep.subr.mxu0 %v1135
    %1427 = vmatpush1.msra.mxu0 %v1134
    %1428 = vmatprep.subr.mxu0 %v1137
    %1429 = vmatpush1.msra.mxu0 %v1136
    %1430 = vmatprep.subr.mxu0 %v1139
    %1431 = vmatpush1.msra.mxu0 %v1138
    %1432 = vmatprep.subr.mxu0 %v1141
    %1433 = vmatpush1.msra.mxu0 %v1140
    %1434 = vmatprep.subr.mxu0 %v1143
    %1435 = vmatpush1.msra.mxu0 %v1142
    %1436 = vmatprep.subr.mxu0 %v1145
    %1437 = vmatpush1.msra.mxu0 %v1144
    %1438 = vmatprep.subr.mxu0 %v1147
    %1439 = vmatpush1.msra.mxu0 %v1146
    %1440 = vmatprep.subr.mxu0 %v1149
    %1441 = vmatpush1.msra.mxu0 %v1148
    %1442 = vmatprep.subr.mxu0 %v1151
    %1443 = vmatpush1.msra.mxu0 %v1150
    %1444 = vmatprep.subr.mxu0 %v1153
    %1445 = vmatpush1.msra.mxu0 %v1152
    %1446 = vmatprep.subr.mxu0 %v1155
    %1447 = vmatpush1.msra.mxu0 %v1154
    %1448 = vmatprep.subr.mxu0 %v1157
    %1449 = vmatpush1.msra.mxu0 %v1156
    %1450 = vmatprep.subr.mxu0 %v1159
    %1451 = vmatpush1.msra.mxu0 %v1158
    %1452 = vmatprep.subr.mxu0 %v1161
    %1453 = vmatpush1.msra.mxu0 %v1160
    %1454 = vmatprep.subr.mxu0 %v1163
    %1455 = vmatpush1.msra.mxu0 %v1162
    %1456 = vmatprep.subr.mxu0 %v1165
    %1457 = vmatpush1.msra.mxu0 %v1164
    %1458 = vmatprep.subr.mxu0 %v1167
    %1459 = vmatpush1.msra.mxu0 %v1166
    %1460 = vmatprep.subr.mxu0 %v1169
    %1461 = vmatpush1.msra.mxu0 %v1168
    %1462 = vmatprep.subr.mxu0 %v1171
    %1463 = vmatpush1.msra.mxu0 %v1170
    %1464 = vmatprep.subr.mxu0 %v1173
    %1465 = vmatpush1.msra.mxu0 %v1172
    %1466 = vmatprep.subr.mxu0 %v1175
    %1467 = vmatpush1.msra.mxu0 %v1174
    %1468 = vmatprep.subr.mxu0 %v1424
    %1469 = vmatpush1.msra.mxu0 %v1421
    %1470 = vmatprep.subr.mxu0 0.0
    %1471 = vmatpush1.msra.mxu0 0.0
    %1472 = vmatprep.subr.mxu0 0.0
    %1473 = vmatpush1.msra.mxu0 0.0
    %1474 = vmatprep.subr.mxu0 0.0
    %1475 = vmatpush1.msra.mxu0 0.0
    %1476 = vmatprep.subr.mxu0 0.0
    %1477 = vmatpush1.msra.mxu0 0.0
    %1478 = vmatprep.subr.mxu0 0.0
    %1479 = vmatpush1.msra.mxu0 0.0
    %1480 = vmatprep.subr.mxu0 0.0
    %1481 = vmatpush1.msra.mxu0 0.0
    %1482 = vmatprep.subr.mxu0 0.0
    %1483 = vmatpush1.msra.mxu0 0.0
    %1484 = vmatprep.subr.mxu0 0.0
    %1485 = vmatpush1.msra.mxu0 0.0
    %1486 = vmatprep.subr.mxu0 0.0
    %1487 = vmatpush1.msra.mxu0 0.0
    %1488 = vmatprep.subr.mxu0 0.0
    %1489 = vmatpush1.msra.mxu0 0.0
    %1490 = vmatprep.mubr.f32.mxu0 %v1416
    %1491 = vmatmul.mubr.f32.gmra.mrb[0].mxu0 %v1041
    %v1492 = vpop.f32.mrb[0].mxu0
    %v1493 = vadd.f32 %v1313, %v1492
    %v1494 = vpop.f32.mrb[0].mxu0
    %v1495 = vadd.f32 %v1315, %v1494
    %1496 = vmatprep.mubr.f32.mxu0 %v1418
    %1497 = vmatmul.mubr.f32.gmra.mrb[0].mxu0 %v1047
    %v1498 = vpop.f32.mrb[0].mxu0
    %v1499 = vadd.f32 %v1319, %v1498
    %v1500 = vpop.f32.mrb[0].mxu0
    %v1501 = vadd.f32 %v1321, %v1500
    %1502 = vdwg.mxu0
    %v1503 = vsel %vm1235, %v1126, 0
    %v1505 = vsel %vm1235, %v1132, 0
    %1507 = vmatprep.subr.mxu0 %v1135
    %1508 = vmatpush1.msra.mxu0 %v1134
    %1509 = vmatprep.subr.mxu0 %v1137
    %1510 = vmatpush1.msra.mxu0 %v1136
    %1511 = vmatprep.subr.mxu0 %v1139
    %1512 = vmatpush1.msra.mxu0 %v1138
    %1513 = vmatprep.subr.mxu0 %v1141
    %1514 = vmatpush1.msra.mxu0 %v1140
    %1515 = vmatprep.subr.mxu0 %v1143
    %1516 = vmatpush1.msra.mxu0 %v1142
    %1517 = vmatprep.subr.mxu0 %v1145
    %1518 = vmatpush1.msra.mxu0 %v1144
    %1519 = vmatprep.subr.mxu0 %v1147
    %1520 = vmatpush1.msra.mxu0 %v1146
    %1521 = vmatprep.subr.mxu0 %v1149
    %1522 = vmatpush1.msra.mxu0 %v1148
    %1523 = vmatprep.subr.mxu0 %v1151
    %1524 = vmatpush1.msra.mxu0 %v1150
    %1525 = vmatprep.subr.mxu0 %v1153
    %1526 = vmatpush1.msra.mxu0 %v1152
    %1527 = vmatprep.subr.mxu0 %v1155
    %1528 = vmatpush1.msra.mxu0 %v1154
    %1529 = vmatprep.subr.mxu0 %v1157
    %1530 = vmatpush1.msra.mxu0 %v1156
    %1531 = vmatprep.subr.mxu0 %v1159
    %1532 = vmatpush1.msra.mxu0 %v1158
    %1533 = vmatprep.subr.mxu0 %v1161
    %1534 = vmatpush1.msra.mxu0 %v1160
    %1535 = vmatprep.subr.mxu0 %v1163
    %1536 = vmatpush1.msra.mxu0 %v1162
    %1537 = vmatprep.subr.mxu0 %v1165
    %1538 = vmatpush1.msra.mxu0 %v1164
    %1539 = vmatprep.subr.mxu0 %v1167
    %1540 = vmatpush1.msra.mxu0 %v1166
    %1541 = vmatprep.subr.mxu0 %v1169
    %1542 = vmatpush1.msra.mxu0 %v1168
    %1543 = vmatprep.subr.mxu0 %v1171
    %1544 = vmatpush1.msra.mxu0 %v1170
    %1545 = vmatprep.subr.mxu0 %v1173
    %1546 = vmatpush1.msra.mxu0 %v1172
    %1547 = vmatprep.subr.mxu0 %v1175
    %1548 = vmatpush1.msra.mxu0 %v1174
    %1549 = vmatprep.subr.mxu0 %v1424
    %1550 = vmatpush1.msra.mxu0 %v1421
    %1551 = vmatprep.subr.mxu0 0.0
    %1552 = vmatpush1.msra.mxu0 0.0
    %1553 = vmatprep.subr.mxu0 0.0
    %1554 = vmatpush1.msra.mxu0 0.0
    %1555 = vmatprep.subr.mxu0 0.0
    %1556 = vmatpush1.msra.mxu0 0.0
    %1557 = vmatprep.subr.mxu0 0.0
    %1558 = vmatpush1.msra.mxu0 0.0
    %1559 = vmatprep.subr.mxu0 0.0
    %1560 = vmatpush1.msra.mxu0 0.0
    %1561 = vmatprep.subr.mxu0 0.0
    %1562 = vmatpush1.msra.mxu0 0.0
    %1563 = vmatprep.subr.mxu0 0.0
    %1564 = vmatpush1.msra.mxu0 0.0
    %1565 = vmatprep.subr.mxu0 0.0
    %1566 = vmatpush1.msra.mxu0 0.0
    %1567 = vmatprep.subr.mxu0 0.0
    %1568 = vmatpush1.msra.mxu0 0.0
    %1569 = vmatprep.subr.mxu0 0.0
    %1570 = vmatpush1.msra.mxu0 0.0
    %1571 = vmatprep.mubr.f32.mxu0 %v1503
    %1572 = vmatmul.mubr.f32.gmra.mrb[0].mxu0 %v1124
    %v1573 = vpop.f32.mrb[0].mxu0
    %v1574 = vadd.f32 %v1406, %v1573
    %v1575 = vpop.f32.mrb[0].mxu0
    %v1576 = vadd.f32 %v1408, %v1575
    %1577 = vmatprep.mubr.f32.mxu0 %v1505
    %1578 = vmatmul.mubr.f32.gmra.mrb[0].mxu0 %v1130
    %v1579 = vpop.f32.mrb[0].mxu0
    %v1580 = vadd.f32 %v1412, %v1579
    %v1581 = vpop.f32.mrb[0].mxu0
    %v1582 = vadd.f32 %v1414, %v1581
    %1583 = vdwg.mxu0
    %s1584 = scalar_lea.vmem [#allocation2], 704
    %v1585 = vld [vmem:[%s1584] sm:$0xff]
    %v1586 = vld [vmem:[%s1584 + $0x8] sm:$0xff]
    %v1587 = vld [vmem:[%s1584 + $0x10] sm:$0xff]
    %v1588 = vld [vmem:[%s1584 + $0x18] sm:$0xff]
    %v1589 = vld [vmem:[%s1584 + $0x20] sm:$0xff]
    %v1590 = vld [vmem:[%s1584 + $0x28] sm:$0xff]
    %v1591 = vld [vmem:[%s1584 + $0x30] sm:$0xff]
    %v1592 = vld [vmem:[%s1584 + $0x38] sm:$0xff]
    %v1593 = vld [vmem:[%s1584 + $0x40] sm:$0xff]
    %v1594 = vld [vmem:[%s1584 + $0x48] sm:$0xff]
    %v1595 = vld [vmem:[%s1584 + $0x50] sm:$0xff]
    %v1596 = vld [vmem:[%s1584 + $0x58] sm:$0xff]
    %v1597 = vld [vmem:[%s1584 + $0x60] sm:$0xff]
    %v1598 = vld [vmem:[%s1584 + $0x68] sm:$0xff]
    %v1599 = vld [vmem:[%s1584 + $0x70] sm:$0xff]
    %v1600 = vld [vmem:[%s1584 + $0x78] sm:$0xff]
    %v1601 = vld [vmem:[%s1584 + $0x80] sm:$0xff]
    %v1602 = vld [vmem:[%s1584 + $0x88] sm:$0xff]
    %v1603 = vld [vmem:[%s1584 + $0x90] sm:$0xff]
    %v1604 = vld [vmem:[%s1584 + $0x98] sm:$0xff]
    %v1605 = vld [vmem:[%s1584 + $0xa0] sm:$0xff]
    %v1606 = vld [vmem:[%s1584 + $0xa8] sm:$0xff]
    %v1607 = vld [vmem:[%s1584 + $0xb0] sm:$0xff]
    %v1608 = vld [vmem:[%s1584 + $0xb8] sm:$0xff]
    %v1609 = vld [vmem:[%s1584 + $0xc0] sm:$0xff]
    %v1610 = vld [vmem:[%s1584 + $0xc8] sm:$0xff]
    %v1611 = vld [vmem:[%s1584 + $0xd0] sm:$0xff]
    %v1612 = vld [vmem:[%s1584 + $0xd8] sm:$0xff]
    %v1613 = vld [vmem:[%s1584 + $0xe0] sm:$0xff]
    %v1614 = vld [vmem:[%s1584 + $0xe8] sm:$0xff]
    %v1615 = vld [vmem:[%s1584 + $0xf0] sm:$0xff]
    %v1616 = vld [vmem:[%s1584 + $0xf8] sm:$0xff]
    %v1617 = vld [vmem:[%s1584 + $0x100] sm:$0xff]
    %v1618 = vld [vmem:[%s1584 + $0x108] sm:$0xff]
    %v1619 = vld [vmem:[%s1584 + $0x110] sm:$0xff]
    %v1620 = vld [vmem:[%s1584 + $0x118] sm:$0xff]
    %v1621 = vld [vmem:[%s1584 + $0x120] sm:$0xff]
    %v1622 = vld [vmem:[%s1584 + $0x128] sm:$0xff]
    %v1623 = vld [vmem:[%s1584 + $0x130] sm:$0xff]
    %v1624 = vld [vmem:[%s1584 + $0x138] sm:$0xff]
    %v1625 = vld [vmem:[%s1584 + $0x140] sm:$0xff]
    %v1626 = vld [vmem:[%s1584 + $0x148] sm:$0xff]
    %v1627 = vld [vmem:[%s1584 + $0x150] sm:$0x3f]
    %v1628 = vld [vmem:[%s1584 + $0x158] sm:$0x3f]
    %v1629 = vrot.slane %v1041, 2
    %v1630 = vrot.slane %v1047, 2
    %v1631 = vsel %vm513, %v1629, %v1630
    %v1632 = vrot.slane %v1043, 2
    %v1633 = vrot.slane %v1049, 2
    %v1634 = vsel %vm513, %v1632, %v1633
    %v1637 = vsel %vm1235, %v1634, 0
    %v1639 = vsel %vm1235, %v1633, 0
    %v1642 = vsel %vm513, %v1627, 0
    %v1645 = vsel %vm513, %v1628, 0
    %1647 = vmatprep.subr.mxu0 %v1586
    %1648 = vmatpush1.msra.mxu0 %v1585
    %1649 = vmatprep.subr.mxu0 %v1588
    %1650 = vmatpush1.msra.mxu0 %v1587
    %1651 = vmatprep.subr.mxu0 %v1590
    %1652 = vmatpush1.msra.mxu0 %v1589
    %1653 = vmatprep.subr.mxu0 %v1592
    %1654 = vmatpush1.msra.mxu0 %v1591
    %1655 = vmatprep.subr.mxu0 %v1594
    %1656 = vmatpush1.msra.mxu0 %v1593
    %1657 = vmatprep.subr.mxu0 %v1596
    %1658 = vmatpush1.msra.mxu0 %v1595
    %1659 = vmatprep.subr.mxu0 %v1598
    %1660 = vmatpush1.msra.mxu0 %v1597
    %1661 = vmatprep.subr.mxu0 %v1600
    %1662 = vmatpush1.msra.mxu0 %v1599
    %1663 = vmatprep.subr.mxu0 %v1602
    %1664 = vmatpush1.msra.mxu0 %v1601
    %1665 = vmatprep.subr.mxu0 %v1604
    %1666 = vmatpush1.msra.mxu0 %v1603
    %1667 = vmatprep.subr.mxu0 %v1606
    %1668 = vmatpush1.msra.mxu0 %v1605
    %1669 = vmatprep.subr.mxu0 %v1608
    %1670 = vmatpush1.msra.mxu0 %v1607
    %1671 = vmatprep.subr.mxu0 %v1610
    %1672 = vmatpush1.msra.mxu0 %v1609
    %1673 = vmatprep.subr.mxu0 %v1612
    %1674 = vmatpush1.msra.mxu0 %v1611
    %1675 = vmatprep.subr.mxu0 %v1614
    %1676 = vmatpush1.msra.mxu0 %v1613
    %1677 = vmatprep.subr.mxu0 %v1616
    %1678 = vmatpush1.msra.mxu0 %v1615
    %1679 = vmatprep.subr.mxu0 %v1618
    %1680 = vmatpush1.msra.mxu0 %v1617
    %1681 = vmatprep.subr.mxu0 %v1620
    %1682 = vmatpush1.msra.mxu0 %v1619
    %1683 = vmatprep.subr.mxu0 %v1622
    %1684 = vmatpush1.msra.mxu0 %v1621
    %1685 = vmatprep.subr.mxu0 %v1624
    %1686 = vmatpush1.msra.mxu0 %v1623
    %1687 = vmatprep.subr.mxu0 %v1626
    %1688 = vmatpush1.msra.mxu0 %v1625
    %1689 = vmatprep.subr.mxu0 %v1645
    %1690 = vmatpush1.msra.mxu0 %v1642
    %1691 = vmatprep.subr.mxu0 0.0
    %1692 = vmatpush1.msra.mxu0 0.0
    %1693 = vmatprep.subr.mxu0 0.0
    %1694 = vmatpush1.msra.mxu0 0.0
    %1695 = vmatprep.subr.mxu0 0.0
    %1696 = vmatpush1.msra.mxu0 0.0
    %1697 = vmatprep.subr.mxu0 0.0
    %1698 = vmatpush1.msra.mxu0 0.0
    %1699 = vmatprep.subr.mxu0 0.0
    %1700 = vmatpush1.msra.mxu0 0.0
    %1701 = vmatprep.subr.mxu0 0.0
    %1702 = vmatpush1.msra.mxu0 0.0
    %1703 = vmatprep.subr.mxu0 0.0
    %1704 = vmatpush1.msra.mxu0 0.0
    %1705 = vmatprep.subr.mxu0 0.0
    %1706 = vmatpush1.msra.mxu0 0.0
    %1707 = vmatprep.subr.mxu0 0.0
    %1708 = vmatpush1.msra.mxu0 0.0
    %1709 = vmatprep.subr.mxu0 0.0
    %1710 = vmatpush1.msra.mxu0 0.0
    %1711 = vmatprep.mubr.f32.mxu0 %v1637
    %1712 = vmatmul.mubr.f32.gmra.mrb[0].mxu0 %v1631
    %v1713 = vpop.f32.mrb[0].mxu0
    %v1714 = vadd.f32 0.0, %v1713
    %v1715 = vpop.f32.mrb[0].mxu0
    %v1716 = vadd.f32 0.0, %v1715
    %1717 = vmatprep.mubr.f32.mxu0 %v1639
    %1718 = vmatmul.mubr.f32.gmra.mrb[0].mxu0 %v1630
    %v1719 = vpop.f32.mrb[0].mxu0
    %v1720 = vadd.f32 0.0, %v1719
    %v1721 = vpop.f32.mrb[0].mxu0
    %v1722 = vadd.f32 0.0, %v1721
    %1723 = vdwg.mxu0
    %v1724 = vrot.slane %v1124, 2
    %v1725 = vrot.slane %v1130, 2
    %v1726 = vsel %vm513, %v1724, %v1725
    %v1727 = vrot.slane %v1126, 2
    %v1728 = vrot.slane %v1132, 2
    %v1729 = vsel %vm513, %v1727, %v1728
    %v1732 = vsel %vm1235, %v1729, 0
    %v1734 = vsel %vm1235, %v1728, 0
    %1736 = vmatprep.subr.mxu0 %v1586
    %1737 = vmatpush1.msra.mxu0 %v1585
    %1738 = vmatprep.subr.mxu0 %v1588
    %1739 = vmatpush1.msra.mxu0 %v1587
    %1740 = vmatprep.subr.mxu0 %v1590
    %1741 = vmatpush1.msra.mxu0 %v1589
    %1742 = vmatprep.subr.mxu0 %v1592
    %1743 = vmatpush1.msra.mxu0 %v1591
    %1744 = vmatprep.subr.mxu0 %v1594
    %1745 = vmatpush1.msra.mxu0 %v1593
    %1746 = vmatprep.subr.mxu0 %v1596
    %1747 = vmatpush1.msra.mxu0 %v1595
    %1748 = vmatprep.subr.mxu0 %v1598
    %1749 = vmatpush1.msra.mxu0 %v1597
    %1750 = vmatprep.subr.mxu0 %v1600
    %1751 = vmatpush1.msra.mxu0 %v1599
    %1752 = vmatprep.subr.mxu0 %v1602
    %1753 = vmatpush1.msra.mxu0 %v1601
    %1754 = vmatprep.subr.mxu0 %v1604
    %1755 = vmatpush1.msra.mxu0 %v1603
    %1756 = vmatprep.subr.mxu0 %v1606
    %1757 = vmatpush1.msra.mxu0 %v1605
    %1758 = vmatprep.subr.mxu0 %v1608
    %1759 = vmatpush1.msra.mxu0 %v1607
    %1760 = vmatprep.subr.mxu0 %v1610
    %1761 = vmatpush1.msra.mxu0 %v1609
    %1762 = vmatprep.subr.mxu0 %v1612
    %1763 = vmatpush1.msra.mxu0 %v1611
    %1764 = vmatprep.subr.mxu0 %v1614
    %1765 = vmatpush1.msra.mxu0 %v1613
    %1766 = vmatprep.subr.mxu0 %v1616
    %1767 = vmatpush1.msra.mxu0 %v1615
    %1768 = vmatprep.subr.mxu0 %v1618
    %1769 = vmatpush1.msra.mxu0 %v1617
    %1770 = vmatprep.subr.mxu0 %v1620
    %1771 = vmatpush1.msra.mxu0 %v1619
    %1772 = vmatprep.subr.mxu0 %v1622
    %1773 = vmatpush1.msra.mxu0 %v1621
    %1774 = vmatprep.subr.mxu0 %v1624
    %1775 = vmatpush1.msra.mxu0 %v1623
    %1776 = vmatprep.subr.mxu0 %v1626
    %1777 = vmatpush1.msra.mxu0 %v1625
    %1778 = vmatprep.subr.mxu0 %v1645
    %1779 = vmatpush1.msra.mxu0 %v1642
    %1780 = vmatprep.subr.mxu0 0.0
    %1781 = vmatpush1.msra.mxu0 0.0
    %1782 = vmatprep.subr.mxu0 0.0
    %1783 = vmatpush1.msra.mxu0 0.0
    %1784 = vmatprep.subr.mxu0 0.0
    %1785 = vmatpush1.msra.mxu0 0.0
    %1786 = vmatprep.subr.mxu0 0.0
    %1787 = vmatpush1.msra.mxu0 0.0
    %1788 = vmatprep.subr.mxu0 0.0
    %1789 = vmatpush1.msra.mxu0 0.0
    %1790 = vmatprep.subr.mxu0 0.0
    %1791 = vmatpush1.msra.mxu0 0.0
    %1792 = vmatprep.subr.mxu0 0.0
    %1793 = vmatpush1.msra.mxu0 0.0
    %1794 = vmatprep.subr.mxu0 0.0
    %1795 = vmatpush1.msra.mxu0 0.0
    %1796 = vmatprep.subr.mxu0 0.0
    %1797 = vmatpush1.msra.mxu0 0.0
    %1798 = vmatprep.subr.mxu0 0.0
    %1799 = vmatpush1.msra.mxu0 0.0
    %1800 = vmatprep.mubr.f32.mxu0 %v1732
    %1801 = vmatmul.mubr.f32.gmra.mrb[0].mxu0 %v1726
    %v1802 = vpop.f32.mrb[0].mxu0
    %v1803 = vadd.f32 0.0, %v1802
    %v1804 = vpop.f32.mrb[0].mxu0
    %v1805 = vadd.f32 0.0, %v1804
    %1806 = vmatprep.mubr.f32.mxu0 %v1734
    %1807 = vmatmul.mubr.f32.gmra.mrb[0].mxu0 %v1725
    %v1808 = vpop.f32.mrb[0].mxu0
    %v1809 = vadd.f32 0.0, %v1808
    %v1810 = vpop.f32.mrb[0].mxu0
    %v1811 = vadd.f32 0.0, %v1810
    %1812 = vdwg.mxu0
    %v1813 = vadd.f32 %v1493, %v1714
    %v1814 = vadd.f32 %v1495, %v1716
    %v1815 = vadd.f32 %v1499, %v1720
    %v1816 = vadd.f32 %v1501, %v1722
    %v1817 = vadd.f32 %v1574, %v1803
    %v1818 = vadd.f32 %v1576, %v1805
    %v1819 = vadd.f32 %v1580, %v1809
    %v1820 = vadd.f32 %v1582, %v1811
    %s1821 = scalar_lea.vmem [#allocation2], 1056
    %v1822 = vld [vmem:[%s1821] sm:$0xff]
    %v1823 = vld [vmem:[%s1821 + $0x8] sm:$0xff]
    %v1824 = vld [vmem:[%s1821 + $0x10] sm:$0xff]
    %v1825 = vld [vmem:[%s1821 + $0x18] sm:$0xff]
    %v1826 = vld [vmem:[%s1821 + $0x20] sm:$0xff]
    %v1827 = vld [vmem:[%s1821 + $0x28] sm:$0xff]
    %v1828 = vld [vmem:[%s1821 + $0x30] sm:$0xff]
    %v1829 = vld [vmem:[%s1821 + $0x38] sm:$0xff]
    %v1830 = vld [vmem:[%s1821 + $0x40] sm:$0xff]
    %v1831 = vld [vmem:[%s1821 + $0x48] sm:$0xff]
    %v1832 = vld [vmem:[%s1821 + $0x50] sm:$0xff]
    %v1833 = vld [vmem:[%s1821 + $0x58] sm:$0xff]
    %v1834 = vld [vmem:[%s1821 + $0x60] sm:$0xff]
    %v1835 = vld [vmem:[%s1821 + $0x68] sm:$0xff]
    %v1836 = vld [vmem:[%s1821 + $0x70] sm:$0xff]
    %v1837 = vld [vmem:[%s1821 + $0x78] sm:$0xff]
    %v1838 = vld [vmem:[%s1821 + $0x80] sm:$0xff]
    %v1839 = vld [vmem:[%s1821 + $0x88] sm:$0xff]
    %v1840 = vld [vmem:[%s1821 + $0x90] sm:$0xff]
    %v1841 = vld [vmem:[%s1821 + $0x98] sm:$0xff]
    %v1842 = vld [vmem:[%s1821 + $0xa0] sm:$0xff]
    %v1843 = vld [vmem:[%s1821 + $0xa8] sm:$0xff]
    %v1844 = vld [vmem:[%s1821 + $0xb0] sm:$0xff]
    %v1845 = vld [vmem:[%s1821 + $0xb8] sm:$0xff]
    %v1846 = vld [vmem:[%s1821 + $0xc0] sm:$0xff]
    %v1847 = vld [vmem:[%s1821 + $0xc8] sm:$0xff]
    %v1848 = vld [vmem:[%s1821 + $0xd0] sm:$0xff]
    %v1849 = vld [vmem:[%s1821 + $0xd8] sm:$0xff]
    %v1850 = vld [vmem:[%s1821 + $0xe0] sm:$0xff]
    %v1851 = vld [vmem:[%s1821 + $0xe8] sm:$0xff]
    %v1852 = vld [vmem:[%s1821 + $0xf0] sm:$0xff]
    %v1853 = vld [vmem:[%s1821 + $0xf8] sm:$0xff]
    %v1854 = vld [vmem:[%s1821 + $0x100] sm:$0xff]
    %v1855 = vld [vmem:[%s1821 + $0x108] sm:$0xff]
    %v1856 = vld [vmem:[%s1821 + $0x110] sm:$0xff]
    %v1857 = vld [vmem:[%s1821 + $0x118] sm:$0xff]
    %v1858 = vld [vmem:[%s1821 + $0x120] sm:$0xff]
    %v1859 = vld [vmem:[%s1821 + $0x128] sm:$0xff]
    %v1860 = vld [vmem:[%s1821 + $0x130] sm:$0xff]
    %v1861 = vld [vmem:[%s1821 + $0x138] sm:$0xff]
    %v1862 = vld [vmem:[%s1821 + $0x140] sm:$0xff]
    %v1863 = vld [vmem:[%s1821 + $0x148] sm:$0xff]
    %v1864 = vld [vmem:[%s1821 + $0x150] sm:$0x3f]
    %v1865 = vld [vmem:[%s1821 + $0x158] sm:$0x3f]
    %v1866 = vrot.slane %v1041, 3
    %v1867 = vrot.slane %v1047, 3
    %v1868 = vsel %vm967, %v1866, %v1867
    %v1869 = vrot.slane %v1043, 3
    %v1870 = vrot.slane %v1049, 3
    %v1871 = vsel %vm967, %v1869, %v1870
    %v1874 = vsel %vm1235, %v1871, 0
    %v1876 = vsel %vm1235, %v1870, 0
    %v1879 = vsel %vm513, %v1864, 0
    %v1882 = vsel %vm513, %v1865, 0
    %1884 = vmatprep.subr.mxu0 %v1823
    %1885 = vmatpush1.msra.mxu0 %v1822
    %1886 = vmatprep.subr.mxu0 %v1825
    %1887 = vmatpush1.msra.mxu0 %v1824
    %1888 = vmatprep.subr.mxu0 %v1827
    %1889 = vmatpush1.msra.mxu0 %v1826
    %1890 = vmatprep.subr.mxu0 %v1829
    %1891 = vmatpush1.msra.mxu0 %v1828
    %1892 = vmatprep.subr.mxu0 %v1831
    %1893 = vmatpush1.msra.mxu0 %v1830
    %1894 = vmatprep.subr.mxu0 %v1833
    %1895 = vmatpush1.msra.mxu0 %v1832
    %1896 = vmatprep.subr.mxu0 %v1835
    %1897 = vmatpush1.msra.mxu0 %v1834
    %1898 = vmatprep.subr.mxu0 %v1837
    %1899 = vmatpush1.msra.mxu0 %v1836
    %1900 = vmatprep.subr.mxu0 %v1839
    %1901 = vmatpush1.msra.mxu0 %v1838
    %1902 = vmatprep.subr.mxu0 %v1841
    %1903 = vmatpush1.msra.mxu0 %v1840
    %1904 = vmatprep.subr.mxu0 %v1843
    %1905 = vmatpush1.msra.mxu0 %v1842
    %1906 = vmatprep.subr.mxu0 %v1845
    %1907 = vmatpush1.msra.mxu0 %v1844
    %1908 = vmatprep.subr.mxu0 %v1847
    %1909 = vmatpush1.msra.mxu0 %v1846
    %1910 = vmatprep.subr.mxu0 %v1849
    %1911 = vmatpush1.msra.mxu0 %v1848
    %1912 = vmatprep.subr.mxu0 %v1851
    %1913 = vmatpush1.msra.mxu0 %v1850
    %1914 = vmatprep.subr.mxu0 %v1853
    %1915 = vmatpush1.msra.mxu0 %v1852
    %1916 = vmatprep.subr.mxu0 %v1855
    %1917 = vmatpush1.msra.mxu0 %v1854
    %1918 = vmatprep.subr.mxu0 %v1857
    %1919 = vmatpush1.msra.mxu0 %v1856
    %1920 = vmatprep.subr.mxu0 %v1859
    %1921 = vmatpush1.msra.mxu0 %v1858
    %1922 = vmatprep.subr.mxu0 %v1861
    %1923 = vmatpush1.msra.mxu0 %v1860
    %1924 = vmatprep.subr.mxu0 %v1863
    %1925 = vmatpush1.msra.mxu0 %v1862
    %1926 = vmatprep.subr.mxu0 %v1882
    %1927 = vmatpush1.msra.mxu0 %v1879
    %1928 = vmatprep.subr.mxu0 0.0
    %1929 = vmatpush1.msra.mxu0 0.0
    %1930 = vmatprep.subr.mxu0 0.0
    %1931 = vmatpush1.msra.mxu0 0.0
    %1932 = vmatprep.subr.mxu0 0.0
    %1933 = vmatpush1.msra.mxu0 0.0
    %1934 = vmatprep.subr.mxu0 0.0
    %1935 = vmatpush1.msra.mxu0 0.0
    %1936 = vmatprep.subr.mxu0 0.0
    %1937 = vmatpush1.msra.mxu0 0.0
    %1938 = vmatprep.subr.mxu0 0.0
    %1939 = vmatpush1.msra.mxu0 0.0
    %1940 = vmatprep.subr.mxu0 0.0
    %1941 = vmatpush1.msra.mxu0 0.0
    %1942 = vmatprep.subr.mxu0 0.0
    %1943 = vmatpush1.msra.mxu0 0.0
    %1944 = vmatprep.subr.mxu0 0.0
    %1945 = vmatpush1.msra.mxu0 0.0
    %1946 = vmatprep.subr.mxu0 0.0
    %1947 = vmatpush1.msra.mxu0 0.0
    %1948 = vmatprep.mubr.f32.mxu0 %v1874
    %1949 = vmatmul.mubr.f32.gmra.mrb[0].mxu0 %v1868
    %v1950 = vpop.f32.mrb[0].mxu0
    %v1951 = vadd.f32 0.0, %v1950
    %v1952 = vpop.f32.mrb[0].mxu0
    %v1953 = vadd.f32 0.0, %v1952
    %1954 = vmatprep.mubr.f32.mxu0 %v1876
    %1955 = vmatmul.mubr.f32.gmra.mrb[0].mxu0 %v1867
    %v1956 = vpop.f32.mrb[0].mxu0
    %v1957 = vadd.f32 0.0, %v1956
    %v1958 = vpop.f32.mrb[0].mxu0
    %v1959 = vadd.f32 0.0, %v1958
    %1960 = vdwg.mxu0
    %v1961 = vrot.slane %v1124, 3
    %v1962 = vrot.slane %v1130, 3
    %v1963 = vsel %vm967, %v1961, %v1962
    %v1964 = vrot.slane %v1126, 3
    %v1965 = vrot.slane %v1132, 3
    %v1966 = vsel %vm967, %v1964, %v1965
    %v1969 = vsel %vm1235, %v1966, 0
    %v1971 = vsel %vm1235, %v1965, 0
    %1973 = vmatprep.subr.mxu0 %v1823
    %1974 = vmatpush1.msra.mxu0 %v1822
    %1975 = vmatprep.subr.mxu0 %v1825
    %1976 = vmatpush1.msra.mxu0 %v1824
    %1977 = vmatprep.subr.mxu0 %v1827
    %1978 = vmatpush1.msra.mxu0 %v1826
    %1979 = vmatprep.subr.mxu0 %v1829
    %1980 = vmatpush1.msra.mxu0 %v1828
    %1981 = vmatprep.subr.mxu0 %v1831
    %1982 = vmatpush1.msra.mxu0 %v1830
    %1983 = vmatprep.subr.mxu0 %v1833
    %1984 = vmatpush1.msra.mxu0 %v1832
    %1985 = vmatprep.subr.mxu0 %v1835
    %1986 = vmatpush1.msra.mxu0 %v1834
    %1987 = vmatprep.subr.mxu0 %v1837
    %1988 = vmatpush1.msra.mxu0 %v1836
    %1989 = vmatprep.subr.mxu0 %v1839
    %1990 = vmatpush1.msra.mxu0 %v1838
    %1991 = vmatprep.subr.mxu0 %v1841
    %1992 = vmatpush1.msra.mxu0 %v1840
    %1993 = vmatprep.subr.mxu0 %v1843
    %1994 = vmatpush1.msra.mxu0 %v1842
    %1995 = vmatprep.subr.mxu0 %v1845
    %1996 = vmatpush1.msra.mxu0 %v1844
    %1997 = vmatprep.subr.mxu0 %v1847
    %1998 = vmatpush1.msra.mxu0 %v1846
    %1999 = vmatprep.subr.mxu0 %v1849
    %2000 = vmatpush1.msra.mxu0 %v1848
    %2001 = vmatprep.subr.mxu0 %v1851
    %2002 = vmatpush1.msra.mxu0 %v1850
    %2003 = vmatprep.subr.mxu0 %v1853
    %2004 = vmatpush1.msra.mxu0 %v1852
    %2005 = vmatprep.subr.mxu0 %v1855
    %2006 = vmatpush1.msra.mxu0 %v1854
    %2007 = vmatprep.subr.mxu0 %v1857
    %2008 = vmatpush1.msra.mxu0 %v1856
    %2009 = vmatprep.subr.mxu0 %v1859
    %2010 = vmatpush1.msra.mxu0 %v1858
    %2011 = vmatprep.subr.mxu0 %v1861
    %2012 = vmatpush1.msra.mxu0 %v1860
    %2013 = vmatprep.subr.mxu0 %v1863
    %2014 = vmatpush1.msra.mxu0 %v1862
    %2015 = vmatprep.subr.mxu0 %v1882
    %2016 = vmatpush1.msra.mxu0 %v1879
    %2017 = vmatprep.subr.mxu0 0.0
    %2018 = vmatpush1.msra.mxu0 0.0
    %2019 = vmatprep.subr.mxu0 0.0
    %2020 = vmatpush1.msra.mxu0 0.0
    %2021 = vmatprep.subr.mxu0 0.0
    %2022 = vmatpush1.msra.mxu0 0.0
    %2023 = vmatprep.subr.mxu0 0.0
    %2024 = vmatpush1.msra.mxu0 0.0
    %2025 = vmatprep.subr.mxu0 0.0
    %2026 = vmatpush1.msra.mxu0 0.0
    %2027 = vmatprep.subr.mxu0 0.0
    %2028 = vmatpush1.msra.mxu0 0.0
    %2029 = vmatprep.subr.mxu0 0.0
    %2030 = vmatpush1.msra.mxu0 0.0
    %2031 = vmatprep.subr.mxu0 0.0
    %2032 = vmatpush1.msra.mxu0 0.0
    %2033 = vmatprep.subr.mxu0 0.0
    %2034 = vmatpush1.msra.mxu0 0.0
    %2035 = vmatprep.subr.mxu0 0.0
    %2036 = vmatpush1.msra.mxu0 0.0
    %2037 = vmatprep.mubr.f32.mxu0 %v1969
    %2038 = vmatmul.mubr.f32.gmra.mrb[0].mxu0 %v1963
    %v2039 = vpop.f32.mrb[0].mxu0
    %v2040 = vadd.f32 0.0, %v2039
    %v2041 = vpop.f32.mrb[0].mxu0
    %v2042 = vadd.f32 0.0, %v2041
    %2043 = vmatprep.mubr.f32.mxu0 %v1971
    %2044 = vmatmul.mubr.f32.gmra.mrb[0].mxu0 %v1962
    %v2045 = vpop.f32.mrb[0].mxu0
    %v2046 = vadd.f32 0.0, %v2045
    %v2047 = vpop.f32.mrb[0].mxu0
    %v2048 = vadd.f32 0.0, %v2047
    %2049 = vdwg.mxu0
    %v2050 = vadd.f32 %v1813, %v1951
    %v2051 = vadd.f32 %v1814, %v1953
    %v2052 = vadd.f32 %v1815, %v1957
    %v2053 = vadd.f32 %v1816, %v1959
    %v2054 = vadd.f32 %v1817, %v2040
    %v2055 = vadd.f32 %v1818, %v2042
    %v2056 = vadd.f32 %v1819, %v2046
    %v2057 = vadd.f32 %v1820, %v2048
    %s2058 = scalar_lea.vmem [#allocation2], 1408
    %v2059 = vld [vmem:[%s2058] sm:$0xff]
    %v2060 = vld [vmem:[%s2058 + $0x8] sm:$0xff]
    %v2061 = vld [vmem:[%s2058 + $0x10] sm:$0xff]
    %v2062 = vld [vmem:[%s2058 + $0x18] sm:$0xff]
    %v2063 = vld [vmem:[%s2058 + $0x20] sm:$0xff]
    %v2064 = vld [vmem:[%s2058 + $0x28] sm:$0xff]
    %v2065 = vld [vmem:[%s2058 + $0x30] sm:$0xff]
    %v2066 = vld [vmem:[%s2058 + $0x38] sm:$0xff]
    %v2067 = vld [vmem:[%s2058 + $0x40] sm:$0xff]
    %v2068 = vld [vmem:[%s2058 + $0x48] sm:$0xff]
    %v2069 = vld [vmem:[%s2058 + $0x50] sm:$0xff]
    %v2070 = vld [vmem:[%s2058 + $0x58] sm:$0xff]
    %v2071 = vld [vmem:[%s2058 + $0x60] sm:$0xff]
    %v2072 = vld [vmem:[%s2058 + $0x68] sm:$0xff]
    %v2073 = vld [vmem:[%s2058 + $0x70] sm:$0xff]
    %v2074 = vld [vmem:[%s2058 + $0x78] sm:$0xff]
    %v2075 = vld [vmem:[%s2058 + $0x80] sm:$0xff]
    %v2076 = vld [vmem:[%s2058 + $0x88] sm:$0xff]
    %v2077 = vld [vmem:[%s2058 + $0x90] sm:$0xff]
    %v2078 = vld [vmem:[%s2058 + $0x98] sm:$0xff]
    %v2079 = vld [vmem:[%s2058 + $0xa0] sm:$0xff]
    %v2080 = vld [vmem:[%s2058 + $0xa8] sm:$0xff]
    %v2081 = vld [vmem:[%s2058 + $0xb0] sm:$0xff]
    %v2082 = vld [vmem:[%s2058 + $0xb8] sm:$0xff]
    %v2083 = vld [vmem:[%s2058 + $0xc0] sm:$0xff]
    %v2084 = vld [vmem:[%s2058 + $0xc8] sm:$0xff]
    %v2085 = vld [vmem:[%s2058 + $0xd0] sm:$0xff]
    %v2086 = vld [vmem:[%s2058 + $0xd8] sm:$0xff]
    %v2087 = vld [vmem:[%s2058 + $0xe0] sm:$0xff]
    %v2088 = vld [vmem:[%s2058 + $0xe8] sm:$0xff]
    %v2089 = vld [vmem:[%s2058 + $0xf0] sm:$0xff]
    %v2090 = vld [vmem:[%s2058 + $0xf8] sm:$0xff]
    %v2091 = vld [vmem:[%s2058 + $0x100] sm:$0xff]
    %v2092 = vld [vmem:[%s2058 + $0x108] sm:$0xff]
    %v2093 = vld [vmem:[%s2058 + $0x110] sm:$0xff]
    %v2094 = vld [vmem:[%s2058 + $0x118] sm:$0xff]
    %v2095 = vld [vmem:[%s2058 + $0x120] sm:$0xff]
    %v2096 = vld [vmem:[%s2058 + $0x128] sm:$0xff]
    %v2097 = vld [vmem:[%s2058 + $0x130] sm:$0xff]
    %v2098 = vld [vmem:[%s2058 + $0x138] sm:$0xff]
    %v2099 = vld [vmem:[%s2058 + $0x140] sm:$0xff]
    %v2100 = vld [vmem:[%s2058 + $0x148] sm:$0xff]
    %v2101 = vld [vmem:[%s2058 + $0x150] sm:$0x3f]
    %v2102 = vld [vmem:[%s2058 + $0x158] sm:$0x3f]
    %vm2103 = vcmask 1043456
    %v2104 = vrot.slane %v1041, 4
    %v2105 = vrot.slane %v1047, 4
    %v2106 = vsel %vm2103, %v2104, %v2105
    %v2107 = vrot.slane %v1043, 4
    %v2108 = vrot.slane %v1049, 4
    %v2109 = vsel %vm2103, %v2107, %v2108
    %v2112 = vsel %vm1235, %v2109, 0
    %v2114 = vsel %vm1235, %v2108, 0
    %v2117 = vsel %vm513, %v2101, 0
    %v2120 = vsel %vm513, %v2102, 0
    %2122 = vmatprep.subr.mxu0 %v2060
    %2123 = vmatpush1.msra.mxu0 %v2059
    %2124 = vmatprep.subr.mxu0 %v2062
    %2125 = vmatpush1.msra.mxu0 %v2061
    %2126 = vmatprep.subr.mxu0 %v2064
    %2127 = vmatpush1.msra.mxu0 %v2063
    %2128 = vmatprep.subr.mxu0 %v2066
    %2129 = vmatpush1.msra.mxu0 %v2065
    %2130 = vmatprep.subr.mxu0 %v2068
    %2131 = vmatpush1.msra.mxu0 %v2067
    %2132 = vmatprep.subr.mxu0 %v2070
    %2133 = vmatpush1.msra.mxu0 %v2069
    %2134 = vmatprep.subr.mxu0 %v2072
    %2135 = vmatpush1.msra.mxu0 %v2071
    %2136 = vmatprep.subr.mxu0 %v2074
    %2137 = vmatpush1.msra.mxu0 %v2073
    %2138 = vmatprep.subr.mxu0 %v2076
    %2139 = vmatpush1.msra.mxu0 %v2075
    %2140 = vmatprep.subr.mxu0 %v2078
    %2141 = vmatpush1.msra.mxu0 %v2077
    %2142 = vmatprep.subr.mxu0 %v2080
    %2143 = vmatpush1.msra.mxu0 %v2079
    %2144 = vmatprep.subr.mxu0 %v2082
    %2145 = vmatpush1.msra.mxu0 %v2081
    %2146 = vmatprep.subr.mxu0 %v2084
    %2147 = vmatpush1.msra.mxu0 %v2083
    %2148 = vmatprep.subr.mxu0 %v2086
    %2149 = vmatpush1.msra.mxu0 %v2085
    %2150 = vmatprep.subr.mxu0 %v2088
    %2151 = vmatpush1.msra.mxu0 %v2087
    %2152 = vmatprep.subr.mxu0 %v2090
    %2153 = vmatpush1.msra.mxu0 %v2089
    %2154 = vmatprep.subr.mxu0 %v2092
    %2155 = vmatpush1.msra.mxu0 %v2091
    %2156 = vmatprep.subr.mxu0 %v2094
    %2157 = vmatpush1.msra.mxu0 %v2093
    %2158 = vmatprep.subr.mxu0 %v2096
    %2159 = vmatpush1.msra.mxu0 %v2095
    %2160 = vmatprep.subr.mxu0 %v2098
    %2161 = vmatpush1.msra.mxu0 %v2097
    %2162 = vmatprep.subr.mxu0 %v2100
    %2163 = vmatpush1.msra.mxu0 %v2099
    %2164 = vmatprep.subr.mxu0 %v2120
    %2165 = vmatpush1.msra.mxu0 %v2117
    %2166 = vmatprep.subr.mxu0 0.0
    %2167 = vmatpush1.msra.mxu0 0.0
    %2168 = vmatprep.subr.mxu0 0.0
    %2169 = vmatpush1.msra.mxu0 0.0
    %2170 = vmatprep.subr.mxu0 0.0
    %2171 = vmatpush1.msra.mxu0 0.0
    %2172 = vmatprep.subr.mxu0 0.0
    %2173 = vmatpush1.msra.mxu0 0.0
    %2174 = vmatprep.subr.mxu0 0.0
    %2175 = vmatpush1.msra.mxu0 0.0
    %2176 = vmatprep.subr.mxu0 0.0
    %2177 = vmatpush1.msra.mxu0 0.0
    %2178 = vmatprep.subr.mxu0 0.0
    %2179 = vmatpush1.msra.mxu0 0.0
    %2180 = vmatprep.subr.mxu0 0.0
    %2181 = vmatpush1.msra.mxu0 0.0
    %2182 = vmatprep.subr.mxu0 0.0
    %2183 = vmatpush1.msra.mxu0 0.0
    %2184 = vmatprep.subr.mxu0 0.0
    %2185 = vmatpush1.msra.mxu0 0.0
    %2186 = vmatprep.mubr.f32.mxu0 %v2112
    %2187 = vmatmul.mubr.f32.gmra.mrb[0].mxu0 %v2106
    %v2188 = vpop.f32.mrb[0].mxu0
    %v2189 = vadd.f32 0.0, %v2188
    %v2190 = vpop.f32.mrb[0].mxu0
    %v2191 = vadd.f32 0.0, %v2190
    %2192 = vmatprep.mubr.f32.mxu0 %v2114
    %2193 = vmatmul.mubr.f32.gmra.mrb[0].mxu0 %v2105
    %v2194 = vpop.f32.mrb[0].mxu0
    %v2195 = vadd.f32 0.0, %v2194
    %v2196 = vpop.f32.mrb[0].mxu0
    %v2197 = vadd.f32 0.0, %v2196
    %2198 = vdwg.mxu0
    %v2199 = vrot.slane %v1124, 4
    %v2200 = vrot.slane %v1130, 4
    %v2201 = vsel %vm2103, %v2199, %v2200
    %v2202 = vrot.slane %v1126, 4
    %v2203 = vrot.slane %v1132, 4
    %v2204 = vsel %vm2103, %v2202, %v2203
    %v2207 = vsel %vm1235, %v2204, 0
    %v2209 = vsel %vm1235, %v2203, 0
    %2211 = vmatprep.subr.mxu0 %v2060
    %2212 = vmatpush1.msra.mxu0 %v2059
    %2213 = vmatprep.subr.mxu0 %v2062
    %2214 = vmatpush1.msra.mxu0 %v2061
    %2215 = vmatprep.subr.mxu0 %v2064
    %2216 = vmatpush1.msra.mxu0 %v2063
    %2217 = vmatprep.subr.mxu0 %v2066
    %2218 = vmatpush1.msra.mxu0 %v2065
    %2219 = vmatprep.subr.mxu0 %v2068
    %2220 = vmatpush1.msra.mxu0 %v2067
    %2221 = vmatprep.subr.mxu0 %v2070
    %2222 = vmatpush1.msra.mxu0 %v2069
    %2223 = vmatprep.subr.mxu0 %v2072
    %2224 = vmatpush1.msra.mxu0 %v2071
    %2225 = vmatprep.subr.mxu0 %v2074
    %2226 = vmatpush1.msra.mxu0 %v2073
    %2227 = vmatprep.subr.mxu0 %v2076
    %2228 = vmatpush1.msra.mxu0 %v2075
    %2229 = vmatprep.subr.mxu0 %v2078
    %2230 = vmatpush1.msra.mxu0 %v2077
    %2231 = vmatprep.subr.mxu0 %v2080
    %2232 = vmatpush1.msra.mxu0 %v2079
    %2233 = vmatprep.subr.mxu0 %v2082
    %2234 = vmatpush1.msra.mxu0 %v2081
    %2235 = vmatprep.subr.mxu0 %v2084
    %2236 = vmatpush1.msra.mxu0 %v2083
    %2237 = vmatprep.subr.mxu0 %v2086
    %2238 = vmatpush1.msra.mxu0 %v2085
    %2239 = vmatprep.subr.mxu0 %v2088
    %2240 = vmatpush1.msra.mxu0 %v2087
    %2241 = vmatprep.subr.mxu0 %v2090
    %2242 = vmatpush1.msra.mxu0 %v2089
    %2243 = vmatprep.subr.mxu0 %v2092
    %2244 = vmatpush1.msra.mxu0 %v2091
    %2245 = vmatprep.subr.mxu0 %v2094
    %2246 = vmatpush1.msra.mxu0 %v2093
    %2247 = vmatprep.subr.mxu0 %v2096
    %2248 = vmatpush1.msra.mxu0 %v2095
    %2249 = vmatprep.subr.mxu0 %v2098
    %2250 = vmatpush1.msra.mxu0 %v2097
    %2251 = vmatprep.subr.mxu0 %v2100
    %2252 = vmatpush1.msra.mxu0 %v2099
    %2253 = vmatprep.subr.mxu0 %v2120
    %2254 = vmatpush1.msra.mxu0 %v2117
    %2255 = vmatprep.subr.mxu0 0.0
    %2256 = vmatpush1.msra.mxu0 0.0
    %2257 = vmatprep.subr.mxu0 0.0
    %2258 = vmatpush1.msra.mxu0 0.0
    %2259 = vmatprep.subr.mxu0 0.0
    %2260 = vmatpush1.msra.mxu0 0.0
    %2261 = vmatprep.subr.mxu0 0.0
    %2262 = vmatpush1.msra.mxu0 0.0
    %2263 = vmatprep.subr.mxu0 0.0
    %2264 = vmatpush1.msra.mxu0 0.0
    %2265 = vmatprep.subr.mxu0 0.0
    %2266 = vmatpush1.msra.mxu0 0.0
    %2267 = vmatprep.subr.mxu0 0.0
    %2268 = vmatpush1.msra.mxu0 0.0
    %2269 = vmatprep.subr.mxu0 0.0
    %2270 = vmatpush1.msra.mxu0 0.0
    %2271 = vmatprep.subr.mxu0 0.0
    %2272 = vmatpush1.msra.mxu0 0.0
    %2273 = vmatprep.subr.mxu0 0.0
    %2274 = vmatpush1.msra.mxu0 0.0
    %2275 = vmatprep.mubr.f32.mxu0 %v2207
    %2276 = vmatmul.mubr.f32.gmra.mrb[0].mxu0 %v2201
    %v2277 = vpop.f32.mrb[0].mxu0
    %v2278 = vadd.f32 0.0, %v2277
    %v2279 = vpop.f32.mrb[0].mxu0
    %v2280 = vadd.f32 0.0, %v2279
    %2281 = vmatprep.mubr.f32.mxu0 %v2209
    %2282 = vmatmul.mubr.f32.gmra.mrb[0].mxu0 %v2200
    %v2283 = vpop.f32.mrb[0].mxu0
    %v2284 = vadd.f32 0.0, %v2283
    %v2285 = vpop.f32.mrb[0].mxu0
    %v2286 = vadd.f32 0.0, %v2285
    %2287 = vdwg.mxu0
    %v2288 = vadd.f32 %v2050, %v2189
    %v2289 = vadd.f32 %v2051, %v2191
    %v2290 = vadd.f32 %v2052, %v2195
    %v2291 = vadd.f32 %v2053, %v2197
    %v2292 = vadd.f32 %v2054, %v2278
    %v2293 = vadd.f32 %v2055, %v2280
    %v2294 = vadd.f32 %v2056, %v2284
    %v2295 = vadd.f32 %v2057, %v2286
    %v2296 = vld [vmem:[%s4] sm:$0x3]
    %v2298 = vlaneseq
    %v2299 = vshrl.u32 %v2298, 7
    %v2300 = vsub.s32 0, %v2299
    %v2301 = vrot.slane %v2296, %v2300
    %v2302 = vlaneseq
    %v2303 = vshrl.u32 %v2302, 7
    %v2304 = vsub.s32 1, %v2303
    %v2305 = vrot.slane %v2296, %v2304
    %v2308 = vadd.f32 %v2288, %v2301
    %v2309 = vadd.f32 %v2289, %v2305
    %v2310 = vadd.f32 %v2290, %v2301
    %v2311 = vadd.f32 %v2291, %v2305
    %v2312 = vadd.f32 %v2292, %v2301
    %v2313 = vadd.f32 %v2293, %v2305
    %v2314 = vadd.f32 %v2294, %v2301
    %v2315 = vadd.f32 %v2295, %v2305
    %v2316 = vmax.f32 %v2308, 0.0
    %v2317 = vmax.f32 %v2309, 0.0
    %v2318 = vmax.f32 %v2310, 0.0
    %v2319 = vmax.f32 %v2311, 0.0
    %v2320 = vmax.f32 %v2312, 0.0
    %v2321 = vmax.f32 %v2313, 0.0
    %v2322 = vmax.f32 %v2314, 0.0
    %v2323 = vmax.f32 %v2315, 0.0
    %v2332 = vrot.slane %v2316, 1
    %v2333 = vrot.slane %v2318, 1
    %v2334 = vsel %vm96, %v2332, %v2333
    %v2335 = vrot.slane %v2317, 1
    %v2336 = vrot.slane %v2319, 1
    %v2337 = vsel %vm96, %v2335, %v2336
    %v2338 = vrot.slane %v2320, 1
    %v2339 = vrot.slane %v2322, 1
    %v2340 = vsel %vm96, %v2338, %v2339
    %v2341 = vrot.slane %v2321, 1
    %v2342 = vrot.slane %v2323, 1
    %v2343 = vsel %vm96, %v2341, %v2342
    %v2352 = vmax.f32 %v2316, %v2334
    %v2353 = vmax.f32 %v2317, %v2337
    %v2354 = vmax.f32 %v2318, %v2333
    %v2355 = vmax.f32 %v2319, %v2336
    %v2356 = vmax.f32 %v2320, %v2340
    %v2357 = vmax.f32 %v2321, %v2343
    %v2358 = vmax.f32 %v2322, %v2339
    %v2359 = vmax.f32 %v2323, %v2342
    %2368 = vrot.lane.b32.xlu0 %v2352, 112
    %v2369 = vpop.permute.xlu0 %2368
    %2370 = vrot.lane.b32.xlu0 %v2353, 112
    %v2371 = vpop.permute.xlu0 %2370
    %2372 = vrot.lane.b32.xlu0 %v2354, 112
    %v2373 = vpop.permute.xlu0 %2372
    %2374 = vrot.lane.b32.xlu0 %v2355, 112
    %v2375 = vpop.permute.xlu0 %2374
    %2376 = vrot.lane.b32.xlu0 %v2356, 112
    %v2377 = vpop.permute.xlu0 %2376
    %2378 = vrot.lane.b32.xlu0 %v2357, 112
    %v2379 = vpop.permute.xlu0 %2378
    %2380 = vrot.lane.b32.xlu0 %v2358, 112
    %v2381 = vpop.permute.xlu0 %2380
    %2382 = vrot.lane.b32.xlu0 %v2359, 112
    %v2383 = vpop.permute.xlu0 %2382
    %vm2384 = vcmask 916480
    %v2385 = vsel %vm2384, %v2369, %v2371
    %v2386 = vsel %vm2384, %v2373, %v2375
    %v2387 = vsel %vm2384, %v2377, %v2379
    %v2388 = vsel %vm2384, %v2381, %v2383
    %v2397 = vmax.f32 %v2352, %v2385
    %v2398 = vmax.f32 %v2353, %v2371
    %v2399 = vmax.f32 %v2354, %v2386
    %v2400 = vmax.f32 %v2355, %v2375
    %v2401 = vmax.f32 %v2356, %v2387
    %v2402 = vmax.f32 %v2357, %v2379
    %v2403 = vmax.f32 %v2358, %v2388
    %v2404 = vmax.f32 %v2359, %v2383
    %vm2405 = vcmask 80896
    %v2406 = vsel %vm2405, %v958, 0
    %vm2408 = vcmask 1041408
    %v2410 = vsel %vm2408, %v2399, 0
    %v2413 = vsel %vm2408, %v2400, 0
    %2415 = vmatprep.subr.mxu0 %v2398
    %2416 = vmatpush1.msra.mxu0 %v2397
    %2417 = vmatprep.subr.mxu0 %v2413
    %2418 = vmatpush1.msra.mxu0 %v2410
    %2419 = vmatprep.subr.mxu0 0.0
    %2420 = vmatpush1.msra.mxu0 0.0
    %2421 = vmatprep.subr.mxu0 0.0
    %2422 = vmatpush1.msra.mxu0 0.0
    %2423 = vmatprep.subr.mxu0 0.0
    %2424 = vmatpush1.msra.mxu0 0.0
    %2425 = vmatprep.subr.mxu0 0.0
    %2426 = vmatpush1.msra.mxu0 0.0
    %2427 = vmatprep.subr.mxu0 0.0
    %2428 = vmatpush1.msra.mxu0 0.0
    %2429 = vmatprep.subr.mxu0 0.0
    %2430 = vmatpush1.msra.mxu0 0.0
    %2431 = vmatprep.subr.mxu0 0.0
    %2432 = vmatpush1.msra.mxu0 0.0
    %2433 = vmatprep.subr.mxu0 0.0
    %2434 = vmatpush1.msra.mxu0 0.0
    %2435 = vmatprep.subr.mxu0 0.0
    %2436 = vmatpush1.msra.mxu0 0.0
    %2437 = vmatprep.subr.mxu0 0.0
    %2438 = vmatpush1.msra.mxu0 0.0
    %2439 = vmatprep.subr.mxu0 0.0
    %2440 = vmatpush1.msra.mxu0 0.0
    %2441 = vmatprep.subr.mxu0 0.0
    %2442 = vmatpush1.msra.mxu0 0.0
    %2443 = vmatprep.subr.mxu0 0.0
    %2444 = vmatpush1.msra.mxu0 0.0
    %2445 = vmatprep.subr.mxu0 0.0
    %2446 = vmatpush1.msra.mxu0 0.0
    %2447 = vmatprep.subr.mxu0 0.0
    %2448 = vmatpush1.msra.mxu0 0.0
    %2449 = vmatprep.subr.mxu0 0.0
    %2450 = vmatpush1.msra.mxu0 0.0
    %2451 = vmatprep.subr.mxu0 0.0
    %2452 = vmatpush1.msra.mxu0 0.0
    %2453 = vmatprep.subr.mxu0 0.0
    %2454 = vmatpush1.msra.mxu0 0.0
    %2455 = vmatprep.subr.mxu0 0.0
    %2456 = vmatpush1.msra.mxu0 0.0
    %2457 = vmatprep.subr.mxu0 0.0
    %2458 = vmatpush1.msra.mxu0 0.0
    %2459 = vmatprep.subr.mxu0 0.0
    %2460 = vmatpush1.msra.mxu0 0.0
    %2461 = vmatprep.subr.mxu0 0.0
    %2462 = vmatpush1.msra.mxu0 0.0
    %2463 = vmatprep.subr.mxu0 0.0
    %2464 = vmatpush1.msra.mxu0 0.0
    %2465 = vmatprep.subr.mxu0 0.0
    %2466 = vmatpush1.msra.mxu0 0.0
    %2467 = vmatprep.subr.mxu0 0.0
    %2468 = vmatpush1.msra.mxu0 0.0
    %2469 = vmatprep.subr.mxu0 0.0
    %2470 = vmatpush1.msra.mxu0 0.0
    %2471 = vmatprep.subr.mxu0 0.0
    %2472 = vmatpush1.msra.mxu0 0.0
    %2473 = vmatprep.subr.mxu0 0.0
    %2474 = vmatpush1.msra.mxu0 0.0
    %2475 = vmatprep.subr.mxu0 0.0
    %2476 = vmatpush1.msra.mxu0 0.0
    %2477 = vmatprep.subr.mxu0 0.0
    %2478 = vmatpush1.msra.mxu0 0.0
    %2479 = vmatprep.mubr.f32.mxu0 0.0
    %2480 = vmatmul.mubr.f32.gmra.mrb[0].mxu0 %v2406
    %v2481 = vpop.f32.mrb[0].mxu0
    %v2482 = vadd.f32 0.0, %v2481
    %v2483 = vpop.f32.mrb[0].mxu0
    %v2484 = vadd.f32 0.0, %v2483
    %2485 = vdwg.mxu0
    %v2487 = vsel %vm2408, %v2403, 0
    %v2490 = vsel %vm2408, %v2404, 0
    %2492 = vmatprep.subr.mxu0 %v2402
    %2493 = vmatpush1.msra.mxu0 %v2401
    %2494 = vmatprep.subr.mxu0 %v2490
    %2495 = vmatpush1.msra.mxu0 %v2487
    %2496 = vmatprep.subr.mxu0 0.0
    %2497 = vmatpush1.msra.mxu0 0.0
    %2498 = vmatprep.subr.mxu0 0.0
    %2499 = vmatpush1.msra.mxu0 0.0
    %2500 = vmatprep.subr.mxu0 0.0
    %2501 = vmatpush1.msra.mxu0 0.0
    %2502 = vmatprep.subr.mxu0 0.0
    %2503 = vmatpush1.msra.mxu0 0.0
    %2504 = vmatprep.subr.mxu0 0.0
    %2505 = vmatpush1.msra.mxu0 0.0
    %2506 = vmatprep.subr.mxu0 0.0
    %2507 = vmatpush1.msra.mxu0 0.0
    %2508 = vmatprep.subr.mxu0 0.0
    %2509 = vmatpush1.msra.mxu0 0.0
    %2510 = vmatprep.subr.mxu0 0.0
    %2511 = vmatpush1.msra.mxu0 0.0
    %2512 = vmatprep.subr.mxu0 0.0
    %2513 = vmatpush1.msra.mxu0 0.0
    %2514 = vmatprep.subr.mxu0 0.0
    %2515 = vmatpush1.msra.mxu0 0.0
    %2516 = vmatprep.subr.mxu0 0.0
    %2517 = vmatpush1.msra.mxu0 0.0
    %2518 = vmatprep.subr.mxu0 0.0
    %2519 = vmatpush1.msra.mxu0 0.0
    %2520 = vmatprep.subr.mxu0 0.0
    %2521 = vmatpush1.msra.mxu0 0.0
    %2522 = vmatprep.subr.mxu0 0.0
    %2523 = vmatpush1.msra.mxu0 0.0
    %2524 = vmatprep.subr.mxu0 0.0
    %2525 = vmatpush1.msra.mxu0 0.0
    %2526 = vmatprep.subr.mxu0 0.0
    %2527 = vmatpush1.msra.mxu0 0.0
    %2528 = vmatprep.subr.mxu0 0.0
    %2529 = vmatpush1.msra.mxu0 0.0
    %2530 = vmatprep.subr.mxu0 0.0
    %2531 = vmatpush1.msra.mxu0 0.0
    %2532 = vmatprep.subr.mxu0 0.0
    %2533 = vmatpush1.msra.mxu0 0.0
    %2534 = vmatprep.subr.mxu0 0.0
    %2535 = vmatpush1.msra.mxu0 0.0
    %2536 = vmatprep.subr.mxu0 0.0
    %2537 = vmatpush1.msra.mxu0 0.0
    %2538 = vmatprep.subr.mxu0 0.0
    %2539 = vmatpush1.msra.mxu0 0.0
    %2540 = vmatprep.subr.mxu0 0.0
    %2541 = vmatpush1.msra.mxu0 0.0
    %2542 = vmatprep.subr.mxu0 0.0
    %2543 = vmatpush1.msra.mxu0 0.0
    %2544 = vmatprep.subr.mxu0 0.0
    %2545 = vmatpush1.msra.mxu0 0.0
    %2546 = vmatprep.subr.mxu0 0.0
    %2547 = vmatpush1.msra.mxu0 0.0
    %2548 = vmatprep.subr.mxu0 0.0
    %2549 = vmatpush1.msra.mxu0 0.0
    %2550 = vmatprep.subr.mxu0 0.0
    %2551 = vmatpush1.msra.mxu0 0.0
    %2552 = vmatprep.subr.mxu0 0.0
    %2553 = vmatpush1.msra.mxu0 0.0
    %2554 = vmatprep.subr.mxu0 0.0
    %2555 = vmatpush1.msra.mxu0 0.0
    %2556 = vmatprep.mubr.f32.mxu0 0.0
    %2557 = vmatmul.mubr.f32.gmra.mrb[0].mxu0 %v2406
    %v2558 = vpop.f32.mrb[0].mxu0
    %v2559 = vadd.f32 0.0, %v2558
    %v2560 = vpop.f32.mrb[0].mxu0
    %v2561 = vadd.f32 0.0, %v2560
    %2562 = vdwg.mxu0
    %v2563 = vld [vmem:[#allocation5] sm:$0xff]
    %v2564 = vld [vmem:[#allocation5 + $0x8] sm:$0xff]
    %v2565 = vld [vmem:[#allocation5 + $0x10] sm:$0xff]
    %v2566 = vld [vmem:[#allocation5 + $0x18] sm:$0xff]
    %v2567 = vld [vmem:[#allocation5 + $0x20] sm:$0xff]
    %v2568 = vld [vmem:[#allocation5 + $0x28] sm:$0xff]
    %v2569 = vld [vmem:[#allocation5 + $0x30] sm:$0xff]
    %v2570 = vld [vmem:[#allocation5 + $0x38] sm:$0xff]
    %v2571 = vld [vmem:[#allocation5 + $0x40] sm:$0xff]
    %v2572 = vld [vmem:[#allocation5 + $0x48] sm:$0xff]
    %v2573 = vld [vmem:[#allocation5 + $0x50] sm:$0xff]
    %v2574 = vld [vmem:[#allocation5 + $0x58] sm:$0xff]
    %v2575 = vld [vmem:[#allocation5 + $0x60] sm:$0xff]
    %v2576 = vld [vmem:[#allocation5 + $0x68] sm:$0xff]
    %v2577 = vld [vmem:[#allocation5 + $0x70] sm:$0xff]
    %v2578 = vld [vmem:[#allocation5 + $0x78] sm:$0xff]
    %v2579 = vld [vmem:[#allocation5 + $0x80] sm:$0xff]
    %v2580 = vld [vmem:[#allocation5 + $0x88] sm:$0xff]
    %v2581 = vld [vmem:[#allocation5 + $0x90] sm:$0xff]
    %v2582 = vld [vmem:[#allocation5 + $0x98] sm:$0xff]
    %s2583 = scalar_lea.vmem [#allocation5], 160
    %v2584 = vld [vmem:[%s2583] sm:$0xff]
    %v2585 = vld [vmem:[%s2583 + $0x8] sm:$0xff]
    %v2586 = vld [vmem:[%s2583 + $0x10] sm:$0xff]
    %v2587 = vld [vmem:[%s2583 + $0x18] sm:$0xff]
    %v2588 = vld [vmem:[%s2583 + $0x20] sm:$0xff]
    %v2589 = vld [vmem:[%s2583 + $0x28] sm:$0xff]
    %v2590 = vld [vmem:[%s2583 + $0x30] sm:$0xff]
    %v2591 = vld [vmem:[%s2583 + $0x38] sm:$0xff]
    %v2592 = vld [vmem:[%s2583 + $0x40] sm:$0xff]
    %v2593 = vld [vmem:[%s2583 + $0x48] sm:$0xff]
    %v2594 = vld [vmem:[%s2583 + $0x50] sm:$0xff]
    %v2595 = vld [vmem:[%s2583 + $0x58] sm:$0xff]
    %v2596 = vld [vmem:[%s2583 + $0x60] sm:$0xff]
    %v2597 = vld [vmem:[%s2583 + $0x68] sm:$0xff]
    %v2598 = vld [vmem:[%s2583 + $0x70] sm:$0xff]
    %v2599 = vld [vmem:[%s2583 + $0x78] sm:$0xff]
    %v2600 = vld [vmem:[%s2583 + $0x80] sm:$0xff]
    %v2601 = vld [vmem:[%s2583 + $0x88] sm:$0xff]
    %v2602 = vld [vmem:[%s2583 + $0x90] sm:$0xff]
    %v2603 = vld [vmem:[%s2583 + $0x98] sm:$0xff]
    %v2606 = vrot.slane %v2482, 1
    %v2607 = vrot.slane %v2484, 1
    %v2609 = vsel %vm104, %v2607, 0
    %2611 = vmatprep.subr.mxu0 0.0
    %2612 = vmatpush1.msra.mxu0 %v2584
    %2613 = vmatprep.subr.mxu0 0.0
    %2614 = vmatpush1.msra.mxu0 %v2585
    %2615 = vmatprep.subr.mxu0 0.0
    %2616 = vmatpush1.msra.mxu0 %v2586
    %2617 = vmatprep.subr.mxu0 0.0
    %2618 = vmatpush1.msra.mxu0 %v2587
    %2619 = vmatprep.subr.mxu0 0.0
    %2620 = vmatpush1.msra.mxu0 %v2588
    %2621 = vmatprep.subr.mxu0 0.0
    %2622 = vmatpush1.msra.mxu0 %v2589
    %2623 = vmatprep.subr.mxu0 0.0
    %2624 = vmatpush1.msra.mxu0 %v2590
    %2625 = vmatprep.subr.mxu0 0.0
    %2626 = vmatpush1.msra.mxu0 %v2591
    %2627 = vmatprep.subr.mxu0 0.0
    %2628 = vmatpush1.msra.mxu0 %v2592
    %2629 = vmatprep.subr.mxu0 0.0
    %2630 = vmatpush1.msra.mxu0 %v2593
    %2631 = vmatprep.subr.mxu0 0.0
    %2632 = vmatpush1.msra.mxu0 %v2594
    %2633 = vmatprep.subr.mxu0 0.0
    %2634 = vmatpush1.msra.mxu0 %v2595
    %2635 = vmatprep.subr.mxu0 0.0
    %2636 = vmatpush1.msra.mxu0 %v2596
    %2637 = vmatprep.subr.mxu0 0.0
    %2638 = vmatpush1.msra.mxu0 %v2597
    %2639 = vmatprep.subr.mxu0 0.0
    %2640 = vmatpush1.msra.mxu0 %v2598
    %2641 = vmatprep.subr.mxu0 0.0
    %2642 = vmatpush1.msra.mxu0 %v2599
    %2643 = vmatprep.subr.mxu0 0.0
    %2644 = vmatpush1.msra.mxu0 %v2600
    %2645 = vmatprep.subr.mxu0 0.0
    %2646 = vmatpush1.msra.mxu0 %v2601
    %2647 = vmatprep.subr.mxu0 0.0
    %2648 = vmatpush1.msra.mxu0 %v2602
    %2649 = vmatprep.subr.mxu0 0.0
    %2650 = vmatpush1.msra.mxu0 %v2603
    %2651 = vmatprep.subr.mxu0 0.0
    %2652 = vmatpush1.msra.mxu0 0.0
    %2653 = vmatprep.subr.mxu0 0.0
    %2654 = vmatpush1.msra.mxu0 0.0
    %2655 = vmatprep.subr.mxu0 0.0
    %2656 = vmatpush1.msra.mxu0 0.0
    %2657 = vmatprep.subr.mxu0 0.0
    %2658 = vmatpush1.msra.mxu0 0.0
    %2659 = vmatprep.subr.mxu0 0.0
    %2660 = vmatpush1.msra.mxu0 0.0
    %2661 = vmatprep.subr.mxu0 0.0
    %2662 = vmatpush1.msra.mxu0 0.0
    %2663 = vmatprep.subr.mxu0 0.0
    %2664 = vmatpush1.msra.mxu0 0.0
    %2665 = vmatprep.subr.mxu0 0.0
    %2666 = vmatpush1.msra.mxu0 0.0
    %2667 = vmatprep.subr.mxu0 0.0
    %2668 = vmatpush1.msra.mxu0 0.0
    %2669 = vmatprep.subr.mxu0 0.0
    %2670 = vmatpush1.msra.mxu0 0.0
    %2671 = vmatprep.subr.mxu0 0.0
    %2672 = vmatpush1.msra.mxu0 0.0
    %2673 = vmatprep.subr.mxu0 0.0
    %2674 = vmatpush1.msra.mxu0 0.0
    %2675 = vmatprep.mubr.f32.mxu0 %v2609
    %2676 = vmatmul.mubr.f32.gmra.mrb[0].mxu0 %v2606
    %v2677 = vpop.f32.mrb[0].mxu0
    %v2678 = vadd.f32 0.0, %v2677
    %v2679 = vpop.f32.mrb[0].mxu0
    %2680 = vdwg.mxu0
    %v2683 = vrot.slane %v2559, 1
    %v2684 = vrot.slane %v2561, 1
    %v2686 = vsel %vm104, %v2684, 0
    %2688 = vmatprep.subr.mxu0 0.0
    %2689 = vmatpush1.msra.mxu0 %v2584
    %2690 = vmatprep.subr.mxu0 0.0
    %2691 = vmatpush1.msra.mxu0 %v2585
    %2692 = vmatprep.subr.mxu0 0.0
    %2693 = vmatpush1.msra.mxu0 %v2586
    %2694 = vmatprep.subr.mxu0 0.0
    %2695 = vmatpush1.msra.mxu0 %v2587
    %2696 = vmatprep.subr.mxu0 0.0
    %2697 = vmatpush1.msra.mxu0 %v2588
    %2698 = vmatprep.subr.mxu0 0.0
    %2699 = vmatpush1.msra.mxu0 %v2589
    %2700 = vmatprep.subr.mxu0 0.0
    %2701 = vmatpush1.msra.mxu0 %v2590
    %2702 = vmatprep.subr.mxu0 0.0
    %2703 = vmatpush1.msra.mxu0 %v2591
    %2704 = vmatprep.subr.mxu0 0.0
    %2705 = vmatpush1.msra.mxu0 %v2592
    %2706 = vmatprep.subr.mxu0 0.0
    %2707 = vmatpush1.msra.mxu0 %v2593
    %2708 = vmatprep.subr.mxu0 0.0
    %2709 = vmatpush1.msra.mxu0 %v2594
    %2710 = vmatprep.subr.mxu0 0.0
    %2711 = vmatpush1.msra.mxu0 %v2595
    %2712 = vmatprep.subr.mxu0 0.0
    %2713 = vmatpush1.msra.mxu0 %v2596
    %2714 = vmatprep.subr.mxu0 0.0
    %2715 = vmatpush1.msra.mxu0 %v2597
    %2716 = vmatprep.subr.mxu0 0.0
    %2717 = vmatpush1.msra.mxu0 %v2598
    %2718 = vmatprep.subr.mxu0 0.0
    %2719 = vmatpush1.msra.mxu0 %v2599
    %2720 = vmatprep.subr.mxu0 0.0
    %2721 = vmatpush1.msra.mxu0 %v2600
    %2722 = vmatprep.subr.mxu0 0.0
    %2723 = vmatpush1.msra.mxu0 %v2601
    %2724 = vmatprep.subr.mxu0 0.0
    %2725 = vmatpush1.msra.mxu0 %v2602
    %2726 = vmatprep.subr.mxu0 0.0
    %2727 = vmatpush1.msra.mxu0 %v2603
    %2728 = vmatprep.subr.mxu0 0.0
    %2729 = vmatpush1.msra.mxu0 0.0
    %2730 = vmatprep.subr.mxu0 0.0
    %2731 = vmatpush1.msra.mxu0 0.0
    %2732 = vmatprep.subr.mxu0 0.0
    %2733 = vmatpush1.msra.mxu0 0.0
    %2734 = vmatprep.subr.mxu0 0.0
    %2735 = vmatpush1.msra.mxu0 0.0
    %2736 = vmatprep.subr.mxu0 0.0
    %2737 = vmatpush1.msra.mxu0 0.0
    %2738 = vmatprep.subr.mxu0 0.0
    %2739 = vmatpush1.msra.mxu0 0.0
    %2740 = vmatprep.subr.mxu0 0.0
    %2741 = vmatpush1.msra.mxu0 0.0
    %2742 = vmatprep.subr.mxu0 0.0
    %2743 = vmatpush1.msra.mxu0 0.0
    %2744 = vmatprep.subr.mxu0 0.0
    %2745 = vmatpush1.msra.mxu0 0.0
    %2746 = vmatprep.subr.mxu0 0.0
    %2747 = vmatpush1.msra.mxu0 0.0
    %2748 = vmatprep.subr.mxu0 0.0
    %2749 = vmatpush1.msra.mxu0 0.0
    %2750 = vmatprep.subr.mxu0 0.0
    %2751 = vmatpush1.msra.mxu0 0.0
    %2752 = vmatprep.mubr.f32.mxu0 %v2686
    %2753 = vmatmul.mubr.f32.gmra.mrb[0].mxu0 %v2683
    %v2754 = vpop.f32.mrb[0].mxu0
    %v2755 = vadd.f32 0.0, %v2754
    %v2756 = vpop.f32.mrb[0].mxu0
    %2757 = vdwg.mxu0
    %v2758 = vsel %vm104, %v2484, 0
    %2760 = vmatprep.subr.mxu0 0.0
    %2761 = vmatpush1.msra.mxu0 %v2563
    %2762 = vmatprep.subr.mxu0 0.0
    %2763 = vmatpush1.msra.mxu0 %v2564
    %2764 = vmatprep.subr.mxu0 0.0
    %2765 = vmatpush1.msra.mxu0 %v2565
    %2766 = vmatprep.subr.mxu0 0.0
    %2767 = vmatpush1.msra.mxu0 %v2566
    %2768 = vmatprep.subr.mxu0 0.0
    %2769 = vmatpush1.msra.mxu0 %v2567
    %2770 = vmatprep.subr.mxu0 0.0
    %2771 = vmatpush1.msra.mxu0 %v2568
    %2772 = vmatprep.subr.mxu0 0.0
    %2773 = vmatpush1.msra.mxu0 %v2569
    %2774 = vmatprep.subr.mxu0 0.0
    %2775 = vmatpush1.msra.mxu0 %v2570
    %2776 = vmatprep.subr.mxu0 0.0
    %2777 = vmatpush1.msra.mxu0 %v2571
    %2778 = vmatprep.subr.mxu0 0.0
    %2779 = vmatpush1.msra.mxu0 %v2572
    %2780 = vmatprep.subr.mxu0 0.0
    %2781 = vmatpush1.msra.mxu0 %v2573
    %2782 = vmatprep.subr.mxu0 0.0
    %2783 = vmatpush1.msra.mxu0 %v2574
    %2784 = vmatprep.subr.mxu0 0.0
    %2785 = vmatpush1.msra.mxu0 %v2575
    %2786 = vmatprep.subr.mxu0 0.0
    %2787 = vmatpush1.msra.mxu0 %v2576
    %2788 = vmatprep.subr.mxu0 0.0
    %2789 = vmatpush1.msra.mxu0 %v2577
    %2790 = vmatprep.subr.mxu0 0.0
    %2791 = vmatpush1.msra.mxu0 %v2578
    %2792 = vmatprep.subr.mxu0 0.0
    %2793 = vmatpush1.msra.mxu0 %v2579
    %2794 = vmatprep.subr.mxu0 0.0
    %2795 = vmatpush1.msra.mxu0 %v2580
    %2796 = vmatprep.subr.mxu0 0.0
    %2797 = vmatpush1.msra.mxu0 %v2581
    %2798 = vmatprep.subr.mxu0 0.0
    %2799 = vmatpush1.msra.mxu0 %v2582
    %2800 = vmatprep.subr.mxu0 0.0
    %2801 = vmatpush1.msra.mxu0 0.0
    %2802 = vmatprep.subr.mxu0 0.0
    %2803 = vmatpush1.msra.mxu0 0.0
    %2804 = vmatprep.subr.mxu0 0.0
    %2805 = vmatpush1.msra.mxu0 0.0
    %2806 = vmatprep.subr.mxu0 0.0
    %2807 = vmatpush1.msra.mxu0 0.0
    %2808 = vmatprep.subr.mxu0 0.0
    %2809 = vmatpush1.msra.mxu0 0.0
    %2810 = vmatprep.subr.mxu0 0.0
    %2811 = vmatpush1.msra.mxu0 0.0
    %2812 = vmatprep.subr.mxu0 0.0
    %2813 = vmatpush1.msra.mxu0 0.0
    %2814 = vmatprep.subr.mxu0 0.0
    %2815 = vmatpush1.msra.mxu0 0.0
    %2816 = vmatprep.subr.mxu0 0.0
    %2817 = vmatpush1.msra.mxu0 0.0
    %2818 = vmatprep.subr.mxu0 0.0
    %2819 = vmatpush1.msra.mxu0 0.0
    %2820 = vmatprep.subr.mxu0 0.0
    %2821 = vmatpush1.msra.mxu0 0.0
    %2822 = vmatprep.subr.mxu0 0.0
    %2823 = vmatpush1.msra.mxu0 0.0
    %2824 = vmatprep.mubr.f32.mxu0 %v2758
    %2825 = vmatmul.mubr.f32.gmra.mrb[0].mxu0 %v2482
    %v2826 = vpop.f32.mrb[0].mxu0
    %v2827 = vadd.f32 %v2678, %v2826
    %v2828 = vpop.f32.mrb[0].mxu0
    %2829 = vdwg.mxu0
    %v2830 = vsel %vm104, %v2561, 0
    %2832 = vmatprep.subr.mxu0 0.0
    %2833 = vmatpush1.msra.mxu0 %v2563
    %2834 = vmatprep.subr.mxu0 0.0
    %2835 = vmatpush1.msra.mxu0 %v2564
    %2836 = vmatprep.subr.mxu0 0.0
    %2837 = vmatpush1.msra.mxu0 %v2565
    %2838 = vmatprep.subr.mxu0 0.0
    %2839 = vmatpush1.msra.mxu0 %v2566
    %2840 = vmatprep.subr.mxu0 0.0
    %2841 = vmatpush1.msra.mxu0 %v2567
    %2842 = vmatprep.subr.mxu0 0.0
    %2843 = vmatpush1.msra.mxu0 %v2568
    %2844 = vmatprep.subr.mxu0 0.0
    %2845 = vmatpush1.msra.mxu0 %v2569
    %2846 = vmatprep.subr.mxu0 0.0
    %2847 = vmatpush1.msra.mxu0 %v2570
    %2848 = vmatprep.subr.mxu0 0.0
    %2849 = vmatpush1.msra.mxu0 %v2571
    %2850 = vmatprep.subr.mxu0 0.0
    %2851 = vmatpush1.msra.mxu0 %v2572
    %2852 = vmatprep.subr.mxu0 0.0
    %2853 = vmatpush1.msra.mxu0 %v2573
    %2854 = vmatprep.subr.mxu0 0.0
    %2855 = vmatpush1.msra.mxu0 %v2574
    %2856 = vmatprep.subr.mxu0 0.0
    %2857 = vmatpush1.msra.mxu0 %v2575
    %2858 = vmatprep.subr.mxu0 0.0
    %2859 = vmatpush1.msra.mxu0 %v2576
    %2860 = vmatprep.subr.mxu0 0.0
    %2861 = vmatpush1.msra.mxu0 %v2577
    %2862 = vmatprep.subr.mxu0 0.0
    %2863 = vmatpush1.msra.mxu0 %v2578
    %2864 = vmatprep.subr.mxu0 0.0
    %2865 = vmatpush1.msra.mxu0 %v2579
    %2866 = vmatprep.subr.mxu0 0.0
    %2867 = vmatpush1.msra.mxu0 %v2580
    %2868 = vmatprep.subr.mxu0 0.0
    %2869 = vmatpush1.msra.mxu0 %v2581
    %2870 = vmatprep.subr.mxu0 0.0
    %2871 = vmatpush1.msra.mxu0 %v2582
    %2872 = vmatprep.subr.mxu0 0.0
    %2873 = vmatpush1.msra.mxu0 0.0
    %2874 = vmatprep.subr.mxu0 0.0
    %2875 = vmatpush1.msra.mxu0 0.0
    %2876 = vmatprep.subr.mxu0 0.0
    %2877 = vmatpush1.msra.mxu0 0.0
    %2878 = vmatprep.subr.mxu0 0.0
    %2879 = vmatpush1.msra.mxu0 0.0
    %2880 = vmatprep.subr.mxu0 0.0
    %2881 = vmatpush1.msra.mxu0 0.0
    %2882 = vmatprep.subr.mxu0 0.0
    %2883 = vmatpush1.msra.mxu0 0.0
    %2884 = vmatprep.subr.mxu0 0.0
    %2885 = vmatpush1.msra.mxu0 0.0
    %2886 = vmatprep.subr.mxu0 0.0
    %2887 = vmatpush1.msra.mxu0 0.0
    %2888 = vmatprep.subr.mxu0 0.0
    %2889 = vmatpush1.msra.mxu0 0.0
    %2890 = vmatprep.subr.mxu0 0.0
    %2891 = vmatpush1.msra.mxu0 0.0
    %2892 = vmatprep.subr.mxu0 0.0
    %2893 = vmatpush1.msra.mxu0 0.0
    %2894 = vmatprep.subr.mxu0 0.0
    %2895 = vmatpush1.msra.mxu0 0.0
    %2896 = vmatprep.mubr.f32.mxu0 %v2830
    %2897 = vmatmul.mubr.f32.gmra.mrb[0].mxu0 %v2559
    %v2898 = vpop.f32.mrb[0].mxu0
    %v2899 = vadd.f32 %v2755, %v2898
    %v2900 = vpop.f32.mrb[0].mxu0
    %2901 = vdwg.mxu0
    %s2902 = scalar_lea.vmem [#allocation5], 320
    %v2903 = vld [vmem:[%s2902] sm:$0xff]
    %v2904 = vld [vmem:[%s2902 + $0x8] sm:$0xff]
    %v2905 = vld [vmem:[%s2902 + $0x10] sm:$0xff]
    %v2906 = vld [vmem:[%s2902 + $0x18] sm:$0xff]
    %v2907 = vld [vmem:[%s2902 + $0x20] sm:$0xff]
    %v2908 = vld [vmem:[%s2902 + $0x28] sm:$0xff]
    %v2909 = vld [vmem:[%s2902 + $0x30] sm:$0xff]
    %v2910 = vld [vmem:[%s2902 + $0x38] sm:$0xff]
    %v2911 = vld [vmem:[%s2902 + $0x40] sm:$0xff]
    %v2912 = vld [vmem:[%s2902 + $0x48] sm:$0xff]
    %v2913 = vld [vmem:[%s2902 + $0x50] sm:$0xff]
    %v2914 = vld [vmem:[%s2902 + $0x58] sm:$0xff]
    %v2915 = vld [vmem:[%s2902 + $0x60] sm:$0xff]
    %v2916 = vld [vmem:[%s2902 + $0x68] sm:$0xff]
    %v2917 = vld [vmem:[%s2902 + $0x70] sm:$0xff]
    %v2918 = vld [vmem:[%s2902 + $0x78] sm:$0xff]
    %v2919 = vld [vmem:[%s2902 + $0x80] sm:$0xff]
    %v2920 = vld [vmem:[%s2902 + $0x88] sm:$0xff]
    %v2921 = vld [vmem:[%s2902 + $0x90] sm:$0xff]
    %v2922 = vld [vmem:[%s2902 + $0x98] sm:$0xff]
    %v2923 = vrot.slane %v2482, 2
    %v2924 = vrot.slane %v2484, 2
    %v2926 = vsel %vm104, %v2924, 0
    %2928 = vmatprep.subr.mxu0 0.0
    %2929 = vmatpush1.msra.mxu0 %v2903
    %2930 = vmatprep.subr.mxu0 0.0
    %2931 = vmatpush1.msra.mxu0 %v2904
    %2932 = vmatprep.subr.mxu0 0.0
    %2933 = vmatpush1.msra.mxu0 %v2905
    %2934 = vmatprep.subr.mxu0 0.0
    %2935 = vmatpush1.msra.mxu0 %v2906
    %2936 = vmatprep.subr.mxu0 0.0
    %2937 = vmatpush1.msra.mxu0 %v2907
    %2938 = vmatprep.subr.mxu0 0.0
    %2939 = vmatpush1.msra.mxu0 %v2908
    %2940 = vmatprep.subr.mxu0 0.0
    %2941 = vmatpush1.msra.mxu0 %v2909
    %2942 = vmatprep.subr.mxu0 0.0
    %2943 = vmatpush1.msra.mxu0 %v2910
    %2944 = vmatprep.subr.mxu0 0.0
    %2945 = vmatpush1.msra.mxu0 %v2911
    %2946 = vmatprep.subr.mxu0 0.0
    %2947 = vmatpush1.msra.mxu0 %v2912
    %2948 = vmatprep.subr.mxu0 0.0
    %2949 = vmatpush1.msra.mxu0 %v2913
    %2950 = vmatprep.subr.mxu0 0.0
    %2951 = vmatpush1.msra.mxu0 %v2914
    %2952 = vmatprep.subr.mxu0 0.0
    %2953 = vmatpush1.msra.mxu0 %v2915
    %2954 = vmatprep.subr.mxu0 0.0
    %2955 = vmatpush1.msra.mxu0 %v2916
    %2956 = vmatprep.subr.mxu0 0.0
    %2957 = vmatpush1.msra.mxu0 %v2917
    %2958 = vmatprep.subr.mxu0 0.0
    %2959 = vmatpush1.msra.mxu0 %v2918
    %2960 = vmatprep.subr.mxu0 0.0
    %2961 = vmatpush1.msra.mxu0 %v2919
    %2962 = vmatprep.subr.mxu0 0.0
    %2963 = vmatpush1.msra.mxu0 %v2920
    %2964 = vmatprep.subr.mxu0 0.0
    %2965 = vmatpush1.msra.mxu0 %v2921
    %2966 = vmatprep.subr.mxu0 0.0
    %2967 = vmatpush1.msra.mxu0 %v2922
    %2968 = vmatprep.subr.mxu0 0.0
    %2969 = vmatpush1.msra.mxu0 0.0
    %2970 = vmatprep.subr.mxu0 0.0
    %2971 = vmatpush1.msra.mxu0 0.0
    %2972 = vmatprep.subr.mxu0 0.0
    %2973 = vmatpush1.msra.mxu0 0.0
    %2974 = vmatprep.subr.mxu0 0.0
    %2975 = vmatpush1.msra.mxu0 0.0
    %2976 = vmatprep.subr.mxu0 0.0
    %2977 = vmatpush1.msra.mxu0 0.0
    %2978 = vmatprep.subr.mxu0 0.0
    %2979 = vmatpush1.msra.mxu0 0.0
    %2980 = vmatprep.subr.mxu0 0.0
    %2981 = vmatpush1.msra.mxu0 0.0
    %2982 = vmatprep.subr.mxu0 0.0
    %2983 = vmatpush1.msra.mxu0 0.0
    %2984 = vmatprep.subr.mxu0 0.0
    %2985 = vmatpush1.msra.mxu0 0.0
    %2986 = vmatprep.subr.mxu0 0.0
    %2987 = vmatpush1.msra.mxu0 0.0
    %2988 = vmatprep.subr.mxu0 0.0
    %2989 = vmatpush1.msra.mxu0 0.0
    %2990 = vmatprep.subr.mxu0 0.0
    %2991 = vmatpush1.msra.mxu0 0.0
    %2992 = vmatprep.mubr.f32.mxu0 %v2926
    %2993 = vmatmul.mubr.f32.gmra.mrb[0].mxu0 %v2923
    %v2994 = vpop.f32.mrb[0].mxu0
    %v2995 = vadd.f32 0.0, %v2994
    %v2996 = vpop.f32.mrb[0].mxu0
    %2997 = vdwg.mxu0
    %v2998 = vrot.slane %v2559, 2
    %v2999 = vrot.slane %v2561, 2
    %v3001 = vsel %vm104, %v2999, 0
    %3003 = vmatprep.subr.mxu0 0.0
    %3004 = vmatpush1.msra.mxu0 %v2903
    %3005 = vmatprep.subr.mxu0 0.0
    %3006 = vmatpush1.msra.mxu0 %v2904
    %3007 = vmatprep.subr.mxu0 0.0
    %3008 = vmatpush1.msra.mxu0 %v2905
    %3009 = vmatprep.subr.mxu0 0.0
    %3010 = vmatpush1.msra.mxu0 %v2906
    %3011 = vmatprep.subr.mxu0 0.0
    %3012 = vmatpush1.msra.mxu0 %v2907
    %3013 = vmatprep.subr.mxu0 0.0
    %3014 = vmatpush1.msra.mxu0 %v2908
    %3015 = vmatprep.subr.mxu0 0.0
    %3016 = vmatpush1.msra.mxu0 %v2909
    %3017 = vmatprep.subr.mxu0 0.0
    %3018 = vmatpush1.msra.mxu0 %v2910
    %3019 = vmatprep.subr.mxu0 0.0
    %3020 = vmatpush1.msra.mxu0 %v2911
    %3021 = vmatprep.subr.mxu0 0.0
    %3022 = vmatpush1.msra.mxu0 %v2912
    %3023 = vmatprep.subr.mxu0 0.0
    %3024 = vmatpush1.msra.mxu0 %v2913
    %3025 = vmatprep.subr.mxu0 0.0
    %3026 = vmatpush1.msra.mxu0 %v2914
    %3027 = vmatprep.subr.mxu0 0.0
    %3028 = vmatpush1.msra.mxu0 %v2915
    %3029 = vmatprep.subr.mxu0 0.0
    %3030 = vmatpush1.msra.mxu0 %v2916
    %3031 = vmatprep.subr.mxu0 0.0
    %3032 = vmatpush1.msra.mxu0 %v2917
    %3033 = vmatprep.subr.mxu0 0.0
    %3034 = vmatpush1.msra.mxu0 %v2918
    %3035 = vmatprep.subr.mxu0 0.0
    %3036 = vmatpush1.msra.mxu0 %v2919
    %3037 = vmatprep.subr.mxu0 0.0
    %3038 = vmatpush1.msra.mxu0 %v2920
    %3039 = vmatprep.subr.mxu0 0.0
    %3040 = vmatpush1.msra.mxu0 %v2921
    %3041 = vmatprep.subr.mxu0 0.0
    %3042 = vmatpush1.msra.mxu0 %v2922
    %3043 = vmatprep.subr.mxu0 0.0
    %3044 = vmatpush1.msra.mxu0 0.0
    %3045 = vmatprep.subr.mxu0 0.0
    %3046 = vmatpush1.msra.mxu0 0.0
    %3047 = vmatprep.subr.mxu0 0.0
    %3048 = vmatpush1.msra.mxu0 0.0
    %3049 = vmatprep.subr.mxu0 0.0
    %3050 = vmatpush1.msra.mxu0 0.0
    %3051 = vmatprep.subr.mxu0 0.0
    %3052 = vmatpush1.msra.mxu0 0.0
    %3053 = vmatprep.subr.mxu0 0.0
    %3054 = vmatpush1.msra.mxu0 0.0
    %3055 = vmatprep.subr.mxu0 0.0
    %3056 = vmatpush1.msra.mxu0 0.0
    %3057 = vmatprep.subr.mxu0 0.0
    %3058 = vmatpush1.msra.mxu0 0.0
    %3059 = vmatprep.subr.mxu0 0.0
    %3060 = vmatpush1.msra.mxu0 0.0
    %3061 = vmatprep.subr.mxu0 0.0
    %3062 = vmatpush1.msra.mxu0 0.0
    %3063 = vmatprep.subr.mxu0 0.0
    %3064 = vmatpush1.msra.mxu0 0.0
    %3065 = vmatprep.subr.mxu0 0.0
    %3066 = vmatpush1.msra.mxu0 0.0
    %3067 = vmatprep.mubr.f32.mxu0 %v3001
    %3068 = vmatmul.mubr.f32.gmra.mrb[0].mxu0 %v2998
    %v3069 = vpop.f32.mrb[0].mxu0
    %v3070 = vadd.f32 0.0, %v3069
    %v3071 = vpop.f32.mrb[0].mxu0
    %3072 = vdwg.mxu0
    %v3073 = vadd.f32 %v2827, %v2995
    %v3074 = vadd.f32 %v2899, %v3070
    %s3075 = scalar_lea.vmem [#allocation5], 480
    %v3076 = vld [vmem:[%s3075] sm:$0xff]
    %v3077 = vld [vmem:[%s3075 + $0x8] sm:$0xff]
    %v3078 = vld [vmem:[%s3075 + $0x10] sm:$0xff]
    %v3079 = vld [vmem:[%s3075 + $0x18] sm:$0xff]
    %v3080 = vld [vmem:[%s3075 + $0x20] sm:$0xff]
    %v3081 = vld [vmem:[%s3075 + $0x28] sm:$0xff]
    %v3082 = vld [vmem:[%s3075 + $0x30] sm:$0xff]
    %v3083 = vld [vmem:[%s3075 + $0x38] sm:$0xff]
    %v3084 = vld [vmem:[%s3075 + $0x40] sm:$0xff]
    %v3085 = vld [vmem:[%s3075 + $0x48] sm:$0xff]
    %v3086 = vld [vmem:[%s3075 + $0x50] sm:$0xff]
    %v3087 = vld [vmem:[%s3075 + $0x58] sm:$0xff]
    %v3088 = vld [vmem:[%s3075 + $0x60] sm:$0xff]
    %v3089 = vld [vmem:[%s3075 + $0x68] sm:$0xff]
    %v3090 = vld [vmem:[%s3075 + $0x70] sm:$0xff]
    %v3091 = vld [vmem:[%s3075 + $0x78] sm:$0xff]
    %v3092 = vld [vmem:[%s3075 + $0x80] sm:$0xff]
    %v3093 = vld [vmem:[%s3075 + $0x88] sm:$0xff]
    %v3094 = vld [vmem:[%s3075 + $0x90] sm:$0xff]
    %v3095 = vld [vmem:[%s3075 + $0x98] sm:$0xff]
    %v3096 = vrot.slane %v2482, 3
    %v3097 = vrot.slane %v2484, 3
    %v3099 = vsel %vm104, %v3097, 0
    %3101 = vmatprep.subr.mxu0 0.0
    %3102 = vmatpush1.msra.mxu0 %v3076
    %3103 = vmatprep.subr.mxu0 0.0
    %3104 = vmatpush1.msra.mxu0 %v3077
    %3105 = vmatprep.subr.mxu0 0.0
    %3106 = vmatpush1.msra.mxu0 %v3078
    %3107 = vmatprep.subr.mxu0 0.0
    %3108 = vmatpush1.msra.mxu0 %v3079
    %3109 = vmatprep.subr.mxu0 0.0
    %3110 = vmatpush1.msra.mxu0 %v3080
    %3111 = vmatprep.subr.mxu0 0.0
    %3112 = vmatpush1.msra.mxu0 %v3081
    %3113 = vmatprep.subr.mxu0 0.0
    %3114 = vmatpush1.msra.mxu0 %v3082
    %3115 = vmatprep.subr.mxu0 0.0
    %3116 = vmatpush1.msra.mxu0 %v3083
    %3117 = vmatprep.subr.mxu0 0.0
    %3118 = vmatpush1.msra.mxu0 %v3084
    %3119 = vmatprep.subr.mxu0 0.0
    %3120 = vmatpush1.msra.mxu0 %v3085
    %3121 = vmatprep.subr.mxu0 0.0
    %3122 = vmatpush1.msra.mxu0 %v3086
    %3123 = vmatprep.subr.mxu0 0.0
    %3124 = vmatpush1.msra.mxu0 %v3087
    %3125 = vmatprep.subr.mxu0 0.0
    %3126 = vmatpush1.msra.mxu0 %v3088
    %3127 = vmatprep.subr.mxu0 0.0
    %3128 = vmatpush1.msra.mxu0 %v3089
    %3129 = vmatprep.subr.mxu0 0.0
    %3130 = vmatpush1.msra.mxu0 %v3090
    %3131 = vmatprep.subr.mxu0 0.0
    %3132 = vmatpush1.msra.mxu0 %v3091
    %3133 = vmatprep.subr.mxu0 0.0
    %3134 = vmatpush1.msra.mxu0 %v3092
    %3135 = vmatprep.subr.mxu0 0.0
    %3136 = vmatpush1.msra.mxu0 %v3093
    %3137 = vmatprep.subr.mxu0 0.0
    %3138 = vmatpush1.msra.mxu0 %v3094
    %3139 = vmatprep.subr.mxu0 0.0
    %3140 = vmatpush1.msra.mxu0 %v3095
    %3141 = vmatprep.subr.mxu0 0.0
    %3142 = vmatpush1.msra.mxu0 0.0
    %3143 = vmatprep.subr.mxu0 0.0
    %3144 = vmatpush1.msra.mxu0 0.0
    %3145 = vmatprep.subr.mxu0 0.0
    %3146 = vmatpush1.msra.mxu0 0.0
    %3147 = vmatprep.subr.mxu0 0.0
    %3148 = vmatpush1.msra.mxu0 0.0
    %3149 = vmatprep.subr.mxu0 0.0
    %3150 = vmatpush1.msra.mxu0 0.0
    %3151 = vmatprep.subr.mxu0 0.0
    %3152 = vmatpush1.msra.mxu0 0.0
    %3153 = vmatprep.subr.mxu0 0.0
    %3154 = vmatpush1.msra.mxu0 0.0
    %3155 = vmatprep.subr.mxu0 0.0
    %3156 = vmatpush1.msra.mxu0 0.0
    %3157 = vmatprep.subr.mxu0 0.0
    %3158 = vmatpush1.msra.mxu0 0.0
    %3159 = vmatprep.subr.mxu0 0.0
    %3160 = vmatpush1.msra.mxu0 0.0
    %3161 = vmatprep.subr.mxu0 0.0
    %3162 = vmatpush1.msra.mxu0 0.0
    %3163 = vmatprep.subr.mxu0 0.0
    %3164 = vmatpush1.msra.mxu0 0.0
    %3165 = vmatprep.mubr.f32.mxu0 %v3099
    %3166 = vmatmul.mubr.f32.gmra.mrb[0].mxu0 %v3096
    %v3167 = vpop.f32.mrb[0].mxu0
    %v3168 = vadd.f32 0.0, %v3167
    %v3169 = vpop.f32.mrb[0].mxu0
    %3170 = vdwg.mxu0
    %v3171 = vrot.slane %v2559, 3
    %v3172 = vrot.slane %v2561, 3
    %v3174 = vsel %vm104, %v3172, 0
    %3176 = vmatprep.subr.mxu0 0.0
    %3177 = vmatpush1.msra.mxu0 %v3076
    %3178 = vmatprep.subr.mxu0 0.0
    %3179 = vmatpush1.msra.mxu0 %v3077
    %3180 = vmatprep.subr.mxu0 0.0
    %3181 = vmatpush1.msra.mxu0 %v3078
    %3182 = vmatprep.subr.mxu0 0.0
    %3183 = vmatpush1.msra.mxu0 %v3079
    %3184 = vmatprep.subr.mxu0 0.0
    %3185 = vmatpush1.msra.mxu0 %v3080
    %3186 = vmatprep.subr.mxu0 0.0
    %3187 = vmatpush1.msra.mxu0 %v3081
    %3188 = vmatprep.subr.mxu0 0.0
    %3189 = vmatpush1.msra.mxu0 %v3082
    %3190 = vmatprep.subr.mxu0 0.0
    %3191 = vmatpush1.msra.mxu0 %v3083
    %3192 = vmatprep.subr.mxu0 0.0
    %3193 = vmatpush1.msra.mxu0 %v3084
    %3194 = vmatprep.subr.mxu0 0.0
    %3195 = vmatpush1.msra.mxu0 %v3085
    %3196 = vmatprep.subr.mxu0 0.0
    %3197 = vmatpush1.msra.mxu0 %v3086
    %3198 = vmatprep.subr.mxu0 0.0
    %3199 = vmatpush1.msra.mxu0 %v3087
    %3200 = vmatprep.subr.mxu0 0.0
    %3201 = vmatpush1.msra.mxu0 %v3088
    %3202 = vmatprep.subr.mxu0 0.0
    %3203 = vmatpush1.msra.mxu0 %v3089
    %3204 = vmatprep.subr.mxu0 0.0
    %3205 = vmatpush1.msra.mxu0 %v3090
    %3206 = vmatprep.subr.mxu0 0.0
    %3207 = vmatpush1.msra.mxu0 %v3091
    %3208 = vmatprep.subr.mxu0 0.0
    %3209 = vmatpush1.msra.mxu0 %v3092
    %3210 = vmatprep.subr.mxu0 0.0
    %3211 = vmatpush1.msra.mxu0 %v3093
    %3212 = vmatprep.subr.mxu0 0.0
    %3213 = vmatpush1.msra.mxu0 %v3094
    %3214 = vmatprep.subr.mxu0 0.0
    %3215 = vmatpush1.msra.mxu0 %v3095
    %3216 = vmatprep.subr.mxu0 0.0
    %3217 = vmatpush1.msra.mxu0 0.0
    %3218 = vmatprep.subr.mxu0 0.0
    %3219 = vmatpush1.msra.mxu0 0.0
    %3220 = vmatprep.subr.mxu0 0.0
    %3221 = vmatpush1.msra.mxu0 0.0
    %3222 = vmatprep.subr.mxu0 0.0
    %3223 = vmatpush1.msra.mxu0 0.0
    %3224 = vmatprep.subr.mxu0 0.0
    %3225 = vmatpush1.msra.mxu0 0.0
    %3226 = vmatprep.subr.mxu0 0.0
    %3227 = vmatpush1.msra.mxu0 0.0
    %3228 = vmatprep.subr.mxu0 0.0
    %3229 = vmatpush1.msra.mxu0 0.0
    %3230 = vmatprep.subr.mxu0 0.0
    %3231 = vmatpush1.msra.mxu0 0.0
    %3232 = vmatprep.subr.mxu0 0.0
    %3233 = vmatpush1.msra.mxu0 0.0
    %3234 = vmatprep.subr.mxu0 0.0
    %3235 = vmatpush1.msra.mxu0 0.0
    %3236 = vmatprep.subr.mxu0 0.0
    %3237 = vmatpush1.msra.mxu0 0.0
    %3238 = vmatprep.subr.mxu0 0.0
    %3239 = vmatpush1.msra.mxu0 0.0
    %3240 = vmatprep.mubr.f32.mxu0 %v3174
    %3241 = vmatmul.mubr.f32.gmra.mrb[0].mxu0 %v3171
    %v3242 = vpop.f32.mrb[0].mxu0
    %v3243 = vadd.f32 0.0, %v3242
    %v3244 = vpop.f32.mrb[0].mxu0
    %3245 = vdwg.mxu0
    %v3246 = vadd.f32 %v3073, %v3168
    %v3247 = vadd.f32 %v3074, %v3243
    %s3248 = scalar_lea.vmem [#allocation5], 640
    %v3249 = vld [vmem:[%s3248] sm:$0xff]
    %v3250 = vld [vmem:[%s3248 + $0x8] sm:$0xff]
    %v3251 = vld [vmem:[%s3248 + $0x10] sm:$0xff]
    %v3252 = vld [vmem:[%s3248 + $0x18] sm:$0xff]
    %v3253 = vld [vmem:[%s3248 + $0x20] sm:$0xff]
    %v3254 = vld [vmem:[%s3248 + $0x28] sm:$0xff]
    %v3255 = vld [vmem:[%s3248 + $0x30] sm:$0xff]
    %v3256 = vld [vmem:[%s3248 + $0x38] sm:$0xff]
    %v3257 = vld [vmem:[%s3248 + $0x40] sm:$0xff]
    %v3258 = vld [vmem:[%s3248 + $0x48] sm:$0xff]
    %v3259 = vld [vmem:[%s3248 + $0x50] sm:$0xff]
    %v3260 = vld [vmem:[%s3248 + $0x58] sm:$0xff]
    %v3261 = vld [vmem:[%s3248 + $0x60] sm:$0xff]
    %v3262 = vld [vmem:[%s3248 + $0x68] sm:$0xff]
    %v3263 = vld [vmem:[%s3248 + $0x70] sm:$0xff]
    %v3264 = vld [vmem:[%s3248 + $0x78] sm:$0xff]
    %v3265 = vld [vmem:[%s3248 + $0x80] sm:$0xff]
    %v3266 = vld [vmem:[%s3248 + $0x88] sm:$0xff]
    %v3267 = vld [vmem:[%s3248 + $0x90] sm:$0xff]
    %v3268 = vld [vmem:[%s3248 + $0x98] sm:$0xff]
    %v3269 = vrot.slane %v2482, 4
    %v3270 = vrot.slane %v2484, 4
    %v3272 = vsel %vm104, %v3270, 0
    %3274 = vmatprep.subr.mxu0 0.0
    %3275 = vmatpush1.msra.mxu0 %v3249
    %3276 = vmatprep.subr.mxu0 0.0
    %3277 = vmatpush1.msra.mxu0 %v3250
    %3278 = vmatprep.subr.mxu0 0.0
    %3279 = vmatpush1.msra.mxu0 %v3251
    %3280 = vmatprep.subr.mxu0 0.0
    %3281 = vmatpush1.msra.mxu0 %v3252
    %3282 = vmatprep.subr.mxu0 0.0
    %3283 = vmatpush1.msra.mxu0 %v3253
    %3284 = vmatprep.subr.mxu0 0.0
    %3285 = vmatpush1.msra.mxu0 %v3254
    %3286 = vmatprep.subr.mxu0 0.0
    %3287 = vmatpush1.msra.mxu0 %v3255
    %3288 = vmatprep.subr.mxu0 0.0
    %3289 = vmatpush1.msra.mxu0 %v3256
    %3290 = vmatprep.subr.mxu0 0.0
    %3291 = vmatpush1.msra.mxu0 %v3257
    %3292 = vmatprep.subr.mxu0 0.0
    %3293 = vmatpush1.msra.mxu0 %v3258
    %3294 = vmatprep.subr.mxu0 0.0
    %3295 = vmatpush1.msra.mxu0 %v3259
    %3296 = vmatprep.subr.mxu0 0.0
    %3297 = vmatpush1.msra.mxu0 %v3260
    %3298 = vmatprep.subr.mxu0 0.0
    %3299 = vmatpush1.msra.mxu0 %v3261
    %3300 = vmatprep.subr.mxu0 0.0
    %3301 = vmatpush1.msra.mxu0 %v3262
    %3302 = vmatprep.subr.mxu0 0.0
    %3303 = vmatpush1.msra.mxu0 %v3263
    %3304 = vmatprep.subr.mxu0 0.0
    %3305 = vmatpush1.msra.mxu0 %v3264
    %3306 = vmatprep.subr.mxu0 0.0
    %3307 = vmatpush1.msra.mxu0 %v3265
    %3308 = vmatprep.subr.mxu0 0.0
    %3309 = vmatpush1.msra.mxu0 %v3266
    %3310 = vmatprep.subr.mxu0 0.0
    %3311 = vmatpush1.msra.mxu0 %v3267
    %3312 = vmatprep.subr.mxu0 0.0
    %3313 = vmatpush1.msra.mxu0 %v3268
    %3314 = vmatprep.subr.mxu0 0.0
    %3315 = vmatpush1.msra.mxu0 0.0
    %3316 = vmatprep.subr.mxu0 0.0
    %3317 = vmatpush1.msra.mxu0 0.0
    %3318 = vmatprep.subr.mxu0 0.0
    %3319 = vmatpush1.msra.mxu0 0.0
    %3320 = vmatprep.subr.mxu0 0.0
    %3321 = vmatpush1.msra.mxu0 0.0
    %3322 = vmatprep.subr.mxu0 0.0
    %3323 = vmatpush1.msra.mxu0 0.0
    %3324 = vmatprep.subr.mxu0 0.0
    %3325 = vmatpush1.msra.mxu0 0.0
    %3326 = vmatprep.subr.mxu0 0.0
    %3327 = vmatpush1.msra.mxu0 0.0
    %3328 = vmatprep.subr.mxu0 0.0
    %3329 = vmatpush1.msra.mxu0 0.0
    %3330 = vmatprep.subr.mxu0 0.0
    %3331 = vmatpush1.msra.mxu0 0.0
    %3332 = vmatprep.subr.mxu0 0.0
    %3333 = vmatpush1.msra.mxu0 0.0
    %3334 = vmatprep.subr.mxu0 0.0
    %3335 = vmatpush1.msra.mxu0 0.0
    %3336 = vmatprep.subr.mxu0 0.0
    %3337 = vmatpush1.msra.mxu0 0.0
    %3338 = vmatprep.mubr.f32.mxu0 %v3272
    %3339 = vmatmul.mubr.f32.gmra.mrb[0].mxu0 %v3269
    %v3340 = vpop.f32.mrb[0].mxu0
    %v3341 = vadd.f32 0.0, %v3340
    %v3342 = vpop.f32.mrb[0].mxu0
    %3343 = vdwg.mxu0
    %v3344 = vrot.slane %v2559, 4
    %v3345 = vrot.slane %v2561, 4
    %v3347 = vsel %vm104, %v3345, 0
    %3349 = vmatprep.subr.mxu0 0.0
    %3350 = vmatpush1.msra.mxu0 %v3249
    %3351 = vmatprep.subr.mxu0 0.0
    %3352 = vmatpush1.msra.mxu0 %v3250
    %3353 = vmatprep.subr.mxu0 0.0
    %3354 = vmatpush1.msra.mxu0 %v3251
    %3355 = vmatprep.subr.mxu0 0.0
    %3356 = vmatpush1.msra.mxu0 %v3252
    %3357 = vmatprep.subr.mxu0 0.0
    %3358 = vmatpush1.msra.mxu0 %v3253
    %3359 = vmatprep.subr.mxu0 0.0
    %3360 = vmatpush1.msra.mxu0 %v3254
    %3361 = vmatprep.subr.mxu0 0.0
    %3362 = vmatpush1.msra.mxu0 %v3255
    %3363 = vmatprep.subr.mxu0 0.0
    %3364 = vmatpush1.msra.mxu0 %v3256
    %3365 = vmatprep.subr.mxu0 0.0
    %3366 = vmatpush1.msra.mxu0 %v3257
    %3367 = vmatprep.subr.mxu0 0.0
    %3368 = vmatpush1.msra.mxu0 %v3258
    %3369 = vmatprep.subr.mxu0 0.0
    %3370 = vmatpush1.msra.mxu0 %v3259
    %3371 = vmatprep.subr.mxu0 0.0
    %3372 = vmatpush1.msra.mxu0 %v3260
    %3373 = vmatprep.subr.mxu0 0.0
    %3374 = vmatpush1.msra.mxu0 %v3261
    %3375 = vmatprep.subr.mxu0 0.0
    %3376 = vmatpush1.msra.mxu0 %v3262
    %3377 = vmatprep.subr.mxu0 0.0
    %3378 = vmatpush1.msra.mxu0 %v3263
    %3379 = vmatprep.subr.mxu0 0.0
    %3380 = vmatpush1.msra.mxu0 %v3264
    %3381 = vmatprep.subr.mxu0 0.0
    %3382 = vmatpush1.msra.mxu0 %v3265
    %3383 = vmatprep.subr.mxu0 0.0
    %3384 = vmatpush1.msra.mxu0 %v3266
    %3385 = vmatprep.subr.mxu0 0.0
    %3386 = vmatpush1.msra.mxu0 %v3267
    %3387 = vmatprep.subr.mxu0 0.0
    %3388 = vmatpush1.msra.mxu0 %v3268
    %3389 = vmatprep.subr.mxu0 0.0
    %3390 = vmatpush1.msra.mxu0 0.0
    %3391 = vmatprep.subr.mxu0 0.0
    %3392 = vmatpush1.msra.mxu0 0.0
    %3393 = vmatprep.subr.mxu0 0.0
    %3394 = vmatpush1.msra.mxu0 0.0
    %3395 = vmatprep.subr.mxu0 0.0
    %3396 = vmatpush1.msra.mxu0 0.0
    %3397 = vmatprep.subr.mxu0 0.0
    %3398 = vmatpush1.msra.mxu0 0.0
    %3399 = vmatprep.subr.mxu0 0.0
    %3400 = vmatpush1.msra.mxu0 0.0
    %3401 = vmatprep.subr.mxu0 0.0
    %3402 = vmatpush1.msra.mxu0 0.0
    %3403 = vmatprep.subr.mxu0 0.0
    %3404 = vmatpush1.msra.mxu0 0.0
    %3405 = vmatprep.subr.mxu0 0.0
    %3406 = vmatpush1.msra.mxu0 0.0
    %3407 = vmatprep.subr.mxu0 0.0
    %3408 = vmatpush1.msra.mxu0 0.0
    %3409 = vmatprep.subr.mxu0 0.0
    %3410 = vmatpush1.msra.mxu0 0.0
    %3411 = vmatprep.subr.mxu0 0.0
    %3412 = vmatpush1.msra.mxu0 0.0
    %3413 = vmatprep.mubr.f32.mxu0 %v3347
    %3414 = vmatmul.mubr.f32.gmra.mrb[0].mxu0 %v3344
    %v3415 = vpop.f32.mrb[0].mxu0
    %v3416 = vadd.f32 0.0, %v3415
    %v3417 = vpop.f32.mrb[0].mxu0
    %3418 = vdwg.mxu0
    %v3419 = vadd.f32 %v3246, %v3341
    %v3420 = vadd.f32 %v3247, %v3416
    %v3421 = vld [vmem:[%s6] sm:$0x1]
    %v3422 = vadd.f32 %v3419, %v3421
    %v3423 = vadd.f32 %v3420, %v3421
    %v3424 = vmax.f32 %v3422, 0.0
    %v3425 = vmax.f32 %v3423, 0.0
    %v3426 = vld [vmem:[%s7] sm:$0xff]
    %v3427 = vld [vmem:[%s7 + $0x8] sm:$0xff]
    %v3428 = vld [vmem:[%s7 + $0x10] sm:$0xff]
    %v3429 = vld [vmem:[%s7 + $0x18] sm:$0xff]
    %v3430 = vld [vmem:[%s7 + $0x20] sm:$0xff]
    %v3431 = vld [vmem:[%s7 + $0x28] sm:$0xff]
    %v3432 = vld [vmem:[%s7 + $0x30] sm:$0xff]
    %v3433 = vld [vmem:[%s7 + $0x38] sm:$0xff]
    %v3434 = vld [vmem:[%s7 + $0x40] sm:$0xff]
    %v3435 = vld [vmem:[%s7 + $0x48] sm:$0xff]
    %v3436 = vld [vmem:[%s7 + $0x50] sm:$0xff]
    %v3437 = vld [vmem:[%s7 + $0x58] sm:$0xff]
    %v3438 = vld [vmem:[%s7 + $0x60] sm:$0xff]
    %v3439 = vld [vmem:[%s7 + $0x68] sm:$0xff]
    %v3440 = vld [vmem:[%s7 + $0x70] sm:$0xff]
    %v3441 = vld [vmem:[%s8] sm:$0x1]
    %vm3442 = vcmask 982016
    %v3444 = vsel %vm3442, %v3424, 0
    %3446 = vmatprep.subr.mxu0 0.0
    %3447 = vmatpush1.msra.mxu0 %v3426
    %3448 = vmatprep.subr.mxu0 0.0
    %3449 = vmatpush1.msra.mxu0 %v3427
    %3450 = vmatprep.subr.mxu0 0.0
    %3451 = vmatpush1.msra.mxu0 %v3428
    %3452 = vmatprep.subr.mxu0 0.0
    %3453 = vmatpush1.msra.mxu0 %v3429
    %3454 = vmatprep.subr.mxu0 0.0
    %3455 = vmatpush1.msra.mxu0 %v3430
    %3456 = vmatprep.subr.mxu0 0.0
    %3457 = vmatpush1.msra.mxu0 %v3431
    %3458 = vmatprep.subr.mxu0 0.0
    %3459 = vmatpush1.msra.mxu0 %v3432
    %3460 = vmatprep.subr.mxu0 0.0
    %3461 = vmatpush1.msra.mxu0 %v3433
    %3462 = vmatprep.subr.mxu0 0.0
    %3463 = vmatpush1.msra.mxu0 %v3434
    %3464 = vmatprep.subr.mxu0 0.0
    %3465 = vmatpush1.msra.mxu0 %v3435
    %3466 = vmatprep.subr.mxu0 0.0
    %3467 = vmatpush1.msra.mxu0 %v3436
    %3468 = vmatprep.subr.mxu0 0.0
    %3469 = vmatpush1.msra.mxu0 %v3437
    %3470 = vmatprep.subr.mxu0 0.0
    %3471 = vmatpush1.msra.mxu0 %v3438
    %3472 = vmatprep.subr.mxu0 0.0
    %3473 = vmatpush1.msra.mxu0 %v3439
    %3474 = vmatprep.subr.mxu0 0.0
    %3475 = vmatpush1.msra.mxu0 %v3440
    %3476 = vmatprep.subr.mxu0 0.0
    %3477 = vmatpush1.msra.mxu0 0.0
    %3478 = vmatprep.subr.mxu0 0.0
    %3479 = vmatpush1.msra.mxu0 0.0
    %3480 = vmatprep.subr.mxu0 0.0
    %3481 = vmatpush1.msra.mxu0 0.0
    %3482 = vmatprep.subr.mxu0 0.0
    %3483 = vmatpush1.msra.mxu0 0.0
    %3484 = vmatprep.subr.mxu0 0.0
    %3485 = vmatpush1.msra.mxu0 0.0
    %3486 = vmatprep.subr.mxu0 0.0
    %3487 = vmatpush1.msra.mxu0 0.0
    %3488 = vmatprep.subr.mxu0 0.0
    %3489 = vmatpush1.msra.mxu0 0.0
    %3490 = vmatprep.subr.mxu0 0.0
    %3491 = vmatpush1.msra.mxu0 0.0
    %3492 = vmatprep.subr.mxu0 0.0
    %3493 = vmatpush1.msra.mxu0 0.0
    %3494 = vmatprep.subr.mxu0 0.0
    %3495 = vmatpush1.msra.mxu0 0.0
    %3496 = vmatprep.subr.mxu0 0.0
    %3497 = vmatpush1.msra.mxu0 0.0
    %3498 = vmatprep.subr.mxu0 0.0
    %3499 = vmatpush1.msra.mxu0 0.0
    %3500 = vmatprep.subr.mxu0 0.0
    %3501 = vmatpush1.msra.mxu0 0.0
    %3502 = vmatprep.subr.mxu0 0.0
    %3503 = vmatpush1.msra.mxu0 0.0
    %3504 = vmatprep.subr.mxu0 0.0
    %3505 = vmatpush1.msra.mxu0 0.0
    %3506 = vmatprep.subr.mxu0 0.0
    %3507 = vmatpush1.msra.mxu0 0.0
    %3508 = vmatprep.subr.mxu0 0.0
    %3509 = vmatpush1.msra.mxu0 0.0
    %3510 = vmatprep.mubr.f32.mxu0 0.0
    %3511 = vmatmul.mubr.f32.gmra.mrb[0].mxu0 %v3444
    %v3512 = vpop.f32.mrb[0].mxu0
    %v3513 = vadd.f32 %v3441, %v3512
    %v3514 = vpop.f32.mrb[0].mxu0
    %3515 = vdwg.mxu0
    %v3517 = vsel %vm3442, %v3425, 0
    %3519 = vmatprep.subr.mxu0 0.0
    %3520 = vmatpush1.msra.mxu0 %v3426
    %3521 = vmatprep.subr.mxu0 0.0
    %3522 = vmatpush1.msra.mxu0 %v3427
    %3523 = vmatprep.subr.mxu0 0.0
    %3524 = vmatpush1.msra.mxu0 %v3428
    %3525 = vmatprep.subr.mxu0 0.0
    %3526 = vmatpush1.msra.mxu0 %v3429
    %3527 = vmatprep.subr.mxu0 0.0
    %3528 = vmatpush1.msra.mxu0 %v3430
    %3529 = vmatprep.subr.mxu0 0.0
    %3530 = vmatpush1.msra.mxu0 %v3431
    %3531 = vmatprep.subr.mxu0 0.0
    %3532 = vmatpush1.msra.mxu0 %v3432
    %3533 = vmatprep.subr.mxu0 0.0
    %3534 = vmatpush1.msra.mxu0 %v3433
    %3535 = vmatprep.subr.mxu0 0.0
    %3536 = vmatpush1.msra.mxu0 %v3434
    %3537 = vmatprep.subr.mxu0 0.0
    %3538 = vmatpush1.msra.mxu0 %v3435
    %3539 = vmatprep.subr.mxu0 0.0
    %3540 = vmatpush1.msra.mxu0 %v3436
    %3541 = vmatprep.subr.mxu0 0.0
    %3542 = vmatpush1.msra.mxu0 %v3437
    %3543 = vmatprep.subr.mxu0 0.0
    %3544 = vmatpush1.msra.mxu0 %v3438
    %3545 = vmatprep.subr.mxu0 0.0
    %3546 = vmatpush1.msra.mxu0 %v3439
    %3547 = vmatprep.subr.mxu0 0.0
    %3548 = vmatpush1.msra.mxu0 %v3440
    %3549 = vmatprep.subr.mxu0 0.0
    %3550 = vmatpush1.msra.mxu0 0.0
    %3551 = vmatprep.subr.mxu0 0.0
    %3552 = vmatpush1.msra.mxu0 0.0
    %3553 = vmatprep.subr.mxu0 0.0
    %3554 = vmatpush1.msra.mxu0 0.0
    %3555 = vmatprep.subr.mxu0 0.0
    %3556 = vmatpush1.msra.mxu0 0.0
    %3557 = vmatprep.subr.mxu0 0.0
    %3558 = vmatpush1.msra.mxu0 0.0
    %3559 = vmatprep.subr.mxu0 0.0
    %3560 = vmatpush1.msra.mxu0 0.0
    %3561 = vmatprep.subr.mxu0 0.0
    %3562 = vmatpush1.msra.mxu0 0.0
    %3563 = vmatprep.subr.mxu0 0.0
    %3564 = vmatpush1.msra.mxu0 0.0
    %3565 = vmatprep.subr.mxu0 0.0
    %3566 = vmatpush1.msra.mxu0 0.0
    %3567 = vmatprep.subr.mxu0 0.0
    %3568 = vmatpush1.msra.mxu0 0.0
    %3569 = vmatprep.subr.mxu0 0.0
    %3570 = vmatpush1.msra.mxu0 0.0
    %3571 = vmatprep.subr.mxu0 0.0
    %3572 = vmatpush1.msra.mxu0 0.0
    %3573 = vmatprep.subr.mxu0 0.0
    %3574 = vmatpush1.msra.mxu0 0.0
    %3575 = vmatprep.subr.mxu0 0.0
    %3576 = vmatpush1.msra.mxu0 0.0
    %3577 = vmatprep.subr.mxu0 0.0
    %3578 = vmatpush1.msra.mxu0 0.0
    %3579 = vmatprep.subr.mxu0 0.0
    %3580 = vmatpush1.msra.mxu0 0.0
    %3581 = vmatprep.subr.mxu0 0.0
    %3582 = vmatpush1.msra.mxu0 0.0
    %3583 = vmatprep.mubr.f32.mxu0 0.0
    %3584 = vmatmul.mubr.f32.gmra.mrb[0].mxu0 %v3517
    %v3585 = vpop.f32.mrb[0].mxu0
    %v3586 = vadd.f32 %v3441, %v3585
    %v3587 = vpop.f32.mrb[0].mxu0
    %3588 = vdwg.mxu0
    %v3589 = vmax.f32 %v3513, 0.0
    %v3590 = vmax.f32 %v3586, 0.0
    %v3591 = vld [vmem:[%s9] sm:$0xff]
    %v3592 = vld [vmem:[%s9 + $0x8] sm:$0xff]
    %v3593 = vld [vmem:[%s9 + $0x10] sm:$0xff]
    %v3594 = vld [vmem:[%s9 + $0x18] sm:$0xff]
    %v3595 = vld [vmem:[%s9 + $0x20] sm:$0xff]
    %v3596 = vld [vmem:[%s9 + $0x28] sm:$0xff]
    %v3597 = vld [vmem:[%s9 + $0x30] sm:$0xff]
    %v3598 = vld [vmem:[%s9 + $0x38] sm:$0xff]
    %v3599 = vld [vmem:[%s9 + $0x40] sm:$0xff]
    %v3600 = vld [vmem:[%s9 + $0x48] sm:$0xff]
    %v3601 = vld [vmem:[%s9 + $0x50] sm:$0xf]
    %v3602 = vld [vmem:[%s10] sm:$0x1]
    %vm3603 = vcmask 687104
    %v3605 = vsel %vm3603, %v3589, 0
    %v3608 = vsel %vm2103, %v3601, 0
    %3610 = vmatprep.subr.mxu0 0.0
    %3611 = vmatpush1.msra.mxu0 %v3591
    %3612 = vmatprep.subr.mxu0 0.0
    %3613 = vmatpush1.msra.mxu0 %v3592
    %3614 = vmatprep.subr.mxu0 0.0
    %3615 = vmatpush1.msra.mxu0 %v3593
    %3616 = vmatprep.subr.mxu0 0.0
    %3617 = vmatpush1.msra.mxu0 %v3594
    %3618 = vmatprep.subr.mxu0 0.0
    %3619 = vmatpush1.msra.mxu0 %v3595
    %3620 = vmatprep.subr.mxu0 0.0
    %3621 = vmatpush1.msra.mxu0 %v3596
    %3622 = vmatprep.subr.mxu0 0.0
    %3623 = vmatpush1.msra.mxu0 %v3597
    %3624 = vmatprep.subr.mxu0 0.0
    %3625 = vmatpush1.msra.mxu0 %v3598
    %3626 = vmatprep.subr.mxu0 0.0
    %3627 = vmatpush1.msra.mxu0 %v3599
    %3628 = vmatprep.subr.mxu0 0.0
    %3629 = vmatpush1.msra.mxu0 %v3600
    %3630 = vmatprep.subr.mxu0 0.0
    %3631 = vmatpush1.msra.mxu0 %v3608
    %3632 = vmatprep.subr.mxu0 0.0
    %3633 = vmatpush1.msra.mxu0 0.0
    %3634 = vmatprep.subr.mxu0 0.0
    %3635 = vmatpush1.msra.mxu0 0.0
    %3636 = vmatprep.subr.mxu0 0.0
    %3637 = vmatpush1.msra.mxu0 0.0
    %3638 = vmatprep.subr.mxu0 0.0
    %3639 = vmatpush1.msra.mxu0 0.0
    %3640 = vmatprep.subr.mxu0 0.0
    %3641 = vmatpush1.msra.mxu0 0.0
    %3642 = vmatprep.subr.mxu0 0.0
    %3643 = vmatpush1.msra.mxu0 0.0
    %3644 = vmatprep.subr.mxu0 0.0
    %3645 = vmatpush1.msra.mxu0 0.0
    %3646 = vmatprep.subr.mxu0 0.0
    %3647 = vmatpush1.msra.mxu0 0.0
    %3648 = vmatprep.subr.mxu0 0.0
    %3649 = vmatpush1.msra.mxu0 0.0
    %3650 = vmatprep.subr.mxu0 0.0
    %3651 = vmatpush1.msra.mxu0 0.0
    %3652 = vmatprep.subr.mxu0 0.0
    %3653 = vmatpush1.msra.mxu0 0.0
    %3654 = vmatprep.subr.mxu0 0.0
    %3655 = vmatpush1.msra.mxu0 0.0
    %3656 = vmatprep.subr.mxu0 0.0
    %3657 = vmatpush1.msra.mxu0 0.0
    %3658 = vmatprep.subr.mxu0 0.0
    %3659 = vmatpush1.msra.mxu0 0.0
    %3660 = vmatprep.subr.mxu0 0.0
    %3661 = vmatpush1.msra.mxu0 0.0
    %3662 = vmatprep.subr.mxu0 0.0
    %3663 = vmatpush1.msra.mxu0 0.0
    %3664 = vmatprep.subr.mxu0 0.0
    %3665 = vmatpush1.msra.mxu0 0.0
    %3666 = vmatprep.subr.mxu0 0.0
    %3667 = vmatpush1.msra.mxu0 0.0
    %3668 = vmatprep.subr.mxu0 0.0
    %3669 = vmatpush1.msra.mxu0 0.0
    %3670 = vmatprep.subr.mxu0 0.0
    %3671 = vmatpush1.msra.mxu0 0.0
    %3672 = vmatprep.subr.mxu0 0.0
    %3673 = vmatpush1.msra.mxu0 0.0
    %3674 = vmatprep.mubr.f32.mxu0 0.0
    %3675 = vmatmul.mubr.f32.gmra.mrb[0].mxu0 %v3605
    %v3676 = vpop.f32.mrb[0].mxu0
    %v3677 = vadd.f32 %v3602, %v3676
    %v3678 = vpop.f32.mrb[0].mxu0
    %3679 = vdwg.mxu0
    %v3681 = vsel %vm3603, %v3590, 0
    %3683 = vmatprep.subr.mxu0 0.0
    %3684 = vmatpush1.msra.mxu0 %v3591
    %3685 = vmatprep.subr.mxu0 0.0
    %3686 = vmatpush1.msra.mxu0 %v3592
    %3687 = vmatprep.subr.mxu0 0.0
    %3688 = vmatpush1.msra.mxu0 %v3593
    %3689 = vmatprep.subr.mxu0 0.0
    %3690 = vmatpush1.msra.mxu0 %v3594
    %3691 = vmatprep.subr.mxu0 0.0
    %3692 = vmatpush1.msra.mxu0 %v3595
    %3693 = vmatprep.subr.mxu0 0.0
    %3694 = vmatpush1.msra.mxu0 %v3596
    %3695 = vmatprep.subr.mxu0 0.0
    %3696 = vmatpush1.msra.mxu0 %v3597
    %3697 = vmatprep.subr.mxu0 0.0
    %3698 = vmatpush1.msra.mxu0 %v3598
    %3699 = vmatprep.subr.mxu0 0.0
    %3700 = vmatpush1.msra.mxu0 %v3599
    %3701 = vmatprep.subr.mxu0 0.0
    %3702 = vmatpush1.msra.mxu0 %v3600
    %3703 = vmatprep.subr.mxu0 0.0
    %3704 = vmatpush1.msra.mxu0 %v3608
    %3705 = vmatprep.subr.mxu0 0.0
    %3706 = vmatpush1.msra.mxu0 0.0
    %3707 = vmatprep.subr.mxu0 0.0
    %3708 = vmatpush1.msra.mxu0 0.0
    %3709 = vmatprep.subr.mxu0 0.0
    %3710 = vmatpush1.msra.mxu0 0.0
    %3711 = vmatprep.subr.mxu0 0.0
    %3712 = vmatpush1.msra.mxu0 0.0
    %3713 = vmatprep.subr.mxu0 0.0
    %3714 = vmatpush1.msra.mxu0 0.0
    %3715 = vmatprep.subr.mxu0 0.0
    %3716 = vmatpush1.msra.mxu0 0.0
    %3717 = vmatprep.subr.mxu0 0.0
    %3718 = vmatpush1.msra.mxu0 0.0
    %3719 = vmatprep.subr.mxu0 0.0
    %3720 = vmatpush1.msra.mxu0 0.0
    %3721 = vmatprep.subr.mxu0 0.0
    %3722 = vmatpush1.msra.mxu0 0.0
    %3723 = vmatprep.subr.mxu0 0.0
    %3724 = vmatpush1.msra.mxu0 0.0
    %3725 = vmatprep.subr.mxu0 0.0
    %3726 = vmatpush1.msra.mxu0 0.0
    %3727 = vmatprep.subr.mxu0 0.0
    %3728 = vmatpush1.msra.mxu0 0.0
    %3729 = vmatprep.subr.mxu0 0.0
    %3730 = vmatpush1.msra.mxu0 0.0
    %3731 = vmatprep.subr.mxu0 0.0
    %3732 = vmatpush1.msra.mxu0 0.0
    %3733 = vmatprep.subr.mxu0 0.0
    %3734 = vmatpush1.msra.mxu0 0.0
    %3735 = vmatprep.subr.mxu0 0.0
    %3736 = vmatpush1.msra.mxu0 0.0
    %3737 = vmatprep.subr.mxu0 0.0
    %3738 = vmatpush1.msra.mxu0 0.0
    %3739 = vmatprep.subr.mxu0 0.0
    %3740 = vmatpush1.msra.mxu0 0.0
    %3741 = vmatprep.subr.mxu0 0.0
    %3742 = vmatpush1.msra.mxu0 0.0
    %3743 = vmatprep.subr.mxu0 0.0
    %3744 = vmatpush1.msra.mxu0 0.0
    %3745 = vmatprep.subr.mxu0 0.0
    %3746 = vmatpush1.msra.mxu0 0.0
    %3747 = vmatprep.mubr.f32.mxu0 0.0
    %3748 = vmatmul.mubr.f32.gmra.mrb[0].mxu0 %v3681
    %v3749 = vpop.f32.mrb[0].mxu0
    %v3750 = vadd.f32 %v3602, %v3749
    %v3751 = vpop.f32.mrb[0].mxu0
    %3752 = vdwg.mxu0
    %3753 = vst [vmem:[#allocation7] sm:$0x1] %v3677
    %3754 = vst [vmem:[#allocation7 + $0x1] sm:$0x1] %v3750
    // Predicated region
    $region54: #{lenet_forward.1} parent=1 // pred_check
      _
    $region55: #{lenet_forward.1} parent=1 // pred_check_branch
      %3756 = sbr.rel (0) target = $region57
    $region56: #{lenet_forward.1} parent=1 // pred_region
      %s3758 = ssub.s32 32, 32
      %3759 = vsyncadd [#allocation4], %s3758
      %s3760 = sshll.u32 [#allocation7], 4
      %s3761 = int_to_ptr.vmem [resolvable:$true] %s3760
      %3766 = dma.vmem_to_hbm [thread:$0]  %s3761, 32, %s11, [#allocation4], 16, 16, 1
    $region57: #{lenet_forward.1} parent=1 // pred_fallthru
      _
    // Predicated region
    $region58: #{lenet_forward.1} parent=1 // pred_check
      _
    $region59: #{lenet_forward.1} parent=1 // pred_check_branch
      %3768 = sbr.rel (0) target = $region61
    $region60: #{lenet_forward.1} parent=1 // pred_region
      %3769 = dma.done [#allocation4], 32
    $region61: #{lenet_forward.1} parent=1 // pred_fallthru
      _
    %3770 = vsyncpa [#allocation3], 1
    %3771 = vsyncpa [#allocation6], 1
    %3772 = vsyncpa [#allocation4], 1

</llo_original>
